<compile_context>
chip_gen: v7x
topology: tpu7x:2x2x1
jax: 0.10.0
libtpu: 0.0.40
codegen_flags: <defaults>
</compile_context>

<pallas_src>
import functools

import jax
import jax.numpy as jnp
from jax.experimental import pallas as pl
from jax.experimental.pallas import tpu as pltpu

# ----------------------------- config ---------------------------------------
PADID = 0
UNKID = 1
V = 128      # vocab size (lane aligned)
D = 128      # hidden dim (lane aligned)
B = 2        # batch
M = 4        # memory size (support set entries per example)
LX = 8       # x / xmem sequence length
LY = 9       # y / ymem sequence length  -> decoder target length T = 8
T = LY - 1
MT = M * T   # flattened memory key/enc length
NEG = -1e30


# ----------------------------- fused kernel ----------------------------------
def fused_kernel(xmem_tok_ref, ymem_tok_ref, x_tok_ref, y_tok_ref,
                 summ_pool_ref, x_pool_ref,
                 memdec_bias_ref, dec_x_bias_ref, dec_mem_bias_ref,
                 emb_me_ref, w_me_ref, b_me_ref,
                 emb_md_ref, wh_md_ref, wk_md_ref, bh_md_ref,
                 emb_e_ref, w_e_ref, b_e_ref,
                 emb_d_ref, wh_d_ref, wout_d_ref, bh_d_ref, bout_d_ref,
                 probs_ref):
    """Whole MetaSeqMemNN forward for one batch element per grid step."""

    def embed(tok, table):
        # tok: (rows, 1) int32; table: (V, D). One-hot matmul == gather, on MXU.
        rows = tok.shape[0]
        vocab = table.shape[0]
        iota = jax.lax.broadcasted_iota(jnp.int32, (rows, vocab), 1)
        onehot = (iota == tok).astype(jnp.float32)
        return jnp.dot(onehot, table, preferred_element_type=jnp.float32)

    def dot_nt(a, b):
        # a: (m, d), b: (n, d) -> (m, n)
        return jax.lax.dot_general(a, b, (((1,), (1,)), ((), ())),
                                   preferred_element_type=jnp.float32)

    def softmax(scores):
        s = scores - jnp.max(scores, axis=-1, keepdims=True)
        e = jnp.exp(s)
        return e * pl.reciprocal(jnp.sum(e, axis=-1, keepdims=True), approx=True)

    # ---- memory encoder: proj + tanh over all M support inputs at once ----
    xm_emb = embed(xmem_tok_ref[0], emb_me_ref[...])                    # (M*LX, D)
    xm_enc = jnp.tanh(jnp.dot(xm_emb, w_me_ref[...],
                              preferred_element_type=jnp.float32) + b_me_ref[...])

    # masked-mean summary of each support input, expanded to memory-decoder rows
    md_summ = jnp.dot(summ_pool_ref[0], xm_enc,
                      preferred_element_type=jnp.float32)               # (M*T, D)

    # ---- memory decoder (block-diagonal attention over own support ctx) ----
    ym_emb = embed(ymem_tok_ref[0], emb_md_ref[...])                    # (M*T, D)
    h_md = jnp.tanh(jnp.dot(ym_emb, wh_md_ref[...],
                            preferred_element_type=jnp.float32)
                    + md_summ + bh_md_ref[...])
    p_md = softmax(dot_nt(h_md, xm_enc) + memdec_bias_ref[0])           # (M*T, M*LX)
    c_md = jnp.dot(p_md, xm_enc, preferred_element_type=jnp.float32)
    mem_enc = jnp.tanh(h_md + c_md)                                     # (M*T, D)
    mem_keys = jnp.dot(mem_enc, wk_md_ref[...],
                       preferred_element_type=jnp.float32)              # (M*T, D)

    # ---- input encoder ----
    x_emb = embed(x_tok_ref[0], emb_e_ref[...])                         # (LX, D)
    x_enc = jnp.tanh(jnp.dot(x_emb, w_e_ref[...],
                             preferred_element_type=jnp.float32) + b_e_ref[...])
    x_summ = jnp.dot(x_pool_ref[0], x_enc,
                     preferred_element_type=jnp.float32)                # (1, D)

    # ---- decoder cell: attention over x_enc and over memory, vocab softmax ----
    y_emb = embed(y_tok_ref[0], emb_d_ref[...])                         # (T, D)
    h = jnp.tanh(jnp.dot(y_emb, wh_d_ref[...],
                         preferred_element_type=jnp.float32)
                 + x_summ + bh_d_ref[...])                              # (T, D)

    px = softmax(dot_nt(h, x_enc) + dec_x_bias_ref[0])                  # (T, LX)
    cx = jnp.dot(px, x_enc, preferred_element_type=jnp.float32)

    pm = softmax(dot_nt(h, mem_keys) + dec_mem_bias_ref[0])             # (T, M*T)
    cm = jnp.dot(pm, mem_enc, preferred_element_type=jnp.float32)

    o = jnp.tanh(h + cx + cm)
    logits = jnp.dot(o, wout_d_ref[...],
                     preferred_element_type=jnp.float32) + bout_d_ref[...]
    logits = logits - jnp.max(logits, axis=-1, keepdims=True)
    e = jnp.exp(logits)
    probs_ref[0] = e * pl.reciprocal(jnp.sum(e, axis=-1, keepdims=True), approx=True)


def run_fused(xmem_tok, ymem_tok, x_tok, y_tok,
              summ_pool, x_pool, memdec_bias, dec_x_bias, dec_mem_bias, params):
    b = x_tok.shape[0]
    t = y_tok.shape[1]
    pme, pmd, pe, pd = (params["mem_enc"], params["mem_dec"],
                        params["enc"], params["dec"])
    v = pd["wout"].shape[1]

    def batch_spec(shape):
        nrest = len(shape) - 1
        return pl.BlockSpec((1,) + tuple(shape[1:]),
                            lambda i, _n=nrest: (i,) + (0,) * _n)

    def const_spec(shape):
        n = len(shape)
        return pl.BlockSpec(tuple(shape), lambda i, _n=n: (0,) * _n)

    batch_arrays = [xmem_tok, ymem_tok, x_tok, y_tok,
                    summ_pool, x_pool, memdec_bias, dec_x_bias, dec_mem_bias]
    const_arrays = [pme["emb"], pme["w"], pme["b"],
                    pmd["emb"], pmd["wh"], pmd["wk"], pmd["bh"],
                    pe["emb"], pe["w"], pe["b"],
                    pd["emb"], pd["wh"], pd["wout"], pd["bh"], pd["bout"]]

    in_specs = ([batch_spec(a.shape) for a in batch_arrays]
                + [const_spec(a.shape) for a in const_arrays])

    return pl.pallas_call(
        fused_kernel,
        grid=(b,),
        in_specs=in_specs,
        out_specs=pl.BlockSpec((1, t, v), lambda i: (i, 0, 0)),
        out_shape=jax.ShapeDtypeStruct((b, t, v), jnp.float32),
        compiler_params=pltpu.CompilerParams(dimension_semantics=("parallel",)),
    )(*batch_arrays, *const_arrays)


# ----------------------------- params ----------------------------------------
def init_params(key):
    def nrm(k, shape, scale=0.02):
        return (scale * jax.random.normal(k, shape)).astype(jnp.float32)
    ks = jax.random.split(key, 12)
    return {
        "enc":     {"emb": nrm(ks[0], (V, D)), "w": nrm(ks[1], (D, D)),
                    "b": jnp.zeros((1, D), jnp.float32)},
        "mem_enc": {"emb": nrm(ks[2], (V, D)), "w": nrm(ks[3], (D, D)),
                    "b": jnp.zeros((1, D), jnp.float32)},
        "mem_dec": {"emb": nrm(ks[4], (V, D)), "wh": nrm(ks[5], (D, D)),
                    "wk": nrm(ks[6], (D, D)), "bh": jnp.zeros((1, D), jnp.float32)},
        "dec":     {"emb": nrm(ks[7], (V, D)), "wh": nrm(ks[8], (D, D)),
                    "wout": nrm(ks[9], (D, V)),
                    "bh": jnp.zeros((1, D), jnp.float32),
                    "bout": jnp.zeros((1, V), jnp.float32)},
    }


# ----------------------------- model glue -------------------------------------
def meta_seq_mem_nn_forward(params, x, y, xmem, ymem, memmask, istraining=False):
    f32 = jnp.float32
    bsz, msz, lxm = xmem.shape
    lym = ymem.shape[-1]
    t = lym - 1

    xmem_mask = xmem != 0                                   # (B, M, LX)
    ymem_mask = (ymem != 0)[:, :, 1:]                       # (B, M, T)
    x_mask = x != 0                                         # (B, LX)

    # memory-encoder masked-mean pooling matrix, expanded to memory-decoder rows:
    # row (m, t) of summ_pool picks the (masked, normalized) positions of entry m.
    mdenom = jnp.maximum(xmem_mask.sum(-1, keepdims=True).astype(f32), 1.0)  # (B,M,1)
    mpool = xmem_mask.astype(f32) / mdenom                                   # (B,M,LX)
    eye = jnp.eye(msz, dtype=f32)
    summ_pool = eye[None, :, :, None] * mpool[:, None, :, :]                 # (B,M,M,LX)
    summ_pool = jnp.broadcast_to(summ_pool[:, :, None, :, :],
                                 (bsz, msz, t, msz, lxm))
    summ_pool = summ_pool.reshape(bsz, msz * t, msz * lxm)                   # (B,M*T,M*LX)

    # block-diagonal additive attention bias for the memory decoder
    valid = (jnp.eye(msz, dtype=bool)[None, :, None, :, None]
             & xmem_mask[:, None, None, :, :])                               # (B,M,1,M,LX)
    valid = jnp.broadcast_to(valid, (bsz, msz, t, msz, lxm))
    memdec_bias = jnp.where(valid, 0.0, NEG).astype(f32).reshape(
        bsz, msz * t, msz * lxm)

    # input-encoder masked-mean pool + decoder attention bias over x
    xdenom = jnp.maximum(x_mask.sum(-1, keepdims=True).astype(f32), 1.0)     # (B,1)
    x_pool = (x_mask.astype(f32) / xdenom)[:, None, :]                       # (B,1,LX)
    dec_x_bias = jnp.where(x_mask, 0.0, NEG).astype(f32)[:, None, :]         # (B,1,LX)

    # decoder attention bias over memory entries
    memvalid = ymem_mask.astype(f32) * memmask[:, :, None].astype(f32)       # (B,M,T)
    dec_mem_bias = jnp.where(memvalid > 0.0, 0.0, NEG).astype(f32).reshape(
        bsz, 1, msz * t)

    # token inputs (teacher-forced decoder inputs = sequence without last token)
    xmem_tok = xmem.reshape(bsz, msz * lxm, 1).astype(jnp.int32)
    ymem_tok = ymem[:, :, :-1].reshape(bsz, msz * t, 1).astype(jnp.int32)
    x_tok = x[:, :, None].astype(jnp.int32)
    y_tok = y[:, :-1][:, :, None].astype(jnp.int32)

    probs = run_fused(xmem_tok, ymem_tok, x_tok, y_tok,
                      summ_pool, x_pool, memdec_bias, dec_x_bias, dec_mem_bias,
                      params)
    # TODO(synk): memids (token-level copy mechanism) is accepted by the
    #             reference interface but unused in this concrete decoder.
    predactions = jnp.argmax(probs, axis=-1).astype(jnp.int32)
    return probs, predactions


# ----------------------------- metrics ----------------------------------------
def seq_accuracies(probs, predactions, gold, padid=PADID, unkid=UNKID):
    mask = gold != padid
    same = (predactions == gold) & (predactions != unkid)
    elem_acc = jnp.sum(jnp.where(mask, same, False)) / jnp.maximum(jnp.sum(mask), 1)
    seq_ok = jnp.all(same | ~mask, axis=-1)
    return {"elem_acc": elem_acc.astype(jnp.float32),
            "seq_acc": jnp.mean(seq_ok.astype(jnp.float32))}


def tree_accuracy(probs, predactions, gold):
    # TODO(synk): TreeAccuracy requires tensor2tree string/tree parsing (host-side,
    #             non-tensor); no Pallas/JAX equivalent — omitted.
    return {}


def merge_metric_dicts(*dicts):
    out = {}
    for d in dicts:
        out.update(d)
    return out


def test_model_forward(params, x, y, xsup, ysup, supmask, istraining=False):
    probs, predactions = meta_seq_mem_nn_forward(params, x, y, xsup, ysup, supmask,
                                                 istraining)
    gold = y[:, 1:]
    outputs = merge_metric_dicts(seq_accuracies(probs, predactions, gold),
                                 tree_accuracy(probs, predactions, gold))
    return outputs, (probs, predactions)


# ----------------------------- main -------------------------------------------
if __name__ == "__main__":
    key = jax.random.PRNGKey(0)
    kp, kx, ky, kxm, kym = jax.random.split(key, 5)
    params = init_params(kp)

    x = jax.random.randint(kx, (B, LX), 2, V, dtype=jnp.int32)
    x = x.at[1, 6:].set(0)                       # some padding
    y = jax.random.randint(ky, (B, LY), 2, V, dtype=jnp.int32)
    y = y.at[:, 0].set(2)                        # start token
    y = y.at[1, 7:].set(0)                       # some padded gold positions
    xsup = jax.random.randint(kxm, (B, M, LX), 2, V, dtype=jnp.int32)
    xsup = xsup.at[:, :, 7:].set(0)
    ysup = jax.random.randint(kym, (B, M, LY), 2, V, dtype=jnp.int32)
    ysup = ysup.at[:, :, 0].set(2)
    ysup = ysup.at[:, :, 8:].set(0)
    supmask = jnp.ones((B, M), dtype=bool)

    fwd = jax.jit(functools.partial(test_model_forward, istraining=False))
    outputs, (probs, predactions) = fwd(params, x, y, xsup, ysup, supmask)
    jax.block_until_ready((outputs, probs, predactions))

    assert probs.shape == (B, T, V)
    assert predactions.shape == (B, T)
    print("KERNEL_OK")
</pallas_src>

<mosaic_0001>
module attributes {stable_mosaic.version = 11 : i64} {
  func.func @fused_kernel(%arg0: i32, %arg1: memref<1x32x1xi32, #tpu.memory_space<vmem>>, %arg2: memref<1x32x1xi32, #tpu.memory_space<vmem>>, %arg3: memref<1x8x1xi32, #tpu.memory_space<vmem>>, %arg4: memref<1x8x1xi32, #tpu.memory_space<vmem>>, %arg5: memref<1x32x32xf32, #tpu.memory_space<vmem>>, %arg6: memref<1x1x8xf32, #tpu.memory_space<vmem>>, %arg7: memref<1x32x32xf32, #tpu.memory_space<vmem>>, %arg8: memref<1x1x8xf32, #tpu.memory_space<vmem>>, %arg9: memref<1x1x32xf32, #tpu.memory_space<vmem>>, %arg10: memref<128x128xf32, #tpu.memory_space<vmem>>, %arg11: memref<128x128xf32, #tpu.memory_space<vmem>>, %arg12: memref<1x128xf32, #tpu.memory_space<vmem>>, %arg13: memref<128x128xf32, #tpu.memory_space<vmem>>, %arg14: memref<128x128xf32, #tpu.memory_space<vmem>>, %arg15: memref<128x128xf32, #tpu.memory_space<vmem>>, %arg16: memref<1x128xf32, #tpu.memory_space<vmem>>, %arg17: memref<128x128xf32, #tpu.memory_space<vmem>>, %arg18: memref<128x128xf32, #tpu.memory_space<vmem>>, %arg19: memref<1x128xf32, #tpu.memory_space<vmem>>, %arg20: memref<128x128xf32, #tpu.memory_space<vmem>>, %arg21: memref<128x128xf32, #tpu.memory_space<vmem>>, %arg22: memref<128x128xf32, #tpu.memory_space<vmem>>, %arg23: memref<1x128xf32, #tpu.memory_space<vmem>>, %arg24: memref<1x128xf32, #tpu.memory_space<vmem>>, %arg25: memref<1x8x128xf32, #tpu.memory_space<vmem>>) attributes {dimension_semantics = [#tpu.dimension_semantics<parallel>], iteration_bounds = array<i64: 2>, scalar_prefetch = 0 : i64, scratch_operands = 0 : i64, tpu.core_type = #tpu.core_type<tc>, window_params = [{transform_indices = @transform_0, window_bounds = array<i64: 1, 32, 1>}, {transform_indices = @transform_1, window_bounds = array<i64: 1, 32, 1>}, {transform_indices = @transform_2, window_bounds = array<i64: 1, 8, 1>}, {transform_indices = @transform_3, window_bounds = array<i64: 1, 8, 1>}, {transform_indices = @transform_4, window_bounds = array<i64: 1, 32, 32>}, {transform_indices = @transform_5, window_bounds = array<i64: 1, 1, 8>}, {transform_indices = @transform_6, window_bounds = array<i64: 1, 32, 32>}, {transform_indices = @transform_7, window_bounds = array<i64: 1, 1, 8>}, {transform_indices = @transform_8, window_bounds = array<i64: 1, 1, 32>}, {pipeline_mode = #tpu.pipeline_mode<synchronous>, transform_indices = @transform_9, window_bounds = array<i64: 128, 128>}, {pipeline_mode = #tpu.pipeline_mode<synchronous>, transform_indices = @transform_10, window_bounds = array<i64: 128, 128>}, {pipeline_mode = #tpu.pipeline_mode<synchronous>, transform_indices = @transform_11, window_bounds = array<i64: 1, 128>}, {pipeline_mode = #tpu.pipeline_mode<synchronous>, transform_indices = @transform_12, window_bounds = array<i64: 128, 128>}, {pipeline_mode = #tpu.pipeline_mode<synchronous>, transform_indices = @transform_13, window_bounds = array<i64: 128, 128>}, {pipeline_mode = #tpu.pipeline_mode<synchronous>, transform_indices = @transform_14, window_bounds = array<i64: 128, 128>}, {pipeline_mode = #tpu.pipeline_mode<synchronous>, transform_indices = @transform_15, window_bounds = array<i64: 1, 128>}, {pipeline_mode = #tpu.pipeline_mode<synchronous>, transform_indices = @transform_16, window_bounds = array<i64: 128, 128>}, {pipeline_mode = #tpu.pipeline_mode<synchronous>, transform_indices = @transform_17, window_bounds = array<i64: 128, 128>}, {pipeline_mode = #tpu.pipeline_mode<synchronous>, transform_indices = @transform_18, window_bounds = array<i64: 1, 128>}, {pipeline_mode = #tpu.pipeline_mode<synchronous>, transform_indices = @transform_19, window_bounds = array<i64: 128, 128>}, {pipeline_mode = #tpu.pipeline_mode<synchronous>, transform_indices = @transform_20, window_bounds = array<i64: 128, 128>}, {pipeline_mode = #tpu.pipeline_mode<synchronous>, transform_indices = @transform_21, window_bounds = array<i64: 128, 128>}, {pipeline_mode = #tpu.pipeline_mode<synchronous>, transform_indices = @transform_22, window_bounds = array<i64: 1, 128>}, {pipeline_mode = #tpu.pipeline_mode<synchronous>, transform_indices = @transform_23, window_bounds = array<i64: 1, 128>}, {transform_indices = @transform_24, window_bounds = array<i64: 1, 8, 128>}]} {
    %c0 = arith.constant 0 : index
    %c0_0 = arith.constant 0 : index
    %c0_1 = arith.constant 0 : index
    %0 = vector.load %arg1[%c0, %c0_0, %c0_1] : memref<1x32x1xi32, #tpu.memory_space<vmem>>, vector<1x32x1xi32>
    %1 = vector.shape_cast %0 : vector<1x32x1xi32> to vector<32x1xi32>
    %c0_2 = arith.constant 0 : index
    %c0_3 = arith.constant 0 : index
    %2 = vector.load %arg10[%c0_2, %c0_3] : memref<128x128xf32, #tpu.memory_space<vmem>>, vector<128x128xf32>
    %3 = tpu.iota {dimensions = array<i32: 1>} : vector<32x128xi32>
    %4 = vector.broadcast %1 : vector<32x1xi32> to vector<32x128xi32>
    %5 = arith.cmpi eq, %3, %4 : vector<32x128xi32>
    %6 = arith.extui %5 : vector<32x128xi1> to vector<32x128xi32>
    %7 = arith.sitofp %6 : vector<32x128xi32> to vector<32x128xf32>
    %cst = arith.constant dense<0.000000e+00> : vector<32x128xf32>
    %8 = tpu.matmul %7, %2, %cst {dimension_numbers = #tpu.dot_dimension_numbers<[1], [0], [0], [1], [0, 0, 1, 1], [], []>} : vector<32x128xf32>, vector<128x128xf32>, vector<32x128xf32> -> vector<32x128xf32>
    %c0_4 = arith.constant 0 : index
    %c0_5 = arith.constant 0 : index
    %9 = vector.load %arg11[%c0_4, %c0_5] : memref<128x128xf32, #tpu.memory_space<vmem>>, vector<128x128xf32>
    %cst_6 = arith.constant dense<0.000000e+00> : vector<32x128xf32>
    %10 = tpu.matmul %8, %9, %cst_6 {dimension_numbers = #tpu.dot_dimension_numbers<[1], [0], [0], [1], [0, 0, 1, 1], [], []>} : vector<32x128xf32>, vector<128x128xf32>, vector<32x128xf32> -> vector<32x128xf32>
    %c0_7 = arith.constant 0 : index
    %c0_8 = arith.constant 0 : index
    %11 = vector.load %arg12[%c0_7, %c0_8] : memref<1x128xf32, #tpu.memory_space<vmem>>, vector<1x128xf32>
    %12 = vector.broadcast %11 : vector<1x128xf32> to vector<32x128xf32>
    %13 = arith.addf %10, %12 : vector<32x128xf32>
    %14 = math.tanh %13 : vector<32x128xf32>
    %c0_9 = arith.constant 0 : index
    %c0_10 = arith.constant 0 : index
    %c0_11 = arith.constant 0 : index
    %15 = vector.load %arg5[%c0_9, %c0_10, %c0_11] : memref<1x32x32xf32, #tpu.memory_space<vmem>>, vector<1x32x32xf32>
    %16 = vector.shape_cast %15 : vector<1x32x32xf32> to vector<32x32xf32>
    %cst_12 = arith.constant dense<0.000000e+00> : vector<32x128xf32>
    %17 = tpu.matmul %16, %14, %cst_12 {dimension_numbers = #tpu.dot_dimension_numbers<[1], [0], [0], [1], [0, 0, 1, 1], [], []>} : vector<32x32xf32>, vector<32x128xf32>, vector<32x128xf32> -> vector<32x128xf32>
    %c0_13 = arith.constant 0 : index
    %c0_14 = arith.constant 0 : index
    %c0_15 = arith.constant 0 : index
    %18 = vector.load %arg2[%c0_13, %c0_14, %c0_15] : memref<1x32x1xi32, #tpu.memory_space<vmem>>, vector<1x32x1xi32>
    %19 = vector.shape_cast %18 : vector<1x32x1xi32> to vector<32x1xi32>
    %c0_16 = arith.constant 0 : index
    %c0_17 = arith.constant 0 : index
    %20 = vector.load %arg13[%c0_16, %c0_17] : memref<128x128xf32, #tpu.memory_space<vmem>>, vector<128x128xf32>
    %21 = tpu.iota {dimensions = array<i32: 1>} : vector<32x128xi32>
    %22 = vector.broadcast %19 : vector<32x1xi32> to vector<32x128xi32>
    %23 = arith.cmpi eq, %21, %22 : vector<32x128xi32>
    %24 = arith.extui %23 : vector<32x128xi1> to vector<32x128xi32>
    %25 = arith.sitofp %24 : vector<32x128xi32> to vector<32x128xf32>
    %cst_18 = arith.constant dense<0.000000e+00> : vector<32x128xf32>
    %26 = tpu.matmul %25, %20, %cst_18 {dimension_numbers = #tpu.dot_dimension_numbers<[1], [0], [0], [1], [0, 0, 1, 1], [], []>} : vector<32x128xf32>, vector<128x128xf32>, vector<32x128xf32> -> vector<32x128xf32>
    %c0_19 = arith.constant 0 : index
    %c0_20 = arith.constant 0 : index
    %27 = vector.load %arg14[%c0_19, %c0_20] : memref<128x128xf32, #tpu.memory_space<vmem>>, vector<128x128xf32>
    %cst_21 = arith.constant dense<0.000000e+00> : vector<32x128xf32>
    %28 = tpu.matmul %26, %27, %cst_21 {dimension_numbers = #tpu.dot_dimension_numbers<[1], [0], [0], [1], [0, 0, 1, 1], [], []>} : vector<32x128xf32>, vector<128x128xf32>, vector<32x128xf32> -> vector<32x128xf32>
    %29 = arith.addf %28, %17 : vector<32x128xf32>
    %c0_22 = arith.constant 0 : index
    %c0_23 = arith.constant 0 : index
    %30 = vector.load %arg16[%c0_22, %c0_23] : memref<1x128xf32, #tpu.memory_space<vmem>>, vector<1x128xf32>
    %31 = vector.broadcast %30 : vector<1x128xf32> to vector<32x128xf32>
    %32 = arith.addf %29, %31 : vector<32x128xf32>
    %33 = math.tanh %32 : vector<32x128xf32>
    %cst_24 = arith.constant dense<0.000000e+00> : vector<32x32xf32>
    %34 = tpu.matmul %33, %14, %cst_24 {dimension_numbers = #tpu.dot_dimension_numbers<[1], [1], [0], [0], [0, 0, 1, 0], [], []>} : vector<32x128xf32>, vector<32x128xf32>, vector<32x32xf32> -> vector<32x32xf32>
    %c0_25 = arith.constant 0 : index
    %c0_26 = arith.constant 0 : index
    %c0_27 = arith.constant 0 : index
    %35 = vector.load %arg7[%c0_25, %c0_26, %c0_27] : memref<1x32x32xf32, #tpu.memory_space<vmem>>, vector<1x32x32xf32>
    %36 = vector.shape_cast %35 : vector<1x32x32xf32> to vector<32x32xf32>
    %37 = arith.addf %34, %36 : vector<32x32xf32>
    %cst_28 = arith.constant dense<0xFF800000> : vector<32xf32>
    %38 = vector.multi_reduction <maximumf>, %37, %cst_28 [1] : vector<32x32xf32> to vector<32xf32>
    %39 = vector.shape_cast %38 : vector<32xf32> to vector<32x1xf32>
    %40 = vector.broadcast %39 : vector<32x1xf32> to vector<32x32xf32>
    %41 = arith.subf %37, %40 : vector<32x32xf32>
    %42 = math.exp %41 : vector<32x32xf32>
    %cst_29 = arith.constant dense<0.000000e+00> : vector<32xf32>
    %43 = vector.multi_reduction <add>, %42, %cst_29 [1] : vector<32x32xf32> to vector<32xf32>
    %44 = vector.shape_cast %43 : vector<32xf32> to vector<32x1xf32>
    %45 = tpu.reciprocal %44 {approx = true} : vector<32x1xf32> -> vector<32x1xf32>
    %46 = vector.broadcast %45 : vector<32x1xf32> to vector<32x32xf32>
    %47 = arith.mulf %42, %46 : vector<32x32xf32>
    %cst_30 = arith.constant dense<0.000000e+00> : vector<32x128xf32>
    %48 = tpu.matmul %47, %14, %cst_30 {dimension_numbers = #tpu.dot_dimension_numbers<[1], [0], [0], [1], [0, 0, 1, 1], [], []>} : vector<32x32xf32>, vector<32x128xf32>, vector<32x128xf32> -> vector<32x128xf32>
    %49 = arith.addf %33, %48 : vector<32x128xf32>
    %50 = math.tanh %49 : vector<32x128xf32>
    %c0_31 = arith.constant 0 : index
    %c0_32 = arith.constant 0 : index
    %51 = vector.load %arg15[%c0_31, %c0_32] : memref<128x128xf32, #tpu.memory_space<vmem>>, vector<128x128xf32>
    %cst_33 = arith.constant dense<0.000000e+00> : vector<32x128xf32>
    %52 = tpu.matmul %50, %51, %cst_33 {dimension_numbers = #tpu.dot_dimension_numbers<[1], [0], [0], [1], [0, 0, 1, 1], [], []>} : vector<32x128xf32>, vector<128x128xf32>, vector<32x128xf32> -> vector<32x128xf32>
    %c0_34 = arith.constant 0 : index
    %c0_35 = arith.constant 0 : index
    %c0_36 = arith.constant 0 : index
    %53 = vector.load %arg3[%c0_34, %c0_35, %c0_36] : memref<1x8x1xi32, #tpu.memory_space<vmem>>, vector<1x8x1xi32>
    %54 = vector.shape_cast %53 : vector<1x8x1xi32> to vector<8x1xi32>
    %c0_37 = arith.constant 0 : index
    %c0_38 = arith.constant 0 : index
    %55 = vector.load %arg17[%c0_37, %c0_38] : memref<128x128xf32, #tpu.memory_space<vmem>>, vector<128x128xf32>
    %56 = tpu.iota {dimensions = array<i32: 1>} : vector<8x128xi32>
    %57 = vector.broadcast %54 : vector<8x1xi32> to vector<8x128xi32>
    %58 = arith.cmpi eq, %56, %57 : vector<8x128xi32>
    %59 = arith.extui %58 : vector<8x128xi1> to vector<8x128xi32>
    %60 = arith.sitofp %59 : vector<8x128xi32> to vector<8x128xf32>
    %cst_39 = arith.constant dense<0.000000e+00> : vector<8x128xf32>
    %61 = tpu.matmul %60, %55, %cst_39 {dimension_numbers = #tpu.dot_dimension_numbers<[1], [0], [0], [1], [0, 0, 1, 1], [], []>} : vector<8x128xf32>, vector<128x128xf32>, vector<8x128xf32> -> vector<8x128xf32>
    %c0_40 = arith.constant 0 : index
    %c0_41 = arith.constant 0 : index
    %62 = vector.load %arg18[%c0_40, %c0_41] : memref<128x128xf32, #tpu.memory_space<vmem>>, vector<128x128xf32>
    %cst_42 = arith.constant dense<0.000000e+00> : vector<8x128xf32>
    %63 = tpu.matmul %61, %62, %cst_42 {dimension_numbers = #tpu.dot_dimension_numbers<[1], [0], [0], [1], [0, 0, 1, 1], [], []>} : vector<8x128xf32>, vector<128x128xf32>, vector<8x128xf32> -> vector<8x128xf32>
    %c0_43 = arith.constant 0 : index
    %c0_44 = arith.constant 0 : index
    %64 = vector.load %arg19[%c0_43, %c0_44] : memref<1x128xf32, #tpu.memory_space<vmem>>, vector<1x128xf32>
    %65 = vector.broadcast %64 : vector<1x128xf32> to vector<8x128xf32>
    %66 = arith.addf %63, %65 : vector<8x128xf32>
    %67 = math.tanh %66 : vector<8x128xf32>
    %c0_45 = arith.constant 0 : index
    %c0_46 = arith.constant 0 : index
    %c0_47 = arith.constant 0 : index
    %68 = vector.load %arg6[%c0_45, %c0_46, %c0_47] : memref<1x1x8xf32, #tpu.memory_space<vmem>>, vector<1x1x8xf32>
    %69 = vector.shape_cast %68 : vector<1x1x8xf32> to vector<1x8xf32>
    %cst_48 = arith.constant dense<0.000000e+00> : vector<1x128xf32>
    %70 = tpu.matmul %69, %67, %cst_48 {dimension_numbers = #tpu.dot_dimension_numbers<[1], [0], [0], [1], [0, 0, 1, 1], [], []>} : vector<1x8xf32>, vector<8x128xf32>, vector<1x128xf32> -> vector<1x128xf32>
    %c0_49 = arith.constant 0 : index
    %c0_50 = arith.constant 0 : index
    %c0_51 = arith.constant 0 : index
    %71 = vector.load %arg4[%c0_49, %c0_50, %c0_51] : memref<1x8x1xi32, #tpu.memory_space<vmem>>, vector<1x8x1xi32>
    %72 = vector.shape_cast %71 : vector<1x8x1xi32> to vector<8x1xi32>
    %c0_52 = arith.constant 0 : index
    %c0_53 = arith.constant 0 : index
    %73 = vector.load %arg20[%c0_52, %c0_53] : memref<128x128xf32, #tpu.memory_space<vmem>>, vector<128x128xf32>
    %74 = tpu.iota {dimensions = array<i32: 1>} : vector<8x128xi32>
    %75 = vector.broadcast %72 : vector<8x1xi32> to vector<8x128xi32>
    %76 = arith.cmpi eq, %74, %75 : vector<8x128xi32>
    %77 = arith.extui %76 : vector<8x128xi1> to vector<8x128xi32>
    %78 = arith.sitofp %77 : vector<8x128xi32> to vector<8x128xf32>
    %cst_54 = arith.constant dense<0.000000e+00> : vector<8x128xf32>
    %79 = tpu.matmul %78, %73, %cst_54 {dimension_numbers = #tpu.dot_dimension_numbers<[1], [0], [0], [1], [0, 0, 1, 1], [], []>} : vector<8x128xf32>, vector<128x128xf32>, vector<8x128xf32> -> vector<8x128xf32>
    %c0_55 = arith.constant 0 : index
    %c0_56 = arith.constant 0 : index
    %80 = vector.load %arg21[%c0_55, %c0_56] : memref<128x128xf32, #tpu.memory_space<vmem>>, vector<128x128xf32>
    %cst_57 = arith.constant dense<0.000000e+00> : vector<8x128xf32>
    %81 = tpu.matmul %79, %80, %cst_57 {dimension_numbers = #tpu.dot_dimension_numbers<[1], [0], [0], [1], [0, 0, 1, 1], [], []>} : vector<8x128xf32>, vector<128x128xf32>, vector<8x128xf32> -> vector<8x128xf32>
    %82 = vector.broadcast %70 : vector<1x128xf32> to vector<8x128xf32>
    %83 = arith.addf %81, %82 : vector<8x128xf32>
    %c0_58 = arith.constant 0 : index
    %c0_59 = arith.constant 0 : index
    %84 = vector.load %arg23[%c0_58, %c0_59] : memref<1x128xf32, #tpu.memory_space<vmem>>, vector<1x128xf32>
    %85 = vector.broadcast %84 : vector<1x128xf32> to vector<8x128xf32>
    %86 = arith.addf %83, %85 : vector<8x128xf32>
    %87 = math.tanh %86 : vector<8x128xf32>
    %cst_60 = arith.constant dense<0.000000e+00> : vector<8x8xf32>
    %88 = tpu.matmul %87, %67, %cst_60 {dimension_numbers = #tpu.dot_dimension_numbers<[1], [1], [0], [0], [0, 0, 1, 0], [], []>} : vector<8x128xf32>, vector<8x128xf32>, vector<8x8xf32> -> vector<8x8xf32>
    %c0_61 = arith.constant 0 : index
    %c0_62 = arith.constant 0 : index
    %c0_63 = arith.constant 0 : index
    %89 = vector.load %arg8[%c0_61, %c0_62, %c0_63] : memref<1x1x8xf32, #tpu.memory_space<vmem>>, vector<1x1x8xf32>
    %90 = vector.shape_cast %89 : vector<1x1x8xf32> to vector<1x8xf32>
    %91 = vector.broadcast %90 : vector<1x8xf32> to vector<8x8xf32>
    %92 = arith.addf %88, %91 : vector<8x8xf32>
    %cst_64 = arith.constant dense<0xFF800000> : vector<8xf32>
    %93 = vector.multi_reduction <maximumf>, %92, %cst_64 [1] : vector<8x8xf32> to vector<8xf32>
    %94 = vector.shape_cast %93 : vector<8xf32> to vector<8x1xf32>
    %95 = vector.broadcast %94 : vector<8x1xf32> to vector<8x8xf32>
    %96 = arith.subf %92, %95 : vector<8x8xf32>
    %97 = math.exp %96 : vector<8x8xf32>
    %cst_65 = arith.constant dense<0.000000e+00> : vector<8xf32>
    %98 = vector.multi_reduction <add>, %97, %cst_65 [1] : vector<8x8xf32> to vector<8xf32>
    %99 = vector.shape_cast %98 : vector<8xf32> to vector<8x1xf32>
    %100 = tpu.reciprocal %99 {approx = true} : vector<8x1xf32> -> vector<8x1xf32>
    %101 = vector.broadcast %100 : vector<8x1xf32> to vector<8x8xf32>
    %102 = arith.mulf %97, %101 : vector<8x8xf32>
    %cst_66 = arith.constant dense<0.000000e+00> : vector<8x128xf32>
    %103 = tpu.matmul %102, %67, %cst_66 {dimension_numbers = #tpu.dot_dimension_numbers<[1], [0], [0], [1], [0, 0, 1, 1], [], []>} : vector<8x8xf32>, vector<8x128xf32>, vector<8x128xf32> -> vector<8x128xf32>
    %cst_67 = arith.constant dense<0.000000e+00> : vector<8x32xf32>
    %104 = tpu.matmul %87, %52, %cst_67 {dimension_numbers = #tpu.dot_dimension_numbers<[1], [1], [0], [0], [0, 0, 1, 0], [], []>} : vector<8x128xf32>, vector<32x128xf32>, vector<8x32xf32> -> vector<8x32xf32>
    %c0_68 = arith.constant 0 : index
    %c0_69 = arith.constant 0 : index
    %c0_70 = arith.constant 0 : index
    %105 = vector.load %arg9[%c0_68, %c0_69, %c0_70] : memref<1x1x32xf32, #tpu.memory_space<vmem>>, vector<1x1x32xf32>
    %106 = vector.shape_cast %105 : vector<1x1x32xf32> to vector<1x32xf32>
    %107 = vector.broadcast %106 : vector<1x32xf32> to vector<8x32xf32>
    %108 = arith.addf %104, %107 : vector<8x32xf32>
    %cst_71 = arith.constant dense<0xFF800000> : vector<8xf32>
    %109 = vector.multi_reduction <maximumf>, %108, %cst_71 [1] : vector<8x32xf32> to vector<8xf32>
    %110 = vector.shape_cast %109 : vector<8xf32> to vector<8x1xf32>
    %111 = vector.broadcast %110 : vector<8x1xf32> to vector<8x32xf32>
    %112 = arith.subf %108, %111 : vector<8x32xf32>
    %113 = math.exp %112 : vector<8x32xf32>
    %cst_72 = arith.constant dense<0.000000e+00> : vector<8xf32>
    %114 = vector.multi_reduction <add>, %113, %cst_72 [1] : vector<8x32xf32> to vector<8xf32>
    %115 = vector.shape_cast %114 : vector<8xf32> to vector<8x1xf32>
    %116 = tpu.reciprocal %115 {approx = true} : vector<8x1xf32> -> vector<8x1xf32>
    %117 = vector.broadcast %116 : vector<8x1xf32> to vector<8x32xf32>
    %118 = arith.mulf %113, %117 : vector<8x32xf32>
    %cst_73 = arith.constant dense<0.000000e+00> : vector<8x128xf32>
    %119 = tpu.matmul %118, %50, %cst_73 {dimension_numbers = #tpu.dot_dimension_numbers<[1], [0], [0], [1], [0, 0, 1, 1], [], []>} : vector<8x32xf32>, vector<32x128xf32>, vector<8x128xf32> -> vector<8x128xf32>
    %120 = arith.addf %87, %103 : vector<8x128xf32>
    %121 = arith.addf %120, %119 : vector<8x128xf32>
    %122 = math.tanh %121 : vector<8x128xf32>
    %c0_74 = arith.constant 0 : index
    %c0_75 = arith.constant 0 : index
    %123 = vector.load %arg22[%c0_74, %c0_75] : memref<128x128xf32, #tpu.memory_space<vmem>>, vector<128x128xf32>
    %cst_76 = arith.constant dense<0.000000e+00> : vector<8x128xf32>
    %124 = tpu.matmul %122, %123, %cst_76 {dimension_numbers = #tpu.dot_dimension_numbers<[1], [0], [0], [1], [0, 0, 1, 1], [], []>} : vector<8x128xf32>, vector<128x128xf32>, vector<8x128xf32> -> vector<8x128xf32>
    %c0_77 = arith.constant 0 : index
    %c0_78 = arith.constant 0 : index
    %125 = vector.load %arg24[%c0_77, %c0_78] : memref<1x128xf32, #tpu.memory_space<vmem>>, vector<1x128xf32>
    %126 = vector.broadcast %125 : vector<1x128xf32> to vector<8x128xf32>
    %127 = arith.addf %124, %126 : vector<8x128xf32>
    %cst_79 = arith.constant dense<0xFF800000> : vector<8xf32>
    %128 = vector.multi_reduction <maximumf>, %127, %cst_79 [1] : vector<8x128xf32> to vector<8xf32>
    %129 = vector.shape_cast %128 : vector<8xf32> to vector<8x1xf32>
    %130 = vector.broadcast %129 : vector<8x1xf32> to vector<8x128xf32>
    %131 = arith.subf %127, %130 : vector<8x128xf32>
    %132 = math.exp %131 : vector<8x128xf32>
    %cst_80 = arith.constant dense<0.000000e+00> : vector<8xf32>
    %133 = vector.multi_reduction <add>, %132, %cst_80 [1] : vector<8x128xf32> to vector<8xf32>
    %134 = vector.shape_cast %133 : vector<8xf32> to vector<8x1xf32>
    %135 = tpu.reciprocal %134 {approx = true} : vector<8x1xf32> -> vector<8x1xf32>
    %136 = vector.broadcast %135 : vector<8x1xf32> to vector<8x128xf32>
    %137 = arith.mulf %132, %136 : vector<8x128xf32>
    %c0_81 = arith.constant 0 : index
    %c0_82 = arith.constant 0 : index
    %c0_83 = arith.constant 0 : index
    %138 = vector.load %arg25[%c0_81, %c0_82, %c0_83] : memref<1x8x128xf32, #tpu.memory_space<vmem>>, vector<1x8x128xf32>
    %139 = vector.shape_cast %138 : vector<1x8x128xf32> to vector<8x128xf32>
    %140 = vector.shape_cast %137 : vector<8x128xf32> to vector<1x8x128xf32>
    tpu.vector_store %arg25[%c0_81, %c0_82, %c0_83], %140 {strides = array<i32>} : memref<1x8x128xf32, #tpu.memory_space<vmem>>, vector<1x8x128xf32>,
    return
  }
  func.func @transform_0(%arg0: i32) -> (i32, i32, i32) {
    %c0_i32 = arith.constant 0 : i32
    %c0_i32_0 = arith.constant 0 : i32
    %c0_i32_1 = arith.constant 0 : i32
    return %arg0, %c0_i32, %c0_i32_0 : i32, i32, i32
  }
  func.func @transform_1(%arg0: i32) -> (i32, i32, i32) {
    %c0_i32 = arith.constant 0 : i32
    %c0_i32_0 = arith.constant 0 : i32
    %c0_i32_1 = arith.constant 0 : i32
    return %arg0, %c0_i32, %c0_i32_0 : i32, i32, i32
  }
  func.func @transform_2(%arg0: i32) -> (i32, i32, i32) {
    %c0_i32 = arith.constant 0 : i32
    %c0_i32_0 = arith.constant 0 : i32
    %c0_i32_1 = arith.constant 0 : i32
    return %arg0, %c0_i32, %c0_i32_0 : i32, i32, i32
  }
  func.func @transform_3(%arg0: i32) -> (i32, i32, i32) {
    %c0_i32 = arith.constant 0 : i32
    %c0_i32_0 = arith.constant 0 : i32
    %c0_i32_1 = arith.constant 0 : i32
    return %arg0, %c0_i32, %c0_i32_0 : i32, i32, i32
  }
  func.func @transform_4(%arg0: i32) -> (i32, i32, i32) {
    %c0_i32 = arith.constant 0 : i32
    %c0_i32_0 = arith.constant 0 : i32
    %c0_i32_1 = arith.constant 0 : i32
    return %arg0, %c0_i32, %c0_i32_0 : i32, i32, i32
  }
  func.func @transform_5(%arg0: i32) -> (i32, i32, i32) {
    %c0_i32 = arith.constant 0 : i32
    %c0_i32_0 = arith.constant 0 : i32
    %c0_i32_1 = arith.constant 0 : i32
    return %arg0, %c0_i32, %c0_i32_0 : i32, i32, i32
  }
  func.func @transform_6(%arg0: i32) -> (i32, i32, i32) {
    %c0_i32 = arith.constant 0 : i32
    %c0_i32_0 = arith.constant 0 : i32
    %c0_i32_1 = arith.constant 0 : i32
    return %arg0, %c0_i32, %c0_i32_0 : i32, i32, i32
  }
  func.func @transform_7(%arg0: i32) -> (i32, i32, i32) {
    %c0_i32 = arith.constant 0 : i32
    %c0_i32_0 = arith.constant 0 : i32
    %c0_i32_1 = arith.constant 0 : i32
    return %arg0, %c0_i32, %c0_i32_0 : i32, i32, i32
  }
  func.func @transform_8(%arg0: i32) -> (i32, i32, i32) {
    %c0_i32 = arith.constant 0 : i32
    %c0_i32_0 = arith.constant 0 : i32
    %c0_i32_1 = arith.constant 0 : i32
    return %arg0, %c0_i32, %c0_i32_0 : i32, i32, i32
  }
  func.func @transform_9(%arg0: i32) -> (i32, i32) {
    %c0_i32 = arith.constant 0 : i32
    %c0_i32_0 = arith.constant 0 : i32
    %c0_i32_1 = arith.constant 0 : i32
    return %c0_i32, %c0_i32_0 : i32, i32
  }
  func.func @transform_10(%arg0: i32) -> (i32, i32) {
    %c0_i32 = arith.constant 0 : i32
    %c0_i32_0 = arith.constant 0 : i32
    %c0_i32_1 = arith.constant 0 : i32
    return %c0_i32, %c0_i32_0 : i32, i32
  }
  func.func @transform_11(%arg0: i32) -> (i32, i32) {
    %c0_i32 = arith.constant 0 : i32
    %c0_i32_0 = arith.constant 0 : i32
    %c0_i32_1 = arith.constant 0 : i32
    return %c0_i32, %c0_i32_0 : i32, i32
  }
  func.func @transform_12(%arg0: i32) -> (i32, i32) {
    %c0_i32 = arith.constant 0 : i32
    %c0_i32_0 = arith.constant 0 : i32
    %c0_i32_1 = arith.constant 0 : i32
    return %c0_i32, %c0_i32_0 : i32, i32
  }
  func.func @transform_13(%arg0: i32) -> (i32, i32) {
    %c0_i32 = arith.constant 0 : i32
    %c0_i32_0 = arith.constant 0 : i32
    %c0_i32_1 = arith.constant 0 : i32
    return %c0_i32, %c0_i32_0 : i32, i32
  }
  func.func @transform_14(%arg0: i32) -> (i32, i32) {
    %c0_i32 = arith.constant 0 : i32
    %c0_i32_0 = arith.constant 0 : i32
    %c0_i32_1 = arith.constant 0 : i32
    return %c0_i32, %c0_i32_0 : i32, i32
  }
  func.func @transform_15(%arg0: i32) -> (i32, i32) {
    %c0_i32 = arith.constant 0 : i32
    %c0_i32_0 = arith.constant 0 : i32
    %c0_i32_1 = arith.constant 0 : i32
    return %c0_i32, %c0_i32_0 : i32, i32
  }
  func.func @transform_16(%arg0: i32) -> (i32, i32) {
    %c0_i32 = arith.constant 0 : i32
    %c0_i32_0 = arith.constant 0 : i32
    %c0_i32_1 = arith.constant 0 : i32
    return %c0_i32, %c0_i32_0 : i32, i32
  }
  func.func @transform_17(%arg0: i32) -> (i32, i32) {
    %c0_i32 = arith.constant 0 : i32
    %c0_i32_0 = arith.constant 0 : i32
    %c0_i32_1 = arith.constant 0 : i32
    return %c0_i32, %c0_i32_0 : i32, i32
  }
  func.func @transform_18(%arg0: i32) -> (i32, i32) {
    %c0_i32 = arith.constant 0 : i32
    %c0_i32_0 = arith.constant 0 : i32
    %c0_i32_1 = arith.constant 0 : i32
    return %c0_i32, %c0_i32_0 : i32, i32
  }
  func.func @transform_19(%arg0: i32) -> (i32, i32) {
    %c0_i32 = arith.constant 0 : i32
    %c0_i32_0 = arith.constant 0 : i32
    %c0_i32_1 = arith.constant 0 : i32
    return %c0_i32, %c0_i32_0 : i32, i32
  }
  func.func @transform_20(%arg0: i32) -> (i32, i32) {
    %c0_i32 = arith.constant 0 : i32
    %c0_i32_0 = arith.constant 0 : i32
    %c0_i32_1 = arith.constant 0 : i32
    return %c0_i32, %c0_i32_0 : i32, i32
  }
  func.func @transform_21(%arg0: i32) -> (i32, i32) {
    %c0_i32 = arith.constant 0 : i32
    %c0_i32_0 = arith.constant 0 : i32
    %c0_i32_1 = arith.constant 0 : i32
    return %c0_i32, %c0_i32_0 : i32, i32
  }
  func.func @transform_22(%arg0: i32) -> (i32, i32) {
    %c0_i32 = arith.constant 0 : i32
    %c0_i32_0 = arith.constant 0 : i32
    %c0_i32_1 = arith.constant 0 : i32
    return %c0_i32, %c0_i32_0 : i32, i32
  }
  func.func @transform_23(%arg0: i32) -> (i32, i32) {
    %c0_i32 = arith.constant 0 : i32
    %c0_i32_0 = arith.constant 0 : i32
    %c0_i32_1 = arith.constant 0 : i32
    return %c0_i32, %c0_i32_0 : i32, i32
  }
  func.func @transform_24(%arg0: i32) -> (i32, i32, i32) {
    %c0_i32 = arith.constant 0 : i32
    %c0_i32_0 = arith.constant 0 : i32
    %c0_i32_1 = arith.constant 0 : i32
    return %arg0, %c0_i32, %c0_i32_0 : i32, i32, i32
  }
}

</mosaic_0001>

<llo_original>
// kernel: test_model_forward.1
$region0: #{test_model_forward.1}
  #allocation0 [shape = 'u32[]', space=smem, size = 0x4, offset = 0x4, fixed_abs, tag = 'smem constant byte address 0x4 - core index']
  #allocation1 [shape = 'u32[144,128]{1,0:T(1,128)}', space=vmem, size = 0x12000, scoped, tag = 'internal scratch']
  %s0 = inlined_call_operand.vmem [shape: s32[2,32,1], index: 0, kind: input, shape index: {}]
  %s1 = inlined_call_operand.vmem [shape: s32[2,32,1], index: 1, kind: input, shape index: {}]
  %s2 = inlined_call_operand.vmem [shape: s32[2,8,1], index: 2, kind: input, shape index: {}]
  %s3 = inlined_call_operand.vmem [shape: s32[2,8,1], index: 3, kind: input, shape index: {}]
  %s4 = inlined_call_operand.vmem [shape: f32[2,32,32], index: 4, kind: input, shape index: {}]
  %s5 = inlined_call_operand.vmem [shape: f32[2,1,8], index: 5, kind: input, shape index: {}]
  %s6 = inlined_call_operand.vmem [shape: f32[2,32,32], index: 6, kind: input, shape index: {}]
  %s7 = inlined_call_operand.vmem [shape: f32[2,1,8], index: 7, kind: input, shape index: {}]
  %s8 = inlined_call_operand.vmem [shape: f32[2,1,32], index: 8, kind: input, shape index: {}]
  %s9 = inlined_call_operand.vmem [shape: f32[128,128], index: 9, kind: input, shape index: {}]
  %s10 = inlined_call_operand.vmem [shape: f32[128,128], index: 10, kind: input, shape index: {}]
  %s11 = inlined_call_operand.vmem [shape: f32[1,128], index: 11, kind: input, shape index: {}]
  %s12 = inlined_call_operand.vmem [shape: f32[128,128], index: 12, kind: input, shape index: {}]
  %s13 = inlined_call_operand.vmem [shape: f32[128,128], index: 13, kind: input, shape index: {}]
  %s14 = inlined_call_operand.vmem [shape: f32[128,128], index: 14, kind: input, shape index: {}]
  %s15 = inlined_call_operand.vmem [shape: f32[1,128], index: 15, kind: input, shape index: {}]
  %s16 = inlined_call_operand.vmem [shape: f32[128,128], index: 16, kind: input, shape index: {}]
  %s17 = inlined_call_operand.vmem [shape: f32[128,128], index: 17, kind: input, shape index: {}]
  %s18 = inlined_call_operand.vmem [shape: f32[1,128], index: 18, kind: input, shape index: {}]
  %s19 = inlined_call_operand.vmem [shape: f32[128,128], index: 19, kind: input, shape index: {}]
  %s20 = inlined_call_operand.vmem [shape: f32[128,128], index: 20, kind: input, shape index: {}]
  %s21 = inlined_call_operand.vmem [shape: f32[128,128], index: 21, kind: input, shape index: {}]
  %s22 = inlined_call_operand.vmem [shape: f32[1,128], index: 22, kind: input, shape index: {}]
  %s23 = inlined_call_operand.vmem [shape: f32[1,128], index: 23, kind: input, shape index: {}]
  %s24 = inlined_call_operand.vmem [shape: f32[2,8,128], index: 24, kind: output, shape index: {}]
  %s25 = sld [smem:[#allocation0]]
  $region129: #{test_model_forward.1} parent=0
    _
  %s27 = ssub.s32 1, %s25
  %s28 = scalar_select 0, %s27, %s25
  loop: start=0, step=1, limit=4
  $region2: #{test_model_forward.1} parent=0 // loop_pre_header
    _
  $region3: #{test_model_forward.1} parent=0 // loop_header
    %s30 = sphi 0, %s34
    %p31 = scmp.ge.s32.totalorder %s30, 4
    %s40 = sphi 0, %s42
    %s43 = sphi 0, %s40
    %s44 = sphi 0, %s43
    %s60 = sphi 0, %s44
    %s66 = sphi 0, %s68
    %s69 = sphi 0, %s66
    %s70 = sphi 0, %s69
    %s86 = sphi 0, %s70
    %s92 = sphi 0, %s94
    %s95 = sphi 0, %s92
    %s96 = sphi 0, %s95
    %s112 = sphi 0, %s96
    %s118 = sphi 0, %s120
    %s121 = sphi 0, %s118
    %s122 = sphi 0, %s121
    %s138 = sphi 0, %s122
    %s144 = sphi 0, %s146
    %s147 = sphi 0, %s144
    %s148 = sphi 0, %s147
    %s164 = sphi 0, %s148
    %s170 = sphi 0, %s172
    %s173 = sphi 0, %s170
    %s174 = sphi 0, %s173
    %s190 = sphi 0, %s174
    %s196 = sphi 0, %s198
    %s199 = sphi 0, %s196
    %s200 = sphi 0, %s199
    %s216 = sphi 0, %s200
    %s222 = sphi 0, %s224
    %s225 = sphi 0, %s222
    %s226 = sphi 0, %s225
    %s242 = sphi 0, %s226
    %s248 = sphi 0, %s250
    %s251 = sphi 0, %s248
    %s252 = sphi 0, %s251
    %s268 = sphi 0, %s252
    %s272 = sphi 0, %s272
    %s274 = sphi 0, %s272
    %s275 = sphi 0, %s274
    %s289 = sphi 0, %s275
    %s293 = sphi 0, %s293
    %s295 = sphi 0, %s293
    %s296 = sphi 0, %s295
    %s310 = sphi 0, %s296
    %s314 = sphi 0, %s314
    %s316 = sphi 0, %s314
    %s317 = sphi 0, %s316
    %s331 = sphi 0, %s317
    %s335 = sphi 0, %s335
    %s337 = sphi 0, %s335
    %s338 = sphi 0, %s337
    %s352 = sphi 0, %s338
    %s356 = sphi 0, %s356
    %s358 = sphi 0, %s356
    %s359 = sphi 0, %s358
    %s373 = sphi 0, %s359
    %s377 = sphi 0, %s377
    %s379 = sphi 0, %s377
    %s380 = sphi 0, %s379
    %s394 = sphi 0, %s380
    %s398 = sphi 0, %s398
    %s400 = sphi 0, %s398
    %s401 = sphi 0, %s400
    %s415 = sphi 0, %s401
    %s419 = sphi 0, %s419
    %s421 = sphi 0, %s419
    %s422 = sphi 0, %s421
    %s436 = sphi 0, %s422
    %s440 = sphi 0, %s440
    %s442 = sphi 0, %s440
    %s443 = sphi 0, %s442
    %s457 = sphi 0, %s443
    %s461 = sphi 0, %s461
    %s463 = sphi 0, %s461
    %s464 = sphi 0, %s463
    %s478 = sphi 0, %s464
    %s482 = sphi 0, %s482
    %s484 = sphi 0, %s482
    %s485 = sphi 0, %s484
    %s499 = sphi 0, %s485
    %s503 = sphi 0, %s503
    %s505 = sphi 0, %s503
    %s506 = sphi 0, %s505
    %s520 = sphi 0, %s506
    %s524 = sphi 0, %s524
    %s526 = sphi 0, %s524
    %s527 = sphi 0, %s526
    %s541 = sphi 0, %s527
    %s545 = sphi 0, %s545
    %s547 = sphi 0, %s545
    %s548 = sphi 0, %s547
    %s562 = sphi 0, %s548
    %s566 = sphi 0, %s566
    %s568 = sphi 0, %s566
    %s569 = sphi 0, %s568
    %s583 = sphi 0, %s569
    %s589 = sphi 0, %s591
    %s592 = sphi 0, %s589
    %s593 = sphi 0, %s592
    %s609 = sphi 0, %s593
  $region4: #{test_model_forward.1} parent=0 // loop_header_branch
    %33 = sbr.rel (%p31) target = $region8
  $region5: #{test_model_forward.1} parent=0 // loop_body
    %s35 = ssub.s32 %s30, 1
    %s36 = ssub.s32 %s30, 2
    %s37 = sadd.s32 %s30, 1
    %s38 = ssub.s32 %s30, %s37
    %p39 = scmp.eq.s32.totalorder %s38, 0
    %s41 = sadd.s32 %s40, 1
    %s42 = scalar_select %p39, %s40, %s41
    %p45 = pneg %p39
    %p46 = scmp.eq.s32.totalorder %s30, 1
    %p47 = por %p45, %p46
    %p48 = scmp.ne.s32.totalorder %s40, %s43
    %p49 = scmp.eq.s32.totalorder %s30, 0
    %p50 = por %p48, %p49
    %p51 = scmp.ne.s32.totalorder %s40, %s43
    %p52 = scmp.eq.s32.totalorder %s35, 1
    %p53 = por %p51, %p52
    %p54 = scmp.ne.s32.totalorder %s43, %s44
    %p55 = scmp.eq.s32.totalorder %s35, 0
    %p56 = por %p54, %p55
    %p57 = scmp.ne.s32.totalorder %s43, %s44
    %p58 = scmp.eq.s32.totalorder %s36, 1
    %p59 = por %p57, %p58
    %p61 = scmp.ne.s32.totalorder %s44, %s60
    %p62 = scmp.eq.s32.totalorder %s36, 0
    %p63 = por %p61, %p62
    %s64 = ssub.s32 %s30, %s37
    %p65 = scmp.eq.s32.totalorder %s64, 0
    %s67 = sadd.s32 %s66, 1
    %s68 = scalar_select %p65, %s66, %s67
    %p71 = pneg %p65
    %p72 = scmp.eq.s32.totalorder %s30, 1
    %p73 = por %p71, %p72
    %p74 = scmp.ne.s32.totalorder %s66, %s69
    %p75 = scmp.eq.s32.totalorder %s30, 0
    %p76 = por %p74, %p75
    %p77 = scmp.ne.s32.totalorder %s66, %s69
    %p78 = scmp.eq.s32.totalorder %s35, 1
    %p79 = por %p77, %p78
    %p80 = scmp.ne.s32.totalorder %s69, %s70
    %p81 = scmp.eq.s32.totalorder %s35, 0
    %p82 = por %p80, %p81
    %p83 = scmp.ne.s32.totalorder %s69, %s70
    %p84 = scmp.eq.s32.totalorder %s36, 1
    %p85 = por %p83, %p84
    %p87 = scmp.ne.s32.totalorder %s70, %s86
    %p88 = scmp.eq.s32.totalorder %s36, 0
    %p89 = por %p87, %p88
    %s90 = ssub.s32 %s30, %s37
    %p91 = scmp.eq.s32.totalorder %s90, 0
    %s93 = sadd.s32 %s92, 1
    %s94 = scalar_select %p91, %s92, %s93
    %p97 = pneg %p91
    %p98 = scmp.eq.s32.totalorder %s30, 1
    %p99 = por %p97, %p98
    %p100 = scmp.ne.s32.totalorder %s92, %s95
    %p101 = scmp.eq.s32.totalorder %s30, 0
    %p102 = por %p100, %p101
    %p103 = scmp.ne.s32.totalorder %s92, %s95
    %p104 = scmp.eq.s32.totalorder %s35, 1
    %p105 = por %p103, %p104
    %p106 = scmp.ne.s32.totalorder %s95, %s96
    %p107 = scmp.eq.s32.totalorder %s35, 0
    %p108 = por %p106, %p107
    %p109 = scmp.ne.s32.totalorder %s95, %s96
    %p110 = scmp.eq.s32.totalorder %s36, 1
    %p111 = por %p109, %p110
    %p113 = scmp.ne.s32.totalorder %s96, %s112
    %p114 = scmp.eq.s32.totalorder %s36, 0
    %p115 = por %p113, %p114
    %s116 = ssub.s32 %s30, %s37
    %p117 = scmp.eq.s32.totalorder %s116, 0
    %s119 = sadd.s32 %s118, 1
    %s120 = scalar_select %p117, %s118, %s119
    %p123 = pneg %p117
    %p124 = scmp.eq.s32.totalorder %s30, 1
    %p125 = por %p123, %p124
    %p126 = scmp.ne.s32.totalorder %s118, %s121
    %p127 = scmp.eq.s32.totalorder %s30, 0
    %p128 = por %p126, %p127
    %p129 = scmp.ne.s32.totalorder %s118, %s121
    %p130 = scmp.eq.s32.totalorder %s35, 1
    %p131 = por %p129, %p130
    %p132 = scmp.ne.s32.totalorder %s121, %s122
    %p133 = scmp.eq.s32.totalorder %s35, 0
    %p134 = por %p132, %p133
    %p135 = scmp.ne.s32.totalorder %s121, %s122
    %p136 = scmp.eq.s32.totalorder %s36, 1
    %p137 = por %p135, %p136
    %p139 = scmp.ne.s32.totalorder %s122, %s138
    %p140 = scmp.eq.s32.totalorder %s36, 0
    %p141 = por %p139, %p140
    %s142 = ssub.s32 %s30, %s37
    %p143 = scmp.eq.s32.totalorder %s142, 0
    %s145 = sadd.s32 %s144, 1
    %s146 = scalar_select %p143, %s144, %s145
    %p149 = pneg %p143
    %p150 = scmp.eq.s32.totalorder %s30, 1
    %p151 = por %p149, %p150
    %p152 = scmp.ne.s32.totalorder %s144, %s147
    %p153 = scmp.eq.s32.totalorder %s30, 0
    %p154 = por %p152, %p153
    %p155 = scmp.ne.s32.totalorder %s144, %s147
    %p156 = scmp.eq.s32.totalorder %s35, 1
    %p157 = por %p155, %p156
    %p158 = scmp.ne.s32.totalorder %s147, %s148
    %p159 = scmp.eq.s32.totalorder %s35, 0
    %p160 = por %p158, %p159
    %p161 = scmp.ne.s32.totalorder %s147, %s148
    %p162 = scmp.eq.s32.totalorder %s36, 1
    %p163 = por %p161, %p162
    %p165 = scmp.ne.s32.totalorder %s148, %s164
    %p166 = scmp.eq.s32.totalorder %s36, 0
    %p167 = por %p165, %p166
    %s168 = ssub.s32 %s30, %s37
    %p169 = scmp.eq.s32.totalorder %s168, 0
    %s171 = sadd.s32 %s170, 1
    %s172 = scalar_select %p169, %s170, %s171
    %p175 = pneg %p169
    %p176 = scmp.eq.s32.totalorder %s30, 1
    %p177 = por %p175, %p176
    %p178 = scmp.ne.s32.totalorder %s170, %s173
    %p179 = scmp.eq.s32.totalorder %s30, 0
    %p180 = por %p178, %p179
    %p181 = scmp.ne.s32.totalorder %s170, %s173
    %p182 = scmp.eq.s32.totalorder %s35, 1
    %p183 = por %p181, %p182
    %p184 = scmp.ne.s32.totalorder %s173, %s174
    %p185 = scmp.eq.s32.totalorder %s35, 0
    %p186 = por %p184, %p185
    %p187 = scmp.ne.s32.totalorder %s173, %s174
    %p188 = scmp.eq.s32.totalorder %s36, 1
    %p189 = por %p187, %p188
    %p191 = scmp.ne.s32.totalorder %s174, %s190
    %p192 = scmp.eq.s32.totalorder %s36, 0
    %p193 = por %p191, %p192
    %s194 = ssub.s32 %s30, %s37
    %p195 = scmp.eq.s32.totalorder %s194, 0
    %s197 = sadd.s32 %s196, 1
    %s198 = scalar_select %p195, %s196, %s197
    %p201 = pneg %p195
    %p202 = scmp.eq.s32.totalorder %s30, 1
    %p203 = por %p201, %p202
    %p204 = scmp.ne.s32.totalorder %s196, %s199
    %p205 = scmp.eq.s32.totalorder %s30, 0
    %p206 = por %p204, %p205
    %p207 = scmp.ne.s32.totalorder %s196, %s199
    %p208 = scmp.eq.s32.totalorder %s35, 1
    %p209 = por %p207, %p208
    %p210 = scmp.ne.s32.totalorder %s199, %s200
    %p211 = scmp.eq.s32.totalorder %s35, 0
    %p212 = por %p210, %p211
    %p213 = scmp.ne.s32.totalorder %s199, %s200
    %p214 = scmp.eq.s32.totalorder %s36, 1
    %p215 = por %p213, %p214
    %p217 = scmp.ne.s32.totalorder %s200, %s216
    %p218 = scmp.eq.s32.totalorder %s36, 0
    %p219 = por %p217, %p218
    %s220 = ssub.s32 %s30, %s37
    %p221 = scmp.eq.s32.totalorder %s220, 0
    %s223 = sadd.s32 %s222, 1
    %s224 = scalar_select %p221, %s222, %s223
    %p227 = pneg %p221
    %p228 = scmp.eq.s32.totalorder %s30, 1
    %p229 = por %p227, %p228
    %p230 = scmp.ne.s32.totalorder %s222, %s225
    %p231 = scmp.eq.s32.totalorder %s30, 0
    %p232 = por %p230, %p231
    %p233 = scmp.ne.s32.totalorder %s222, %s225
    %p234 = scmp.eq.s32.totalorder %s35, 1
    %p235 = por %p233, %p234
    %p236 = scmp.ne.s32.totalorder %s225, %s226
    %p237 = scmp.eq.s32.totalorder %s35, 0
    %p238 = por %p236, %p237
    %p239 = scmp.ne.s32.totalorder %s225, %s226
    %p240 = scmp.eq.s32.totalorder %s36, 1
    %p241 = por %p239, %p240
    %p243 = scmp.ne.s32.totalorder %s226, %s242
    %p244 = scmp.eq.s32.totalorder %s36, 0
    %p245 = por %p243, %p244
    %s246 = ssub.s32 %s30, %s37
    %p247 = scmp.eq.s32.totalorder %s246, 0
    %s249 = sadd.s32 %s248, 1
    %s250 = scalar_select %p247, %s248, %s249
    %p253 = pneg %p247
    %p254 = scmp.eq.s32.totalorder %s30, 1
    %p255 = por %p253, %p254
    %p256 = scmp.ne.s32.totalorder %s248, %s251
    %p257 = scmp.eq.s32.totalorder %s30, 0
    %p258 = por %p256, %p257
    %p259 = scmp.ne.s32.totalorder %s248, %s251
    %p260 = scmp.eq.s32.totalorder %s35, 1
    %p261 = por %p259, %p260
    %p262 = scmp.ne.s32.totalorder %s251, %s252
    %p263 = scmp.eq.s32.totalorder %s35, 0
    %p264 = por %p262, %p263
    %p265 = scmp.ne.s32.totalorder %s251, %s252
    %p266 = scmp.eq.s32.totalorder %s36, 1
    %p267 = por %p265, %p266
    %p269 = scmp.ne.s32.totalorder %s252, %s268
    %p270 = scmp.eq.s32.totalorder %s36, 0
    %p271 = por %p269, %p270
    %s273 = sadd.s32 %s272, 1
    %p276 = scmp.eq.s32.totalorder %s30, 1
    %p277 = scmp.ne.s32.totalorder %s272, %s274
    %p278 = scmp.eq.s32.totalorder %s30, 0
    %p279 = por %p277, %p278
    %p280 = scmp.ne.s32.totalorder %s272, %s274
    %p281 = scmp.eq.s32.totalorder %s35, 1
    %p282 = por %p280, %p281
    %p283 = scmp.ne.s32.totalorder %s274, %s275
    %p284 = scmp.eq.s32.totalorder %s35, 0
    %p285 = por %p283, %p284
    %p286 = scmp.ne.s32.totalorder %s274, %s275
    %p287 = scmp.eq.s32.totalorder %s36, 1
    %p288 = por %p286, %p287
    %p290 = scmp.ne.s32.totalorder %s275, %s289
    %p291 = scmp.eq.s32.totalorder %s36, 0
    %p292 = por %p290, %p291
    %s294 = sadd.s32 %s293, 1
    %p297 = scmp.eq.s32.totalorder %s30, 1
    %p298 = scmp.ne.s32.totalorder %s293, %s295
    %p299 = scmp.eq.s32.totalorder %s30, 0
    %p300 = por %p298, %p299
    %p301 = scmp.ne.s32.totalorder %s293, %s295
    %p302 = scmp.eq.s32.totalorder %s35, 1
    %p303 = por %p301, %p302
    %p304 = scmp.ne.s32.totalorder %s295, %s296
    %p305 = scmp.eq.s32.totalorder %s35, 0
    %p306 = por %p304, %p305
    %p307 = scmp.ne.s32.totalorder %s295, %s296
    %p308 = scmp.eq.s32.totalorder %s36, 1
    %p309 = por %p307, %p308
    %p311 = scmp.ne.s32.totalorder %s296, %s310
    %p312 = scmp.eq.s32.totalorder %s36, 0
    %p313 = por %p311, %p312
    %s315 = sadd.s32 %s314, 1
    %p318 = scmp.eq.s32.totalorder %s30, 1
    %p319 = scmp.ne.s32.totalorder %s314, %s316
    %p320 = scmp.eq.s32.totalorder %s30, 0
    %p321 = por %p319, %p320
    %p322 = scmp.ne.s32.totalorder %s314, %s316
    %p323 = scmp.eq.s32.totalorder %s35, 1
    %p324 = por %p322, %p323
    %p325 = scmp.ne.s32.totalorder %s316, %s317
    %p326 = scmp.eq.s32.totalorder %s35, 0
    %p327 = por %p325, %p326
    %p328 = scmp.ne.s32.totalorder %s316, %s317
    %p329 = scmp.eq.s32.totalorder %s36, 1
    %p330 = por %p328, %p329
    %p332 = scmp.ne.s32.totalorder %s317, %s331
    %p333 = scmp.eq.s32.totalorder %s36, 0
    %p334 = por %p332, %p333
    %s336 = sadd.s32 %s335, 1
    %p339 = scmp.eq.s32.totalorder %s30, 1
    %p340 = scmp.ne.s32.totalorder %s335, %s337
    %p341 = scmp.eq.s32.totalorder %s30, 0
    %p342 = por %p340, %p341
    %p343 = scmp.ne.s32.totalorder %s335, %s337
    %p344 = scmp.eq.s32.totalorder %s35, 1
    %p345 = por %p343, %p344
    %p346 = scmp.ne.s32.totalorder %s337, %s338
    %p347 = scmp.eq.s32.totalorder %s35, 0
    %p348 = por %p346, %p347
    %p349 = scmp.ne.s32.totalorder %s337, %s338
    %p350 = scmp.eq.s32.totalorder %s36, 1
    %p351 = por %p349, %p350
    %p353 = scmp.ne.s32.totalorder %s338, %s352
    %p354 = scmp.eq.s32.totalorder %s36, 0
    %p355 = por %p353, %p354
    %s357 = sadd.s32 %s356, 1
    %p360 = scmp.eq.s32.totalorder %s30, 1
    %p361 = scmp.ne.s32.totalorder %s356, %s358
    %p362 = scmp.eq.s32.totalorder %s30, 0
    %p363 = por %p361, %p362
    %p364 = scmp.ne.s32.totalorder %s356, %s358
    %p365 = scmp.eq.s32.totalorder %s35, 1
    %p366 = por %p364, %p365
    %p367 = scmp.ne.s32.totalorder %s358, %s359
    %p368 = scmp.eq.s32.totalorder %s35, 0
    %p369 = por %p367, %p368
    %p370 = scmp.ne.s32.totalorder %s358, %s359
    %p371 = scmp.eq.s32.totalorder %s36, 1
    %p372 = por %p370, %p371
    %p374 = scmp.ne.s32.totalorder %s359, %s373
    %p375 = scmp.eq.s32.totalorder %s36, 0
    %p376 = por %p374, %p375
    %s378 = sadd.s32 %s377, 1
    %p381 = scmp.eq.s32.totalorder %s30, 1
    %p382 = scmp.ne.s32.totalorder %s377, %s379
    %p383 = scmp.eq.s32.totalorder %s30, 0
    %p384 = por %p382, %p383
    %p385 = scmp.ne.s32.totalorder %s377, %s379
    %p386 = scmp.eq.s32.totalorder %s35, 1
    %p387 = por %p385, %p386
    %p388 = scmp.ne.s32.totalorder %s379, %s380
    %p389 = scmp.eq.s32.totalorder %s35, 0
    %p390 = por %p388, %p389
    %p391 = scmp.ne.s32.totalorder %s379, %s380
    %p392 = scmp.eq.s32.totalorder %s36, 1
    %p393 = por %p391, %p392
    %p395 = scmp.ne.s32.totalorder %s380, %s394
    %p396 = scmp.eq.s32.totalorder %s36, 0
    %p397 = por %p395, %p396
    %s399 = sadd.s32 %s398, 1
    %p402 = scmp.eq.s32.totalorder %s30, 1
    %p403 = scmp.ne.s32.totalorder %s398, %s400
    %p404 = scmp.eq.s32.totalorder %s30, 0
    %p405 = por %p403, %p404
    %p406 = scmp.ne.s32.totalorder %s398, %s400
    %p407 = scmp.eq.s32.totalorder %s35, 1
    %p408 = por %p406, %p407
    %p409 = scmp.ne.s32.totalorder %s400, %s401
    %p410 = scmp.eq.s32.totalorder %s35, 0
    %p411 = por %p409, %p410
    %p412 = scmp.ne.s32.totalorder %s400, %s401
    %p413 = scmp.eq.s32.totalorder %s36, 1
    %p414 = por %p412, %p413
    %p416 = scmp.ne.s32.totalorder %s401, %s415
    %p417 = scmp.eq.s32.totalorder %s36, 0
    %p418 = por %p416, %p417
    %s420 = sadd.s32 %s419, 1
    %p423 = scmp.eq.s32.totalorder %s30, 1
    %p424 = scmp.ne.s32.totalorder %s419, %s421
    %p425 = scmp.eq.s32.totalorder %s30, 0
    %p426 = por %p424, %p425
    %p427 = scmp.ne.s32.totalorder %s419, %s421
    %p428 = scmp.eq.s32.totalorder %s35, 1
    %p429 = por %p427, %p428
    %p430 = scmp.ne.s32.totalorder %s421, %s422
    %p431 = scmp.eq.s32.totalorder %s35, 0
    %p432 = por %p430, %p431
    %p433 = scmp.ne.s32.totalorder %s421, %s422
    %p434 = scmp.eq.s32.totalorder %s36, 1
    %p435 = por %p433, %p434
    %p437 = scmp.ne.s32.totalorder %s422, %s436
    %p438 = scmp.eq.s32.totalorder %s36, 0
    %p439 = por %p437, %p438
    %s441 = sadd.s32 %s440, 1
    %p444 = scmp.eq.s32.totalorder %s30, 1
    %p445 = scmp.ne.s32.totalorder %s440, %s442
    %p446 = scmp.eq.s32.totalorder %s30, 0
    %p447 = por %p445, %p446
    %p448 = scmp.ne.s32.totalorder %s440, %s442
    %p449 = scmp.eq.s32.totalorder %s35, 1
    %p450 = por %p448, %p449
    %p451 = scmp.ne.s32.totalorder %s442, %s443
    %p452 = scmp.eq.s32.totalorder %s35, 0
    %p453 = por %p451, %p452
    %p454 = scmp.ne.s32.totalorder %s442, %s443
    %p455 = scmp.eq.s32.totalorder %s36, 1
    %p456 = por %p454, %p455
    %p458 = scmp.ne.s32.totalorder %s443, %s457
    %p459 = scmp.eq.s32.totalorder %s36, 0
    %p460 = por %p458, %p459
    %s462 = sadd.s32 %s461, 1
    %p465 = scmp.eq.s32.totalorder %s30, 1
    %p466 = scmp.ne.s32.totalorder %s461, %s463
    %p467 = scmp.eq.s32.totalorder %s30, 0
    %p468 = por %p466, %p467
    %p469 = scmp.ne.s32.totalorder %s461, %s463
    %p470 = scmp.eq.s32.totalorder %s35, 1
    %p471 = por %p469, %p470
    %p472 = scmp.ne.s32.totalorder %s463, %s464
    %p473 = scmp.eq.s32.totalorder %s35, 0
    %p474 = por %p472, %p473
    %p475 = scmp.ne.s32.totalorder %s463, %s464
    %p476 = scmp.eq.s32.totalorder %s36, 1
    %p477 = por %p475, %p476
    %p479 = scmp.ne.s32.totalorder %s464, %s478
    %p480 = scmp.eq.s32.totalorder %s36, 0
    %p481 = por %p479, %p480
    %s483 = sadd.s32 %s482, 1
    %p486 = scmp.eq.s32.totalorder %s30, 1
    %p487 = scmp.ne.s32.totalorder %s482, %s484
    %p488 = scmp.eq.s32.totalorder %s30, 0
    %p489 = por %p487, %p488
    %p490 = scmp.ne.s32.totalorder %s482, %s484
    %p491 = scmp.eq.s32.totalorder %s35, 1
    %p492 = por %p490, %p491
    %p493 = scmp.ne.s32.totalorder %s484, %s485
    %p494 = scmp.eq.s32.totalorder %s35, 0
    %p495 = por %p493, %p494
    %p496 = scmp.ne.s32.totalorder %s484, %s485
    %p497 = scmp.eq.s32.totalorder %s36, 1
    %p498 = por %p496, %p497
    %p500 = scmp.ne.s32.totalorder %s485, %s499
    %p501 = scmp.eq.s32.totalorder %s36, 0
    %p502 = por %p500, %p501
    %s504 = sadd.s32 %s503, 1
    %p507 = scmp.eq.s32.totalorder %s30, 1
    %p508 = scmp.ne.s32.totalorder %s503, %s505
    %p509 = scmp.eq.s32.totalorder %s30, 0
    %p510 = por %p508, %p509
    %p511 = scmp.ne.s32.totalorder %s503, %s505
    %p512 = scmp.eq.s32.totalorder %s35, 1
    %p513 = por %p511, %p512
    %p514 = scmp.ne.s32.totalorder %s505, %s506
    %p515 = scmp.eq.s32.totalorder %s35, 0
    %p516 = por %p514, %p515
    %p517 = scmp.ne.s32.totalorder %s505, %s506
    %p518 = scmp.eq.s32.totalorder %s36, 1
    %p519 = por %p517, %p518
    %p521 = scmp.ne.s32.totalorder %s506, %s520
    %p522 = scmp.eq.s32.totalorder %s36, 0
    %p523 = por %p521, %p522
    %s525 = sadd.s32 %s524, 1
    %p528 = scmp.eq.s32.totalorder %s30, 1
    %p529 = scmp.ne.s32.totalorder %s524, %s526
    %p530 = scmp.eq.s32.totalorder %s30, 0
    %p531 = por %p529, %p530
    %p532 = scmp.ne.s32.totalorder %s524, %s526
    %p533 = scmp.eq.s32.totalorder %s35, 1
    %p534 = por %p532, %p533
    %p535 = scmp.ne.s32.totalorder %s526, %s527
    %p536 = scmp.eq.s32.totalorder %s35, 0
    %p537 = por %p535, %p536
    %p538 = scmp.ne.s32.totalorder %s526, %s527
    %p539 = scmp.eq.s32.totalorder %s36, 1
    %p540 = por %p538, %p539
    %p542 = scmp.ne.s32.totalorder %s527, %s541
    %p543 = scmp.eq.s32.totalorder %s36, 0
    %p544 = por %p542, %p543
    %s546 = sadd.s32 %s545, 1
    %p549 = scmp.eq.s32.totalorder %s30, 1
    %p550 = scmp.ne.s32.totalorder %s545, %s547
    %p551 = scmp.eq.s32.totalorder %s30, 0
    %p552 = por %p550, %p551
    %p553 = scmp.ne.s32.totalorder %s545, %s547
    %p554 = scmp.eq.s32.totalorder %s35, 1
    %p555 = por %p553, %p554
    %p556 = scmp.ne.s32.totalorder %s547, %s548
    %p557 = scmp.eq.s32.totalorder %s35, 0
    %p558 = por %p556, %p557
    %p559 = scmp.ne.s32.totalorder %s547, %s548
    %p560 = scmp.eq.s32.totalorder %s36, 1
    %p561 = por %p559, %p560
    %p563 = scmp.ne.s32.totalorder %s548, %s562
    %p564 = scmp.eq.s32.totalorder %s36, 0
    %p565 = por %p563, %p564
    %s567 = sadd.s32 %s566, 1
    %p570 = scmp.eq.s32.totalorder %s30, 1
    %p571 = scmp.ne.s32.totalorder %s566, %s568
    %p572 = scmp.eq.s32.totalorder %s30, 0
    %p573 = por %p571, %p572
    %p574 = scmp.ne.s32.totalorder %s566, %s568
    %p575 = scmp.eq.s32.totalorder %s35, 1
    %p576 = por %p574, %p575
    %p577 = scmp.ne.s32.totalorder %s568, %s569
    %p578 = scmp.eq.s32.totalorder %s35, 0
    %p579 = por %p577, %p578
    %p580 = scmp.ne.s32.totalorder %s568, %s569
    %p581 = scmp.eq.s32.totalorder %s36, 1
    %p582 = por %p580, %p581
    %p584 = scmp.ne.s32.totalorder %s569, %s583
    %p585 = scmp.eq.s32.totalorder %s36, 0
    %p586 = por %p584, %p585
    %s587 = ssub.s32 %s30, %s37
    %p588 = scmp.eq.s32.totalorder %s587, 0
    %s590 = sadd.s32 %s589, 1
    %s591 = scalar_select %p588, %s589, %s590
    %p594 = pneg %p588
    %p595 = scmp.eq.s32.totalorder %s30, 1
    %p596 = por %p594, %p595
    %p597 = scmp.ne.s32.totalorder %s589, %s592
    %p598 = scmp.eq.s32.totalorder %s30, 0
    %p599 = por %p597, %p598
    %p600 = scmp.ne.s32.totalorder %s589, %s592
    %p601 = scmp.eq.s32.totalorder %s35, 1
    %p602 = por %p600, %p601
    %p603 = scmp.ne.s32.totalorder %s592, %s593
    %p604 = scmp.eq.s32.totalorder %s35, 0
    %p605 = por %p603, %p604
    %p606 = scmp.ne.s32.totalorder %s592, %s593
    %p607 = scmp.eq.s32.totalorder %s36, 1
    %p608 = por %p606, %p607
    %p610 = scmp.ne.s32.totalorder %s593, %s609
    %p611 = scmp.eq.s32.totalorder %s36, 0
    %p612 = por %p610, %p611
    %p613 = scmp.le.s32.totalorder 1, %s30
    %p614 = scmp.lt.s32.totalorder %s30, 3
    %p615 = pnand %p613, %p614
    %p616 = pneg %p615
    // Predicated region
    $region9: #{test_model_forward.1} parent=5 // pred_check
      _
    $region10: #{test_model_forward.1} parent=5 // pred_check_branch
      %618 = sbr.rel (%p615) target = $region12
    $region11: #{test_model_forward.1} parent=5 // pred_region
      %s619 = ssub.s32 %s30, 1
      // Predicated region
      $region13: #{test_model_forward.1} parent=11 // pred_check
        %p620 = pneg %p285
      $region14: #{test_model_forward.1} parent=11 // pred_check_branch
        %622 = sbr.rel (%p620) target = $region16
      $region15: #{test_model_forward.1} parent=11 // pred_region
        _
      $region16: #{test_model_forward.1} parent=11 // pred_fallthru
        _
      // Predicated region
      $region17: #{test_model_forward.1} parent=11 // pred_check
        %p623 = pneg %p306
      $region18: #{test_model_forward.1} parent=11 // pred_check_branch
        %625 = sbr.rel (%p623) target = $region20
      $region19: #{test_model_forward.1} parent=11 // pred_region
        _
      $region20: #{test_model_forward.1} parent=11 // pred_fallthru
        _
      // Predicated region
      $region21: #{test_model_forward.1} parent=11 // pred_check
        %p626 = pneg %p327
      $region22: #{test_model_forward.1} parent=11 // pred_check_branch
        %628 = sbr.rel (%p626) target = $region24
      $region23: #{test_model_forward.1} parent=11 // pred_region
        _
      $region24: #{test_model_forward.1} parent=11 // pred_fallthru
        _
      // Predicated region
      $region25: #{test_model_forward.1} parent=11 // pred_check
        %p629 = pneg %p348
      $region26: #{test_model_forward.1} parent=11 // pred_check_branch
        %631 = sbr.rel (%p629) target = $region28
      $region27: #{test_model_forward.1} parent=11 // pred_region
        _
      $region28: #{test_model_forward.1} parent=11 // pred_fallthru
        _
      // Predicated region
      $region29: #{test_model_forward.1} parent=11 // pred_check
        %p632 = pneg %p369
      $region30: #{test_model_forward.1} parent=11 // pred_check_branch
        %634 = sbr.rel (%p632) target = $region32
      $region31: #{test_model_forward.1} parent=11 // pred_region
        _
      $region32: #{test_model_forward.1} parent=11 // pred_fallthru
        _
      // Predicated region
      $region33: #{test_model_forward.1} parent=11 // pred_check
        %p635 = pneg %p390
      $region34: #{test_model_forward.1} parent=11 // pred_check_branch
        %637 = sbr.rel (%p635) target = $region36
      $region35: #{test_model_forward.1} parent=11 // pred_region
        _
      $region36: #{test_model_forward.1} parent=11 // pred_fallthru
        _
      // Predicated region
      $region37: #{test_model_forward.1} parent=11 // pred_check
        %p638 = pneg %p411
      $region38: #{test_model_forward.1} parent=11 // pred_check_branch
        %640 = sbr.rel (%p638) target = $region40
      $region39: #{test_model_forward.1} parent=11 // pred_region
        _
      $region40: #{test_model_forward.1} parent=11 // pred_fallthru
        _
      // Predicated region
      $region41: #{test_model_forward.1} parent=11 // pred_check
        %p641 = pneg %p432
      $region42: #{test_model_forward.1} parent=11 // pred_check_branch
        %643 = sbr.rel (%p641) target = $region44
      $region43: #{test_model_forward.1} parent=11 // pred_region
        _
      $region44: #{test_model_forward.1} parent=11 // pred_fallthru
        _
      // Predicated region
      $region45: #{test_model_forward.1} parent=11 // pred_check
        %p644 = pneg %p453
      $region46: #{test_model_forward.1} parent=11 // pred_check_branch
        %646 = sbr.rel (%p644) target = $region48
      $region47: #{test_model_forward.1} parent=11 // pred_region
        _
      $region48: #{test_model_forward.1} parent=11 // pred_fallthru
        _
      // Predicated region
      $region49: #{test_model_forward.1} parent=11 // pred_check
        %p647 = pneg %p474
      $region50: #{test_model_forward.1} parent=11 // pred_check_branch
        %649 = sbr.rel (%p647) target = $region52
      $region51: #{test_model_forward.1} parent=11 // pred_region
        _
      $region52: #{test_model_forward.1} parent=11 // pred_fallthru
        _
      // Predicated region
      $region53: #{test_model_forward.1} parent=11 // pred_check
        %p650 = pneg %p495
      $region54: #{test_model_forward.1} parent=11 // pred_check_branch
        %652 = sbr.rel (%p650) target = $region56
      $region55: #{test_model_forward.1} parent=11 // pred_region
        _
      $region56: #{test_model_forward.1} parent=11 // pred_fallthru
        _
      // Predicated region
      $region57: #{test_model_forward.1} parent=11 // pred_check
        %p653 = pneg %p516
      $region58: #{test_model_forward.1} parent=11 // pred_check_branch
        %655 = sbr.rel (%p653) target = $region60
      $region59: #{test_model_forward.1} parent=11 // pred_region
        _
      $region60: #{test_model_forward.1} parent=11 // pred_fallthru
        _
      // Predicated region
      $region61: #{test_model_forward.1} parent=11 // pred_check
        %p656 = pneg %p537
      $region62: #{test_model_forward.1} parent=11 // pred_check_branch
        %658 = sbr.rel (%p656) target = $region64
      $region63: #{test_model_forward.1} parent=11 // pred_region
        _
      $region64: #{test_model_forward.1} parent=11 // pred_fallthru
        _
      // Predicated region
      $region65: #{test_model_forward.1} parent=11 // pred_check
        %p659 = pneg %p558
      $region66: #{test_model_forward.1} parent=11 // pred_check_branch
        %661 = sbr.rel (%p659) target = $region68
      $region67: #{test_model_forward.1} parent=11 // pred_region
        _
      $region68: #{test_model_forward.1} parent=11 // pred_fallthru
        _
      // Predicated region
      $region69: #{test_model_forward.1} parent=11 // pred_check
        %p662 = pneg %p579
      $region70: #{test_model_forward.1} parent=11 // pred_check_branch
        %664 = sbr.rel (%p662) target = $region72
      $region71: #{test_model_forward.1} parent=11 // pred_region
        _
      $region72: #{test_model_forward.1} parent=11 // pred_fallthru
        _
    $region12: #{test_model_forward.1} parent=5 // pred_fallthru
      _
    %p665 = scmp.lt.s32.totalorder %s30, 2
    // Predicated region
    $region73: #{test_model_forward.1} parent=5 // pred_check
      %p666 = pneg %p665
    $region74: #{test_model_forward.1} parent=5 // pred_check_branch
      %668 = sbr.rel (%p666) target = $region76
    $region75: #{test_model_forward.1} parent=5 // pred_region
      // Predicated region
      $region77: #{test_model_forward.1} parent=75 // pred_check
        %p669 = pneg %p50
      $region78: #{test_model_forward.1} parent=75 // pred_check_branch
        %671 = sbr.rel (%p669) target = $region80
      $region79: #{test_model_forward.1} parent=75 // pred_region
        %p672 = scmp.lt.s32.totalorder %s30, 1
        %s673 = scalar_select %p672, %s30, 1
        %s674 = smul.addr %s673, 4
        %s675 = smul.addr %s674, 8
        %s676 = scalar_lea.vmem %s0, %s675
      $region80: #{test_model_forward.1} parent=75 // pred_fallthru
        _
      // Predicated region
      $region81: #{test_model_forward.1} parent=75 // pred_check
        %p677 = pneg %p76
      $region82: #{test_model_forward.1} parent=75 // pred_check_branch
        %679 = sbr.rel (%p677) target = $region84
      $region83: #{test_model_forward.1} parent=75 // pred_region
        %p680 = scmp.lt.s32.totalorder %s30, 1
        %s681 = scalar_select %p680, %s30, 1
        %s682 = smul.addr %s681, 4
        %s683 = smul.addr %s682, 8
        %s684 = scalar_lea.vmem %s1, %s683
      $region84: #{test_model_forward.1} parent=75 // pred_fallthru
        _
      // Predicated region
      $region85: #{test_model_forward.1} parent=75 // pred_check
        %p685 = pneg %p102
      $region86: #{test_model_forward.1} parent=75 // pred_check_branch
        %687 = sbr.rel (%p685) target = $region88
      $region87: #{test_model_forward.1} parent=75 // pred_region
        %p688 = scmp.lt.s32.totalorder %s30, 1
        %s689 = scalar_select %p688, %s30, 1
        %s690 = smul.addr %s689, 8
        %s691 = scalar_lea.vmem %s2, %s690
      $region88: #{test_model_forward.1} parent=75 // pred_fallthru
        _
      // Predicated region
      $region89: #{test_model_forward.1} parent=75 // pred_check
        %p692 = pneg %p128
      $region90: #{test_model_forward.1} parent=75 // pred_check_branch
        %694 = sbr.rel (%p692) target = $region92
      $region91: #{test_model_forward.1} parent=75 // pred_region
        %p695 = scmp.lt.s32.totalorder %s30, 1
        %s696 = scalar_select %p695, %s30, 1
        %s697 = smul.addr %s696, 8
        %s698 = scalar_lea.vmem %s3, %s697
      $region92: #{test_model_forward.1} parent=75 // pred_fallthru
        _
      // Predicated region
      $region93: #{test_model_forward.1} parent=75 // pred_check
        %p699 = pneg %p154
      $region94: #{test_model_forward.1} parent=75 // pred_check_branch
        %701 = sbr.rel (%p699) target = $region96
      $region95: #{test_model_forward.1} parent=75 // pred_region
        %p702 = scmp.lt.s32.totalorder %s30, 1
        %s703 = scalar_select %p702, %s30, 1
        %s704 = smul.addr %s703, 4
        %s705 = smul.addr %s704, 8
        %s706 = scalar_lea.vmem %s4, %s705
      $region96: #{test_model_forward.1} parent=75 // pred_fallthru
        _
      // Predicated region
      $region97: #{test_model_forward.1} parent=75 // pred_check
        %p707 = pneg %p180
      $region98: #{test_model_forward.1} parent=75 // pred_check_branch
        %709 = sbr.rel (%p707) target = $region100
      $region99: #{test_model_forward.1} parent=75 // pred_region
        %p710 = scmp.lt.s32.totalorder %s30, 1
        %s711 = scalar_select %p710, %s30, 1
        %s712 = scalar_lea.vmem %s5, %s711
      $region100: #{test_model_forward.1} parent=75 // pred_fallthru
        _
      // Predicated region
      $region101: #{test_model_forward.1} parent=75 // pred_check
        %p713 = pneg %p206
      $region102: #{test_model_forward.1} parent=75 // pred_check_branch
        %715 = sbr.rel (%p713) target = $region104
      $region103: #{test_model_forward.1} parent=75 // pred_region
        %p716 = scmp.lt.s32.totalorder %s30, 1
        %s717 = scalar_select %p716, %s30, 1
        %s718 = smul.addr %s717, 4
        %s719 = smul.addr %s718, 8
        %s720 = scalar_lea.vmem %s6, %s719
      $region104: #{test_model_forward.1} parent=75 // pred_fallthru
        _
      // Predicated region
      $region105: #{test_model_forward.1} parent=75 // pred_check
        %p721 = pneg %p232
      $region106: #{test_model_forward.1} parent=75 // pred_check_branch
        %723 = sbr.rel (%p721) target = $region108
      $region107: #{test_model_forward.1} parent=75 // pred_region
        %p724 = scmp.lt.s32.totalorder %s30, 1
        %s725 = scalar_select %p724, %s30, 1
        %s726 = scalar_lea.vmem %s7, %s725
      $region108: #{test_model_forward.1} parent=75 // pred_fallthru
        _
      // Predicated region
      $region109: #{test_model_forward.1} parent=75 // pred_check
        %p727 = pneg %p258
      $region110: #{test_model_forward.1} parent=75 // pred_check_branch
        %729 = sbr.rel (%p727) target = $region112
      $region111: #{test_model_forward.1} parent=75 // pred_region
        %p730 = scmp.lt.s32.totalorder %s30, 1
        %s731 = scalar_select %p730, %s30, 1
        %s732 = scalar_lea.vmem %s8, %s731
      $region112: #{test_model_forward.1} parent=75 // pred_fallthru
        _
    $region76: #{test_model_forward.1} parent=5 // pred_fallthru
      _
    %p733 = scmp.le.s32.totalorder 1, %s30
    %p734 = scmp.lt.s32.totalorder %s30, 3
    %p735 = pnand %p733, %p734
    %p736 = pneg %p735
    // Predicated region
    $region113: #{test_model_forward.1} parent=5 // pred_check
      _
    $region114: #{test_model_forward.1} parent=5 // pred_check_branch
      %738 = sbr.rel (%p735) target = $region116
    $region115: #{test_model_forward.1} parent=5 // pred_region
      %s739 = ssub.s32 %s30, 1
      %p740 = scmp.lt.s32.totalorder %s35, 1
      %s741 = scalar_select %p740, %s35, 1
      %s742 = smul.addr %s741, 4
      %s743 = smul.addr %s742, 8
      %s744 = scalar_lea.vmem %s0, %s743
      %p745 = pneg %p56
      %p746 = pneg %p53
      %p747 = scmp.lt.s32.totalorder %s35, 1
      %s748 = scalar_select %p747, %s35, 1
      %s749 = smul.addr %s748, 4
      %s750 = smul.addr %s749, 8
      %s751 = scalar_lea.vmem %s1, %s750
      %p752 = pneg %p82
      %p753 = pneg %p79
      %p754 = scmp.lt.s32.totalorder %s35, 1
      %s755 = scalar_select %p754, %s35, 1
      %s756 = smul.addr %s755, 8
      %s757 = scalar_lea.vmem %s2, %s756
      %p758 = pneg %p108
      %p759 = pneg %p105
      %p760 = scmp.lt.s32.totalorder %s35, 1
      %s761 = scalar_select %p760, %s35, 1
      %s762 = smul.addr %s761, 8
      %s763 = scalar_lea.vmem %s3, %s762
      %p764 = pneg %p134
      %p765 = pneg %p131
      %p766 = scmp.lt.s32.totalorder %s35, 1
      %s767 = scalar_select %p766, %s35, 1
      %s768 = smul.addr %s767, 4
      %s769 = smul.addr %s768, 8
      %s770 = scalar_lea.vmem %s4, %s769
      %p771 = pneg %p160
      %p772 = pneg %p157
      %p773 = scmp.lt.s32.totalorder %s35, 1
      %s774 = scalar_select %p773, %s35, 1
      %s775 = scalar_lea.vmem %s5, %s774
      %p776 = pneg %p186
      %p777 = pneg %p183
      %p778 = scmp.lt.s32.totalorder %s35, 1
      %s779 = scalar_select %p778, %s35, 1
      %s780 = smul.addr %s779, 4
      %s781 = smul.addr %s780, 8
      %s782 = scalar_lea.vmem %s6, %s781
      %p783 = pneg %p212
      %p784 = pneg %p209
      %p785 = scmp.lt.s32.totalorder %s35, 1
      %s786 = scalar_select %p785, %s35, 1
      %s787 = scalar_lea.vmem %s7, %s786
      %p788 = pneg %p238
      %p789 = pneg %p235
      %p790 = scmp.lt.s32.totalorder %s35, 1
      %s791 = scalar_select %p790, %s35, 1
      %s792 = scalar_lea.vmem %s8, %s791
      %p793 = pneg %p264
      %p794 = pneg %p261
      %p795 = pneg %p285
      %p796 = pneg %p282
      %p797 = pneg %p306
      %p798 = pneg %p303
      %p799 = pneg %p327
      %p800 = pneg %p324
      %p801 = pneg %p348
      %p802 = pneg %p345
      %p803 = pneg %p369
      %p804 = pneg %p366
      %p805 = pneg %p390
      %p806 = pneg %p387
      %p807 = pneg %p411
      %p808 = pneg %p408
      %p809 = pneg %p432
      %p810 = pneg %p429
      %p811 = pneg %p453
      %p812 = pneg %p450
      %p813 = pneg %p474
      %p814 = pneg %p471
      %p815 = pneg %p495
      %p816 = pneg %p492
      %p817 = pneg %p516
      %p818 = pneg %p513
      %p819 = pneg %p537
      %p820 = pneg %p534
      %p821 = pneg %p558
      %p822 = pneg %p555
      %p823 = pneg %p579
      %p824 = pneg %p576
      %p825 = pneg %p605
      %p826 = pneg %p602
      %p827 = scmp.lt.s32.totalorder %s35, 1
      %s828 = scalar_select %p827, %s35, 1
      %s829 = smul.addr %s828, 8
      %s830 = scalar_lea.vmem %s24, %s829
      %p831 = scmp.lt.s32.totalorder %s35, 1
      %s832 = scalar_select %p831, %s35, 1
      %s833 = smul.addr %s832, 4
      %s834 = smul.addr %s833, 8
      %s835 = scalar_lea.vmem %s0, %s834
      %p836 = scmp.lt.s32.totalorder %s35, 1
      %s837 = scalar_select %p836, %s35, 1
      %s838 = smul.addr %s837, 4
      %s839 = smul.addr %s838, 8
      %s840 = scalar_lea.vmem %s1, %s839
      %p841 = scmp.lt.s32.totalorder %s35, 1
      %s842 = scalar_select %p841, %s35, 1
      %s843 = smul.addr %s842, 8
      %s844 = scalar_lea.vmem %s2, %s843
      %p845 = scmp.lt.s32.totalorder %s35, 1
      %s846 = scalar_select %p845, %s35, 1
      %s847 = smul.addr %s846, 8
      %s848 = scalar_lea.vmem %s3, %s847
      %p849 = scmp.lt.s32.totalorder %s35, 1
      %s850 = scalar_select %p849, %s35, 1
      %s851 = smul.addr %s850, 4
      %s852 = smul.addr %s851, 8
      %s853 = scalar_lea.vmem %s4, %s852
      %p854 = scmp.lt.s32.totalorder %s35, 1
      %s855 = scalar_select %p854, %s35, 1
      %s856 = scalar_lea.vmem %s5, %s855
      %p857 = scmp.lt.s32.totalorder %s35, 1
      %s858 = scalar_select %p857, %s35, 1
      %s859 = smul.addr %s858, 4
      %s860 = smul.addr %s859, 8
      %s861 = scalar_lea.vmem %s6, %s860
      %p862 = scmp.lt.s32.totalorder %s35, 1
      %s863 = scalar_select %p862, %s35, 1
      %s864 = scalar_lea.vmem %s7, %s863
      %p865 = scmp.lt.s32.totalorder %s35, 1
      %s866 = scalar_select %p865, %s35, 1
      %s867 = scalar_lea.vmem %s8, %s866
      %p868 = scmp.lt.s32.totalorder %s35, 1
      %s869 = scalar_select %p868, %s35, 1
      %s870 = smul.addr %s869, 8
      %s871 = scalar_lea.vmem %s24, %s870
      %v872 = vld [vmem:[%s835] sm:$0xff]
      %v873 = vld [vmem:[%s835 + $0x8] sm:$0xff]
      %v874 = vld [vmem:[%s835 + $0x10] sm:$0xff]
      %v875 = vld [vmem:[%s835 + $0x18] sm:$0xff]
      %v876 = vld [vmem:[%s9] sm:$0xff]
      %v877 = vld [vmem:[%s9 + $0x8] sm:$0xff]
      %v878 = vld [vmem:[%s9 + $0x10] sm:$0xff]
      %v879 = vld [vmem:[%s9 + $0x18] sm:$0xff]
      %v880 = vld [vmem:[%s9 + $0x20] sm:$0xff]
      %v881 = vld [vmem:[%s9 + $0x28] sm:$0xff]
      %v882 = vld [vmem:[%s9 + $0x30] sm:$0xff]
      %v883 = vld [vmem:[%s9 + $0x38] sm:$0xff]
      %v884 = vld [vmem:[%s9 + $0x40] sm:$0xff]
      %v885 = vld [vmem:[%s9 + $0x48] sm:$0xff]
      %v886 = vld [vmem:[%s9 + $0x50] sm:$0xff]
      %v887 = vld [vmem:[%s9 + $0x58] sm:$0xff]
      %v888 = vld [vmem:[%s9 + $0x60] sm:$0xff]
      %v889 = vld [vmem:[%s9 + $0x68] sm:$0xff]
      %v890 = vld [vmem:[%s9 + $0x70] sm:$0xff]
      %v891 = vld [vmem:[%s9 + $0x78] sm:$0xff]
      %v892 = vlaneseq
      %v893 = vand.u32 %v892, 127
      %894 = vset.pattern.permute.xlu0 0
      %895 = vperm.xlu0 %894, %v872
      %v896 = vpop.permute.xlu0 %895
      %897 = vset.pattern.permute.xlu0 0
      %898 = vperm.xlu0 %897, %v873
      %v899 = vpop.permute.xlu0 %898
      %900 = vset.pattern.permute.xlu0 0
      %901 = vperm.xlu0 %900, %v874
      %v902 = vpop.permute.xlu0 %901
      %903 = vset.pattern.permute.xlu0 0
      %904 = vperm.xlu0 %903, %v875
      %v905 = vpop.permute.xlu0 %904
      %vm906 = vcmp.eq.s32.totalorder %v893, %v896
      %vm907 = vcmp.eq.s32.totalorder %v893, %v899
      %vm908 = vcmp.eq.s32.totalorder %v893, %v902
      %vm909 = vcmp.eq.s32.totalorder %v893, %v905
      %v910 = vsel %vm906, 1, 0
      %v911 = vsel %vm907, 1, 0
      %v912 = vsel %vm908, 1, 0
      %v913 = vsel %vm909, 1, 0
      %v914 = vcvt.s32.f32 %v910
      %v915 = vcvt.s32.f32 %v911
      %v916 = vcvt.s32.f32 %v912
      %v917 = vcvt.s32.f32 %v913
      %918 = vmatprep.subr.mxu0 0.0
      %919 = vmatpush1.msra.mxu0 %v876
      %920 = vmatprep.subr.mxu0 0.0
      %921 = vmatpush1.msra.mxu0 %v877
      %922 = vmatprep.subr.mxu0 0.0
      %923 = vmatpush1.msra.mxu0 %v878
      %924 = vmatprep.subr.mxu0 0.0
      %925 = vmatpush1.msra.mxu0 %v879
      %926 = vmatprep.subr.mxu0 0.0
      %927 = vmatpush1.msra.mxu0 %v880
      %928 = vmatprep.subr.mxu0 0.0
      %929 = vmatpush1.msra.mxu0 %v881
      %930 = vmatprep.subr.mxu0 0.0
      %931 = vmatpush1.msra.mxu0 %v882
      %932 = vmatprep.subr.mxu0 0.0
      %933 = vmatpush1.msra.mxu0 %v883
      %934 = vmatprep.subr.mxu0 0.0
      %935 = vmatpush1.msra.mxu0 %v884
      %936 = vmatprep.subr.mxu0 0.0
      %937 = vmatpush1.msra.mxu0 %v885
      %938 = vmatprep.subr.mxu0 0.0
      %939 = vmatpush1.msra.mxu0 %v886
      %940 = vmatprep.subr.mxu0 0.0
      %941 = vmatpush1.msra.mxu0 %v887
      %942 = vmatprep.subr.mxu0 0.0
      %943 = vmatpush1.msra.mxu0 %v888
      %944 = vmatprep.subr.mxu0 0.0
      %945 = vmatpush1.msra.mxu0 %v889
      %946 = vmatprep.subr.mxu0 0.0
      %947 = vmatpush1.msra.mxu0 %v890
      %948 = vmatprep.subr.mxu0 0.0
      %949 = vmatpush1.msra.mxu0 %v891
      %950 = vmatprep.subr.mxu0 0.0
      %951 = vmatpush1.msra.mxu0 0.0
      %952 = vmatprep.subr.mxu0 0.0
      %953 = vmatpush1.msra.mxu0 0.0
      %954 = vmatprep.subr.mxu0 0.0
      %955 = vmatpush1.msra.mxu0 0.0
      %956 = vmatprep.subr.mxu0 0.0
      %957 = vmatpush1.msra.mxu0 0.0
      %958 = vmatprep.subr.mxu0 0.0
      %959 = vmatpush1.msra.mxu0 0.0
      %960 = vmatprep.subr.mxu0 0.0
      %961 = vmatpush1.msra.mxu0 0.0
      %962 = vmatprep.subr.mxu0 0.0
      %963 = vmatpush1.msra.mxu0 0.0
      %964 = vmatprep.subr.mxu0 0.0
      %965 = vmatpush1.msra.mxu0 0.0
      %966 = vmatprep.subr.mxu0 0.0
      %967 = vmatpush1.msra.mxu0 0.0
      %968 = vmatprep.subr.mxu0 0.0
      %969 = vmatpush1.msra.mxu0 0.0
      %970 = vmatprep.subr.mxu0 0.0
      %971 = vmatpush1.msra.mxu0 0.0
      %972 = vmatprep.subr.mxu0 0.0
      %973 = vmatpush1.msra.mxu0 0.0
      %974 = vmatprep.subr.mxu0 0.0
      %975 = vmatpush1.msra.mxu0 0.0
      %976 = vmatprep.subr.mxu0 0.0
      %977 = vmatpush1.msra.mxu0 0.0
      %978 = vmatprep.subr.mxu0 0.0
      %979 = vmatpush1.msra.mxu0 0.0
      %980 = vmatprep.subr.mxu0 0.0
      %981 = vmatpush1.msra.mxu0 0.0
      %982 = vmatprep.mubr.f32.mxu0 0.0
      %983 = vmatmul.mubr.f32.gmra.mrb[0].mxu0 %v914
      %v984 = vpop.f32.mrb[0].mxu0
      %v985 = vadd.f32 0.0, %v984
      %v986 = vpop.f32.mrb[0].mxu0
      %987 = vmatprep.mubr.f32.mxu0 0.0
      %988 = vmatmul.mubr.f32.gmra.mrb[0].mxu0 %v915
      %v989 = vpop.f32.mrb[0].mxu0
      %v990 = vadd.f32 0.0, %v989
      %v991 = vpop.f32.mrb[0].mxu0
      %992 = vmatprep.mubr.f32.mxu0 0.0
      %993 = vmatmul.mubr.f32.gmra.mrb[0].mxu0 %v916
      %v994 = vpop.f32.mrb[0].mxu0
      %v995 = vadd.f32 0.0, %v994
      %v996 = vpop.f32.mrb[0].mxu0
      %997 = vmatprep.mubr.f32.mxu0 0.0
      %998 = vmatmul.mubr.f32.gmra.mrb[0].mxu0 %v917
      %v999 = vpop.f32.mrb[0].mxu0
      %v1000 = vadd.f32 0.0, %v999
      %v1001 = vpop.f32.mrb[0].mxu0
      %1002 = vdwg.mxu0
      %v1003 = vld [vmem:[%s10] sm:$0xff]
      %v1004 = vld [vmem:[%s10 + $0x8] sm:$0xff]
      %v1005 = vld [vmem:[%s10 + $0x10] sm:$0xff]
      %v1006 = vld [vmem:[%s10 + $0x18] sm:$0xff]
      %v1007 = vld [vmem:[%s10 + $0x20] sm:$0xff]
      %v1008 = vld [vmem:[%s10 + $0x28] sm:$0xff]
      %v1009 = vld [vmem:[%s10 + $0x30] sm:$0xff]
      %v1010 = vld [vmem:[%s10 + $0x38] sm:$0xff]
      %v1011 = vld [vmem:[%s10 + $0x40] sm:$0xff]
      %v1012 = vld [vmem:[%s10 + $0x48] sm:$0xff]
      %v1013 = vld [vmem:[%s10 + $0x50] sm:$0xff]
      %v1014 = vld [vmem:[%s10 + $0x58] sm:$0xff]
      %v1015 = vld [vmem:[%s10 + $0x60] sm:$0xff]
      %v1016 = vld [vmem:[%s10 + $0x68] sm:$0xff]
      %v1017 = vld [vmem:[%s10 + $0x70] sm:$0xff]
      %v1018 = vld [vmem:[%s10 + $0x78] sm:$0xff]
      %v1019 = vld [vmem:[%s11] sm:$0x1]
      %v1021 = vlaneseq
      %v1022 = vshrl.u32 %v1021, 7
      %v1023 = vsub.s32 0, %v1022
      %v1024 = vrot.slane %v1019, %v1023
      %1026 = vmatprep.subr.mxu0 0.0
      %1027 = vmatpush1.msra.mxu0 %v1003
      %1028 = vmatprep.subr.mxu0 0.0
      %1029 = vmatpush1.msra.mxu0 %v1004
      %1030 = vmatprep.subr.mxu0 0.0
      %1031 = vmatpush1.msra.mxu0 %v1005
      %1032 = vmatprep.subr.mxu0 0.0
      %1033 = vmatpush1.msra.mxu0 %v1006
      %1034 = vmatprep.subr.mxu0 0.0
      %1035 = vmatpush1.msra.mxu0 %v1007
      %1036 = vmatprep.subr.mxu0 0.0
      %1037 = vmatpush1.msra.mxu0 %v1008
      %1038 = vmatprep.subr.mxu0 0.0
      %1039 = vmatpush1.msra.mxu0 %v1009
      %1040 = vmatprep.subr.mxu0 0.0
      %1041 = vmatpush1.msra.mxu0 %v1010
      %1042 = vmatprep.subr.mxu0 0.0
      %1043 = vmatpush1.msra.mxu0 %v1011
      %1044 = vmatprep.subr.mxu0 0.0
      %1045 = vmatpush1.msra.mxu0 %v1012
      %1046 = vmatprep.subr.mxu0 0.0
      %1047 = vmatpush1.msra.mxu0 %v1013
      %1048 = vmatprep.subr.mxu0 0.0
      %1049 = vmatpush1.msra.mxu0 %v1014
      %1050 = vmatprep.subr.mxu0 0.0
      %1051 = vmatpush1.msra.mxu0 %v1015
      %1052 = vmatprep.subr.mxu0 0.0
      %1053 = vmatpush1.msra.mxu0 %v1016
      %1054 = vmatprep.subr.mxu0 0.0
      %1055 = vmatpush1.msra.mxu0 %v1017
      %1056 = vmatprep.subr.mxu0 0.0
      %1057 = vmatpush1.msra.mxu0 %v1018
      %1058 = vmatprep.subr.mxu0 0.0
      %1059 = vmatpush1.msra.mxu0 0.0
      %1060 = vmatprep.subr.mxu0 0.0
      %1061 = vmatpush1.msra.mxu0 0.0
      %1062 = vmatprep.subr.mxu0 0.0
      %1063 = vmatpush1.msra.mxu0 0.0
      %1064 = vmatprep.subr.mxu0 0.0
      %1065 = vmatpush1.msra.mxu0 0.0
      %1066 = vmatprep.subr.mxu0 0.0
      %1067 = vmatpush1.msra.mxu0 0.0
      %1068 = vmatprep.subr.mxu0 0.0
      %1069 = vmatpush1.msra.mxu0 0.0
      %1070 = vmatprep.subr.mxu0 0.0
      %1071 = vmatpush1.msra.mxu0 0.0
      %1072 = vmatprep.subr.mxu0 0.0
      %1073 = vmatpush1.msra.mxu0 0.0
      %1074 = vmatprep.subr.mxu0 0.0
      %1075 = vmatpush1.msra.mxu0 0.0
      %1076 = vmatprep.subr.mxu0 0.0
      %1077 = vmatpush1.msra.mxu0 0.0
      %1078 = vmatprep.subr.mxu0 0.0
      %1079 = vmatpush1.msra.mxu0 0.0
      %1080 = vmatprep.subr.mxu0 0.0
      %1081 = vmatpush1.msra.mxu0 0.0
      %1082 = vmatprep.subr.mxu0 0.0
      %1083 = vmatpush1.msra.mxu0 0.0
      %1084 = vmatprep.subr.mxu0 0.0
      %1085 = vmatpush1.msra.mxu0 0.0
      %1086 = vmatprep.subr.mxu0 0.0
      %1087 = vmatpush1.msra.mxu0 0.0
      %1088 = vmatprep.subr.mxu0 0.0
      %1089 = vmatpush1.msra.mxu0 0.0
      %1090 = vmatprep.mubr.f32.mxu0 0.0
      %1091 = vmatmul.mubr.f32.gmra.mrb[0].mxu0 %v985
      %v1092 = vpop.f32.mrb[0].mxu0
      %v1093 = vadd.f32 %v1024, %v1092
      %v1094 = vpop.f32.mrb[0].mxu0
      %1095 = vmatprep.mubr.f32.mxu0 0.0
      %1096 = vmatmul.mubr.f32.gmra.mrb[0].mxu0 %v990
      %v1097 = vpop.f32.mrb[0].mxu0
      %v1098 = vadd.f32 %v1024, %v1097
      %v1099 = vpop.f32.mrb[0].mxu0
      %1100 = vmatprep.mubr.f32.mxu0 0.0
      %1101 = vmatmul.mubr.f32.gmra.mrb[0].mxu0 %v995
      %v1102 = vpop.f32.mrb[0].mxu0
      %v1103 = vadd.f32 %v1024, %v1102
      %v1104 = vpop.f32.mrb[0].mxu0
      %1105 = vmatprep.mubr.f32.mxu0 0.0
      %1106 = vmatmul.mubr.f32.gmra.mrb[0].mxu0 %v1000
      %v1107 = vpop.f32.mrb[0].mxu0
      %v1108 = vadd.f32 %v1024, %v1107
      %v1109 = vpop.f32.mrb[0].mxu0
      %1110 = vdwg.mxu0
      %v1111 = vtanh.pop %v1093
      %v1112 = vtanh.pop %v1098
      %v1113 = vtanh.pop %v1103
      %v1114 = vtanh.pop %v1108
      %v1115 = vld [vmem:[%s853] sm:$0xff]
      %v1116 = vld [vmem:[%s853 + $0x8] sm:$0xff]
      %v1117 = vld [vmem:[%s853 + $0x10] sm:$0xff]
      %v1118 = vld [vmem:[%s853 + $0x18] sm:$0xff]
      %vm1119 = vcmask 261120
      %v1121 = vsel %vm1119, %v1115, 0
      %v1124 = vsel %vm1119, %v1116, 0
      %v1127 = vsel %vm1119, %v1117, 0
      %v1130 = vsel %vm1119, %v1118, 0
      %1132 = vmatprep.subr.mxu0 0.0
      %1133 = vmatpush1.msra.mxu0 %v1111
      %1134 = vmatprep.subr.mxu0 0.0
      %1135 = vmatpush1.msra.mxu0 %v1112
      %1136 = vmatprep.subr.mxu0 0.0
      %1137 = vmatpush1.msra.mxu0 %v1113
      %1138 = vmatprep.subr.mxu0 0.0
      %1139 = vmatpush1.msra.mxu0 %v1114
      %1140 = vmatprep.subr.mxu0 0.0
      %1141 = vmatpush1.msra.mxu0 0.0
      %1142 = vmatprep.subr.mxu0 0.0
      %1143 = vmatpush1.msra.mxu0 0.0
      %1144 = vmatprep.subr.mxu0 0.0
      %1145 = vmatpush1.msra.mxu0 0.0
      %1146 = vmatprep.subr.mxu0 0.0
      %1147 = vmatpush1.msra.mxu0 0.0
      %1148 = vmatprep.subr.mxu0 0.0
      %1149 = vmatpush1.msra.mxu0 0.0
      %1150 = vmatprep.subr.mxu0 0.0
      %1151 = vmatpush1.msra.mxu0 0.0
      %1152 = vmatprep.subr.mxu0 0.0
      %1153 = vmatpush1.msra.mxu0 0.0
      %1154 = vmatprep.subr.mxu0 0.0
      %1155 = vmatpush1.msra.mxu0 0.0
      %1156 = vmatprep.subr.mxu0 0.0
      %1157 = vmatpush1.msra.mxu0 0.0
      %1158 = vmatprep.subr.mxu0 0.0
      %1159 = vmatpush1.msra.mxu0 0.0
      %1160 = vmatprep.subr.mxu0 0.0
      %1161 = vmatpush1.msra.mxu0 0.0
      %1162 = vmatprep.subr.mxu0 0.0
      %1163 = vmatpush1.msra.mxu0 0.0
      %1164 = vmatprep.subr.mxu0 0.0
      %1165 = vmatpush1.msra.mxu0 0.0
      %1166 = vmatprep.subr.mxu0 0.0
      %1167 = vmatpush1.msra.mxu0 0.0
      %1168 = vmatprep.subr.mxu0 0.0
      %1169 = vmatpush1.msra.mxu0 0.0
      %1170 = vmatprep.subr.mxu0 0.0
      %1171 = vmatpush1.msra.mxu0 0.0
      %1172 = vmatprep.subr.mxu0 0.0
      %1173 = vmatpush1.msra.mxu0 0.0
      %1174 = vmatprep.subr.mxu0 0.0
      %1175 = vmatpush1.msra.mxu0 0.0
      %1176 = vmatprep.subr.mxu0 0.0
      %1177 = vmatpush1.msra.mxu0 0.0
      %1178 = vmatprep.subr.mxu0 0.0
      %1179 = vmatpush1.msra.mxu0 0.0
      %1180 = vmatprep.subr.mxu0 0.0
      %1181 = vmatpush1.msra.mxu0 0.0
      %1182 = vmatprep.subr.mxu0 0.0
      %1183 = vmatpush1.msra.mxu0 0.0
      %1184 = vmatprep.subr.mxu0 0.0
      %1185 = vmatpush1.msra.mxu0 0.0
      %1186 = vmatprep.subr.mxu0 0.0
      %1187 = vmatpush1.msra.mxu0 0.0
      %1188 = vmatprep.subr.mxu0 0.0
      %1189 = vmatpush1.msra.mxu0 0.0
      %1190 = vmatprep.subr.mxu0 0.0
      %1191 = vmatpush1.msra.mxu0 0.0
      %1192 = vmatprep.subr.mxu0 0.0
      %1193 = vmatpush1.msra.mxu0 0.0
      %1194 = vmatprep.subr.mxu0 0.0
      %1195 = vmatpush1.msra.mxu0 0.0
      %1196 = vmatprep.mubr.f32.mxu0 0.0
      %1197 = vmatmul.mubr.f32.gmra.mrb[0].mxu0 %v1121
      %v1198 = vpop.f32.mrb[0].mxu0
      %v1199 = vadd.f32 0.0, %v1198
      %v1200 = vpop.f32.mrb[0].mxu0
      %1201 = vmatprep.mubr.f32.mxu0 0.0
      %1202 = vmatmul.mubr.f32.gmra.mrb[0].mxu0 %v1124
      %v1203 = vpop.f32.mrb[0].mxu0
      %v1204 = vadd.f32 0.0, %v1203
      %v1205 = vpop.f32.mrb[0].mxu0
      %1206 = vmatprep.mubr.f32.mxu0 0.0
      %1207 = vmatmul.mubr.f32.gmra.mrb[0].mxu0 %v1127
      %v1208 = vpop.f32.mrb[0].mxu0
      %v1209 = vadd.f32 0.0, %v1208
      %v1210 = vpop.f32.mrb[0].mxu0
      %1211 = vmatprep.mubr.f32.mxu0 0.0
      %1212 = vmatmul.mubr.f32.gmra.mrb[0].mxu0 %v1130
      %v1213 = vpop.f32.mrb[0].mxu0
      %v1214 = vadd.f32 0.0, %v1213
      %v1215 = vpop.f32.mrb[0].mxu0
      %1216 = vdwg.mxu0
      %v1217 = vld [vmem:[%s840] sm:$0xff]
      %v1218 = vld [vmem:[%s840 + $0x8] sm:$0xff]
      %v1219 = vld [vmem:[%s840 + $0x10] sm:$0xff]
      %v1220 = vld [vmem:[%s840 + $0x18] sm:$0xff]
      %v1221 = vld [vmem:[%s12] sm:$0xff]
      %v1222 = vld [vmem:[%s12 + $0x8] sm:$0xff]
      %v1223 = vld [vmem:[%s12 + $0x10] sm:$0xff]
      %v1224 = vld [vmem:[%s12 + $0x18] sm:$0xff]
      %v1225 = vld [vmem:[%s12 + $0x20] sm:$0xff]
      %v1226 = vld [vmem:[%s12 + $0x28] sm:$0xff]
      %v1227 = vld [vmem:[%s12 + $0x30] sm:$0xff]
      %v1228 = vld [vmem:[%s12 + $0x38] sm:$0xff]
      %v1229 = vld [vmem:[%s12 + $0x40] sm:$0xff]
      %v1230 = vld [vmem:[%s12 + $0x48] sm:$0xff]
      %v1231 = vld [vmem:[%s12 + $0x50] sm:$0xff]
      %v1232 = vld [vmem:[%s12 + $0x58] sm:$0xff]
      %v1233 = vld [vmem:[%s12 + $0x60] sm:$0xff]
      %v1234 = vld [vmem:[%s12 + $0x68] sm:$0xff]
      %v1235 = vld [vmem:[%s12 + $0x70] sm:$0xff]
      %v1236 = vld [vmem:[%s12 + $0x78] sm:$0xff]
      %1237 = vset.pattern.permute.xlu0 0
      %1238 = vperm.xlu0 %1237, %v1217
      %v1239 = vpop.permute.xlu0 %1238
      %1240 = vset.pattern.permute.xlu0 0
      %1241 = vperm.xlu0 %1240, %v1218
      %v1242 = vpop.permute.xlu0 %1241
      %1243 = vset.pattern.permute.xlu0 0
      %1244 = vperm.xlu0 %1243, %v1219
      %v1245 = vpop.permute.xlu0 %1244
      %1246 = vset.pattern.permute.xlu0 0
      %1247 = vperm.xlu0 %1246, %v1220
      %v1248 = vpop.permute.xlu0 %1247
      %vm1249 = vcmp.eq.s32.totalorder %v893, %v1239
      %vm1250 = vcmp.eq.s32.totalorder %v893, %v1242
      %vm1251 = vcmp.eq.s32.totalorder %v893, %v1245
      %vm1252 = vcmp.eq.s32.totalorder %v893, %v1248
      %v1253 = vsel %vm1249, 1, 0
      %v1254 = vsel %vm1250, 1, 0
      %v1255 = vsel %vm1251, 1, 0
      %v1256 = vsel %vm1252, 1, 0
      %v1257 = vcvt.s32.f32 %v1253
      %v1258 = vcvt.s32.f32 %v1254
      %v1259 = vcvt.s32.f32 %v1255
      %v1260 = vcvt.s32.f32 %v1256
      %1261 = vmatprep.subr.mxu0 0.0
      %1262 = vmatpush1.msra.mxu0 %v1221
      %1263 = vmatprep.subr.mxu0 0.0
      %1264 = vmatpush1.msra.mxu0 %v1222
      %1265 = vmatprep.subr.mxu0 0.0
      %1266 = vmatpush1.msra.mxu0 %v1223
      %1267 = vmatprep.subr.mxu0 0.0
      %1268 = vmatpush1.msra.mxu0 %v1224
      %1269 = vmatprep.subr.mxu0 0.0
      %1270 = vmatpush1.msra.mxu0 %v1225
      %1271 = vmatprep.subr.mxu0 0.0
      %1272 = vmatpush1.msra.mxu0 %v1226
      %1273 = vmatprep.subr.mxu0 0.0
      %1274 = vmatpush1.msra.mxu0 %v1227
      %1275 = vmatprep.subr.mxu0 0.0
      %1276 = vmatpush1.msra.mxu0 %v1228
      %1277 = vmatprep.subr.mxu0 0.0
      %1278 = vmatpush1.msra.mxu0 %v1229
      %1279 = vmatprep.subr.mxu0 0.0
      %1280 = vmatpush1.msra.mxu0 %v1230
      %1281 = vmatprep.subr.mxu0 0.0
      %1282 = vmatpush1.msra.mxu0 %v1231
      %1283 = vmatprep.subr.mxu0 0.0
      %1284 = vmatpush1.msra.mxu0 %v1232
      %1285 = vmatprep.subr.mxu0 0.0
      %1286 = vmatpush1.msra.mxu0 %v1233
      %1287 = vmatprep.subr.mxu0 0.0
      %1288 = vmatpush1.msra.mxu0 %v1234
      %1289 = vmatprep.subr.mxu0 0.0
      %1290 = vmatpush1.msra.mxu0 %v1235
      %1291 = vmatprep.subr.mxu0 0.0
      %1292 = vmatpush1.msra.mxu0 %v1236
      %1293 = vmatprep.subr.mxu0 0.0
      %1294 = vmatpush1.msra.mxu0 0.0
      %1295 = vmatprep.subr.mxu0 0.0
      %1296 = vmatpush1.msra.mxu0 0.0
      %1297 = vmatprep.subr.mxu0 0.0
      %1298 = vmatpush1.msra.mxu0 0.0
      %1299 = vmatprep.subr.mxu0 0.0
      %1300 = vmatpush1.msra.mxu0 0.0
      %1301 = vmatprep.subr.mxu0 0.0
      %1302 = vmatpush1.msra.mxu0 0.0
      %1303 = vmatprep.subr.mxu0 0.0
      %1304 = vmatpush1.msra.mxu0 0.0
      %1305 = vmatprep.subr.mxu0 0.0
      %1306 = vmatpush1.msra.mxu0 0.0
      %1307 = vmatprep.subr.mxu0 0.0
      %1308 = vmatpush1.msra.mxu0 0.0
      %1309 = vmatprep.subr.mxu0 0.0
      %1310 = vmatpush1.msra.mxu0 0.0
      %1311 = vmatprep.subr.mxu0 0.0
      %1312 = vmatpush1.msra.mxu0 0.0
      %1313 = vmatprep.subr.mxu0 0.0
      %1314 = vmatpush1.msra.mxu0 0.0
      %1315 = vmatprep.subr.mxu0 0.0
      %1316 = vmatpush1.msra.mxu0 0.0
      %1317 = vmatprep.subr.mxu0 0.0
      %1318 = vmatpush1.msra.mxu0 0.0
      %1319 = vmatprep.subr.mxu0 0.0
      %1320 = vmatpush1.msra.mxu0 0.0
      %1321 = vmatprep.subr.mxu0 0.0
      %1322 = vmatpush1.msra.mxu0 0.0
      %1323 = vmatprep.subr.mxu0 0.0
      %1324 = vmatpush1.msra.mxu0 0.0
      %1325 = vmatprep.mubr.f32.mxu0 0.0
      %1326 = vmatmul.mubr.f32.gmra.mrb[0].mxu0 %v1257
      %v1327 = vpop.f32.mrb[0].mxu0
      %v1328 = vadd.f32 0.0, %v1327
      %v1329 = vpop.f32.mrb[0].mxu0
      %1330 = vmatprep.mubr.f32.mxu0 0.0
      %1331 = vmatmul.mubr.f32.gmra.mrb[0].mxu0 %v1258
      %v1332 = vpop.f32.mrb[0].mxu0
      %v1333 = vadd.f32 0.0, %v1332
      %v1334 = vpop.f32.mrb[0].mxu0
      %1335 = vmatprep.mubr.f32.mxu0 0.0
      %1336 = vmatmul.mubr.f32.gmra.mrb[0].mxu0 %v1259
      %v1337 = vpop.f32.mrb[0].mxu0
      %v1338 = vadd.f32 0.0, %v1337
      %v1339 = vpop.f32.mrb[0].mxu0
      %1340 = vmatprep.mubr.f32.mxu0 0.0
      %1341 = vmatmul.mubr.f32.gmra.mrb[0].mxu0 %v1260
      %v1342 = vpop.f32.mrb[0].mxu0
      %v1343 = vadd.f32 0.0, %v1342
      %v1344 = vpop.f32.mrb[0].mxu0
      %1345 = vdwg.mxu0
      %v1346 = vld [vmem:[%s13] sm:$0xff]
      %v1347 = vld [vmem:[%s13 + $0x8] sm:$0xff]
      %v1348 = vld [vmem:[%s13 + $0x10] sm:$0xff]
      %v1349 = vld [vmem:[%s13 + $0x18] sm:$0xff]
      %v1350 = vld [vmem:[%s13 + $0x20] sm:$0xff]
      %v1351 = vld [vmem:[%s13 + $0x28] sm:$0xff]
      %v1352 = vld [vmem:[%s13 + $0x30] sm:$0xff]
      %v1353 = vld [vmem:[%s13 + $0x38] sm:$0xff]
      %v1354 = vld [vmem:[%s13 + $0x40] sm:$0xff]
      %v1355 = vld [vmem:[%s13 + $0x48] sm:$0xff]
      %v1356 = vld [vmem:[%s13 + $0x50] sm:$0xff]
      %v1357 = vld [vmem:[%s13 + $0x58] sm:$0xff]
      %v1358 = vld [vmem:[%s13 + $0x60] sm:$0xff]
      %v1359 = vld [vmem:[%s13 + $0x68] sm:$0xff]
      %v1360 = vld [vmem:[%s13 + $0x70] sm:$0xff]
      %v1361 = vld [vmem:[%s13 + $0x78] sm:$0xff]
      %1362 = vmatprep.subr.mxu0 0.0
      %1363 = vmatpush1.msra.mxu0 %v1346
      %1364 = vmatprep.subr.mxu0 0.0
      %1365 = vmatpush1.msra.mxu0 %v1347
      %1366 = vmatprep.subr.mxu0 0.0
      %1367 = vmatpush1.msra.mxu0 %v1348
      %1368 = vmatprep.subr.mxu0 0.0
      %1369 = vmatpush1.msra.mxu0 %v1349
      %1370 = vmatprep.subr.mxu0 0.0
      %1371 = vmatpush1.msra.mxu0 %v1350
      %1372 = vmatprep.subr.mxu0 0.0
      %1373 = vmatpush1.msra.mxu0 %v1351
      %1374 = vmatprep.subr.mxu0 0.0
      %1375 = vmatpush1.msra.mxu0 %v1352
      %1376 = vmatprep.subr.mxu0 0.0
      %1377 = vmatpush1.msra.mxu0 %v1353
      %1378 = vmatprep.subr.mxu0 0.0
      %1379 = vmatpush1.msra.mxu0 %v1354
      %1380 = vmatprep.subr.mxu0 0.0
      %1381 = vmatpush1.msra.mxu0 %v1355
      %1382 = vmatprep.subr.mxu0 0.0
      %1383 = vmatpush1.msra.mxu0 %v1356
      %1384 = vmatprep.subr.mxu0 0.0
      %1385 = vmatpush1.msra.mxu0 %v1357
      %1386 = vmatprep.subr.mxu0 0.0
      %1387 = vmatpush1.msra.mxu0 %v1358
      %1388 = vmatprep.subr.mxu0 0.0
      %1389 = vmatpush1.msra.mxu0 %v1359
      %1390 = vmatprep.subr.mxu0 0.0
      %1391 = vmatpush1.msra.mxu0 %v1360
      %1392 = vmatprep.subr.mxu0 0.0
      %1393 = vmatpush1.msra.mxu0 %v1361
      %1394 = vmatprep.subr.mxu0 0.0
      %1395 = vmatpush1.msra.mxu0 0.0
      %1396 = vmatprep.subr.mxu0 0.0
      %1397 = vmatpush1.msra.mxu0 0.0
      %1398 = vmatprep.subr.mxu0 0.0
      %1399 = vmatpush1.msra.mxu0 0.0
      %1400 = vmatprep.subr.mxu0 0.0
      %1401 = vmatpush1.msra.mxu0 0.0
      %1402 = vmatprep.subr.mxu0 0.0
      %1403 = vmatpush1.msra.mxu0 0.0
      %1404 = vmatprep.subr.mxu0 0.0
      %1405 = vmatpush1.msra.mxu0 0.0
      %1406 = vmatprep.subr.mxu0 0.0
      %1407 = vmatpush1.msra.mxu0 0.0
      %1408 = vmatprep.subr.mxu0 0.0
      %1409 = vmatpush1.msra.mxu0 0.0
      %1410 = vmatprep.subr.mxu0 0.0
      %1411 = vmatpush1.msra.mxu0 0.0
      %1412 = vmatprep.subr.mxu0 0.0
      %1413 = vmatpush1.msra.mxu0 0.0
      %1414 = vmatprep.subr.mxu0 0.0
      %1415 = vmatpush1.msra.mxu0 0.0
      %1416 = vmatprep.subr.mxu0 0.0
      %1417 = vmatpush1.msra.mxu0 0.0
      %1418 = vmatprep.subr.mxu0 0.0
      %1419 = vmatpush1.msra.mxu0 0.0
      %1420 = vmatprep.subr.mxu0 0.0
      %1421 = vmatpush1.msra.mxu0 0.0
      %1422 = vmatprep.subr.mxu0 0.0
      %1423 = vmatpush1.msra.mxu0 0.0
      %1424 = vmatprep.subr.mxu0 0.0
      %1425 = vmatpush1.msra.mxu0 0.0
      %1426 = vmatprep.mubr.f32.mxu0 0.0
      %1427 = vmatmul.mubr.f32.gmra.mrb[0].mxu0 %v1328
      %v1428 = vpop.f32.mrb[0].mxu0
      %v1429 = vadd.f32 %v1199, %v1428
      %v1430 = vpop.f32.mrb[0].mxu0
      %1431 = vmatprep.mubr.f32.mxu0 0.0
      %1432 = vmatmul.mubr.f32.gmra.mrb[0].mxu0 %v1333
      %v1433 = vpop.f32.mrb[0].mxu0
      %v1434 = vadd.f32 %v1204, %v1433
      %v1435 = vpop.f32.mrb[0].mxu0
      %1436 = vmatprep.mubr.f32.mxu0 0.0
      %1437 = vmatmul.mubr.f32.gmra.mrb[0].mxu0 %v1338
      %v1438 = vpop.f32.mrb[0].mxu0
      %v1439 = vadd.f32 %v1209, %v1438
      %v1440 = vpop.f32.mrb[0].mxu0
      %1441 = vmatprep.mubr.f32.mxu0 0.0
      %1442 = vmatmul.mubr.f32.gmra.mrb[0].mxu0 %v1343
      %v1443 = vpop.f32.mrb[0].mxu0
      %v1444 = vadd.f32 %v1214, %v1443
      %v1445 = vpop.f32.mrb[0].mxu0
      %1446 = vdwg.mxu0
      %v1447 = vld [vmem:[%s15] sm:$0x1]
      %v1449 = vlaneseq
      %v1450 = vshrl.u32 %v1449, 7
      %v1451 = vsub.s32 0, %v1450
      %v1452 = vrot.slane %v1447, %v1451
      %v1454 = vadd.f32 %v1429, %v1452
      %v1455 = vadd.f32 %v1434, %v1452
      %v1456 = vadd.f32 %v1439, %v1452
      %v1457 = vadd.f32 %v1444, %v1452
      %v1458 = vtanh.pop %v1454
      %v1459 = vtanh.pop %v1455
      %v1460 = vtanh.pop %v1456
      %v1461 = vtanh.pop %v1457
      %v1462 = vld [vmem:[%s861] sm:$0xff]
      %v1463 = vld [vmem:[%s861 + $0x8] sm:$0xff]
      %v1464 = vld [vmem:[%s861 + $0x10] sm:$0xff]
      %v1465 = vld [vmem:[%s861 + $0x18] sm:$0xff]
      %1466 = vmatprep.subr.mxu0 0.0
      %1467 = vmatpush1.xpose.msra.mxu0 %v1111
      %1468 = vmatprep.subr.mxu0 0.0
      %1469 = vmatpush1.xpose.msra.mxu0 %v1112
      %1470 = vmatprep.subr.mxu0 0.0
      %1471 = vmatpush1.xpose.msra.mxu0 %v1113
      %1472 = vmatprep.subr.mxu0 0.0
      %1473 = vmatpush1.xpose.msra.mxu0 %v1114
      %1474 = vmatprep.subr.mxu0 0.0
      %1475 = vmatpush1.xpose.msra.mxu0 0.0
      %1476 = vmatprep.subr.mxu0 0.0
      %1477 = vmatpush1.xpose.msra.mxu0 0.0
      %1478 = vmatprep.subr.mxu0 0.0
      %1479 = vmatpush1.xpose.msra.mxu0 0.0
      %1480 = vmatprep.subr.mxu0 0.0
      %1481 = vmatpush1.xpose.msra.mxu0 0.0
      %1482 = vmatprep.subr.mxu0 0.0
      %1483 = vmatpush1.xpose.msra.mxu0 0.0
      %1484 = vmatprep.subr.mxu0 0.0
      %1485 = vmatpush1.xpose.msra.mxu0 0.0
      %1486 = vmatprep.subr.mxu0 0.0
      %1487 = vmatpush1.xpose.msra.mxu0 0.0
      %1488 = vmatprep.subr.mxu0 0.0
      %1489 = vmatpush1.xpose.msra.mxu0 0.0
      %1490 = vmatprep.subr.mxu0 0.0
      %1491 = vmatpush1.xpose.msra.mxu0 0.0
      %1492 = vmatprep.subr.mxu0 0.0
      %1493 = vmatpush1.xpose.msra.mxu0 0.0
      %1494 = vmatprep.subr.mxu0 0.0
      %1495 = vmatpush1.xpose.msra.mxu0 0.0
      %1496 = vmatprep.subr.mxu0 0.0
      %1497 = vmatpush1.xpose.msra.mxu0 0.0
      %1498 = vmatprep.subr.mxu0 0.0
      %1499 = vmatpush1.xpose.msra.mxu0 0.0
      %1500 = vmatprep.subr.mxu0 0.0
      %1501 = vmatpush1.xpose.msra.mxu0 0.0
      %1502 = vmatprep.subr.mxu0 0.0
      %1503 = vmatpush1.xpose.msra.mxu0 0.0
      %1504 = vmatprep.subr.mxu0 0.0
      %1505 = vmatpush1.xpose.msra.mxu0 0.0
      %1506 = vmatprep.subr.mxu0 0.0
      %1507 = vmatpush1.xpose.msra.mxu0 0.0
      %1508 = vmatprep.subr.mxu0 0.0
      %1509 = vmatpush1.xpose.msra.mxu0 0.0
      %1510 = vmatprep.subr.mxu0 0.0
      %1511 = vmatpush1.xpose.msra.mxu0 0.0
      %1512 = vmatprep.subr.mxu0 0.0
      %1513 = vmatpush1.xpose.msra.mxu0 0.0
      %1514 = vmatprep.subr.mxu0 0.0
      %1515 = vmatpush1.xpose.msra.mxu0 0.0
      %1516 = vmatprep.subr.mxu0 0.0
      %1517 = vmatpush1.xpose.msra.mxu0 0.0
      %1518 = vmatprep.subr.mxu0 0.0
      %1519 = vmatpush1.xpose.msra.mxu0 0.0
      %1520 = vmatprep.subr.mxu0 0.0
      %1521 = vmatpush1.xpose.msra.mxu0 0.0
      %1522 = vmatprep.subr.mxu0 0.0
      %1523 = vmatpush1.xpose.msra.mxu0 0.0
      %1524 = vmatprep.subr.mxu0 0.0
      %1525 = vmatpush1.xpose.msra.mxu0 0.0
      %1526 = vmatprep.subr.mxu0 0.0
      %1527 = vmatpush1.xpose.msra.mxu0 0.0
      %1528 = vmatprep.subr.mxu0 0.0
      %1529 = vmatpush1.xpose.msra.mxu0 0.0
      %1530 = vmatprep.mubr.f32.mxu0 0.0
      %1531 = vmatmul.mubr.f32.gmra.mrb[0].mxu0 %v1458
      %v1532 = vpop.f32.mrb[0].mxu0
      %v1533 = vadd.f32 %v1462, %v1532
      %v1534 = vpop.f32.mrb[0].mxu0
      %1535 = vmatprep.mubr.f32.mxu0 0.0
      %1536 = vmatmul.mubr.f32.gmra.mrb[0].mxu0 %v1459
      %v1537 = vpop.f32.mrb[0].mxu0
      %v1538 = vadd.f32 %v1463, %v1537
      %v1539 = vpop.f32.mrb[0].mxu0
      %1540 = vmatprep.mubr.f32.mxu0 0.0
      %1541 = vmatmul.mubr.f32.gmra.mrb[0].mxu0 %v1460
      %v1542 = vpop.f32.mrb[0].mxu0
      %v1543 = vadd.f32 %v1464, %v1542
      %v1544 = vpop.f32.mrb[0].mxu0
      %1545 = vmatprep.mubr.f32.mxu0 0.0
      %1546 = vmatmul.mubr.f32.gmra.mrb[0].mxu0 %v1461
      %v1547 = vpop.f32.mrb[0].mxu0
      %v1548 = vadd.f32 %v1465, %v1547
      %v1549 = vpop.f32.mrb[0].mxu0
      %1550 = vdwg.mxu0
      %v1551 = vsel %vm1119, %v1533, -inf
      %1552 = vmax.xlane.f32.xlu0 %v1551
      %v1553 = vpop.xlane.xlu0 %1552
      %v1554 = vsel %vm1119, %v1538, -inf
      %1555 = vmax.xlane.f32.xlu0 %v1554
      %v1556 = vpop.xlane.xlu0 %1555
      %v1557 = vsel %vm1119, %v1543, -inf
      %1558 = vmax.xlane.f32.xlu0 %v1557
      %v1559 = vpop.xlane.xlu0 %1558
      %v1560 = vsel %vm1119, %v1548, -inf
      %1561 = vmax.xlane.f32.xlu0 %v1560
      %v1562 = vpop.xlane.xlu0 %1561
      %v1563 = vsub.f32 %v1533, %v1553
      %v1564 = vsub.f32 %v1538, %v1556
      %v1565 = vsub.f32 %v1543, %v1559
      %v1566 = vsub.f32 %v1548, %v1562
      %v1567 = vmul.f32 %v1563, 1.442695
      %v1568 = vpow.pop %v1567
      %v1569 = vmul.f32 %v1564, 1.442695
      %v1570 = vpow.pop %v1569
      %v1571 = vmul.f32 %v1565, 1.442695
      %v1572 = vpow.pop %v1571
      %v1573 = vmul.f32 %v1566, 1.442695
      %v1574 = vpow.pop %v1573
      %v1575 = vsel %vm1119, %v1568, 0.0
      %1576 = vadd.xlane.f32.xlu0 %v1575
      %v1577 = vpop.xlane.xlu0 %1576
      %v1578 = vsel %vm1119, %v1570, 0.0
      %1579 = vadd.xlane.f32.xlu0 %v1578
      %v1580 = vpop.xlane.xlu0 %1579
      %v1581 = vsel %vm1119, %v1572, 0.0
      %1582 = vadd.xlane.f32.xlu0 %v1581
      %v1583 = vpop.xlane.xlu0 %1582
      %v1584 = vsel %vm1119, %v1574, 0.0
      %1585 = vadd.xlane.f32.xlu0 %v1584
      %v1586 = vpop.xlane.xlu0 %1585
      %v1587 = vrcp.pop %v1577
      %v1588 = vrcp.pop %v1580
      %v1589 = vrcp.pop %v1583
      %v1590 = vrcp.pop %v1586
      %v1591 = vmul.f32 %v1568, %v1587
      %v1592 = vmul.f32 %v1570, %v1588
      %v1593 = vmul.f32 %v1572, %v1589
      %v1594 = vmul.f32 %v1574, %v1590
      %v1596 = vsel %vm1119, %v1591, 0
      %v1599 = vsel %vm1119, %v1592, 0
      %v1602 = vsel %vm1119, %v1593, 0
      %v1605 = vsel %vm1119, %v1594, 0
      %1607 = vmatprep.subr.mxu0 0.0
      %1608 = vmatpush1.msra.mxu0 %v1111
      %1609 = vmatprep.subr.mxu0 0.0
      %1610 = vmatpush1.msra.mxu0 %v1112
      %1611 = vmatprep.subr.mxu0 0.0
      %1612 = vmatpush1.msra.mxu0 %v1113
      %1613 = vmatprep.subr.mxu0 0.0
      %1614 = vmatpush1.msra.mxu0 %v1114
      %1615 = vmatprep.subr.mxu0 0.0
      %1616 = vmatpush1.msra.mxu0 0.0
      %1617 = vmatprep.subr.mxu0 0.0
      %1618 = vmatpush1.msra.mxu0 0.0
      %1619 = vmatprep.subr.mxu0 0.0
      %1620 = vmatpush1.msra.mxu0 0.0
      %1621 = vmatprep.subr.mxu0 0.0
      %1622 = vmatpush1.msra.mxu0 0.0
      %1623 = vmatprep.subr.mxu0 0.0
      %1624 = vmatpush1.msra.mxu0 0.0
      %1625 = vmatprep.subr.mxu0 0.0
      %1626 = vmatpush1.msra.mxu0 0.0
      %1627 = vmatprep.subr.mxu0 0.0
      %1628 = vmatpush1.msra.mxu0 0.0
      %1629 = vmatprep.subr.mxu0 0.0
      %1630 = vmatpush1.msra.mxu0 0.0
      %1631 = vmatprep.subr.mxu0 0.0
      %1632 = vmatpush1.msra.mxu0 0.0
      %1633 = vmatprep.subr.mxu0 0.0
      %1634 = vmatpush1.msra.mxu0 0.0
      %1635 = vmatprep.subr.mxu0 0.0
      %1636 = vmatpush1.msra.mxu0 0.0
      %1637 = vmatprep.subr.mxu0 0.0
      %1638 = vmatpush1.msra.mxu0 0.0
      %1639 = vmatprep.subr.mxu0 0.0
      %1640 = vmatpush1.msra.mxu0 0.0
      %1641 = vmatprep.subr.mxu0 0.0
      %1642 = vmatpush1.msra.mxu0 0.0
      %1643 = vmatprep.subr.mxu0 0.0
      %1644 = vmatpush1.msra.mxu0 0.0
      %1645 = vmatprep.subr.mxu0 0.0
      %1646 = vmatpush1.msra.mxu0 0.0
      %1647 = vmatprep.subr.mxu0 0.0
      %1648 = vmatpush1.msra.mxu0 0.0
      %1649 = vmatprep.subr.mxu0 0.0
      %1650 = vmatpush1.msra.mxu0 0.0
      %1651 = vmatprep.subr.mxu0 0.0
      %1652 = vmatpush1.msra.mxu0 0.0
      %1653 = vmatprep.subr.mxu0 0.0
      %1654 = vmatpush1.msra.mxu0 0.0
      %1655 = vmatprep.subr.mxu0 0.0
      %1656 = vmatpush1.msra.mxu0 0.0
      %1657 = vmatprep.subr.mxu0 0.0
      %1658 = vmatpush1.msra.mxu0 0.0
      %1659 = vmatprep.subr.mxu0 0.0
      %1660 = vmatpush1.msra.mxu0 0.0
      %1661 = vmatprep.subr.mxu0 0.0
      %1662 = vmatpush1.msra.mxu0 0.0
      %1663 = vmatprep.subr.mxu0 0.0
      %1664 = vmatpush1.msra.mxu0 0.0
      %1665 = vmatprep.subr.mxu0 0.0
      %1666 = vmatpush1.msra.mxu0 0.0
      %1667 = vmatprep.subr.mxu0 0.0
      %1668 = vmatpush1.msra.mxu0 0.0
      %1669 = vmatprep.subr.mxu0 0.0
      %1670 = vmatpush1.msra.mxu0 0.0
      %1671 = vmatprep.mubr.f32.mxu0 0.0
      %1672 = vmatmul.mubr.f32.gmra.mrb[0].mxu0 %v1596
      %v1673 = vpop.f32.mrb[0].mxu0
      %v1674 = vadd.f32 0.0, %v1673
      %v1675 = vpop.f32.mrb[0].mxu0
      %1676 = vmatprep.mubr.f32.mxu0 0.0
      %1677 = vmatmul.mubr.f32.gmra.mrb[0].mxu0 %v1599
      %v1678 = vpop.f32.mrb[0].mxu0
      %v1679 = vadd.f32 0.0, %v1678
      %v1680 = vpop.f32.mrb[0].mxu0
      %1681 = vmatprep.mubr.f32.mxu0 0.0
      %1682 = vmatmul.mubr.f32.gmra.mrb[0].mxu0 %v1602
      %v1683 = vpop.f32.mrb[0].mxu0
      %v1684 = vadd.f32 0.0, %v1683
      %v1685 = vpop.f32.mrb[0].mxu0
      %1686 = vmatprep.mubr.f32.mxu0 0.0
      %1687 = vmatmul.mubr.f32.gmra.mrb[0].mxu0 %v1605
      %v1688 = vpop.f32.mrb[0].mxu0
      %v1689 = vadd.f32 0.0, %v1688
      %v1690 = vpop.f32.mrb[0].mxu0
      %1691 = vdwg.mxu0
      %v1692 = vadd.f32 %v1458, %v1674
      %v1693 = vadd.f32 %v1459, %v1679
      %v1694 = vadd.f32 %v1460, %v1684
      %v1695 = vadd.f32 %v1461, %v1689
      %v1696 = vtanh.pop %v1692
      %v1697 = vtanh.pop %v1693
      %v1698 = vtanh.pop %v1694
      %v1699 = vtanh.pop %v1695
      %v1700 = vld [vmem:[%s14] sm:$0xff]
      %v1701 = vld [vmem:[%s14 + $0x8] sm:$0xff]
      %v1702 = vld [vmem:[%s14 + $0x10] sm:$0xff]
      %v1703 = vld [vmem:[%s14 + $0x18] sm:$0xff]
      %v1704 = vld [vmem:[%s14 + $0x20] sm:$0xff]
      %v1705 = vld [vmem:[%s14 + $0x28] sm:$0xff]
      %v1706 = vld [vmem:[%s14 + $0x30] sm:$0xff]
      %v1707 = vld [vmem:[%s14 + $0x38] sm:$0xff]
      %v1708 = vld [vmem:[%s14 + $0x40] sm:$0xff]
      %v1709 = vld [vmem:[%s14 + $0x48] sm:$0xff]
      %v1710 = vld [vmem:[%s14 + $0x50] sm:$0xff]
      %v1711 = vld [vmem:[%s14 + $0x58] sm:$0xff]
      %v1712 = vld [vmem:[%s14 + $0x60] sm:$0xff]
      %v1713 = vld [vmem:[%s14 + $0x68] sm:$0xff]
      %v1714 = vld [vmem:[%s14 + $0x70] sm:$0xff]
      %v1715 = vld [vmem:[%s14 + $0x78] sm:$0xff]
      %1716 = vmatprep.subr.mxu0 0.0
      %1717 = vmatpush1.msra.mxu0 %v1700
      %1718 = vmatprep.subr.mxu0 0.0
      %1719 = vmatpush1.msra.mxu0 %v1701
      %1720 = vmatprep.subr.mxu0 0.0
      %1721 = vmatpush1.msra.mxu0 %v1702
      %1722 = vmatprep.subr.mxu0 0.0
      %1723 = vmatpush1.msra.mxu0 %v1703
      %1724 = vmatprep.subr.mxu0 0.0
      %1725 = vmatpush1.msra.mxu0 %v1704
      %1726 = vmatprep.subr.mxu0 0.0
      %1727 = vmatpush1.msra.mxu0 %v1705
      %1728 = vmatprep.subr.mxu0 0.0
      %1729 = vmatpush1.msra.mxu0 %v1706
      %1730 = vmatprep.subr.mxu0 0.0
      %1731 = vmatpush1.msra.mxu0 %v1707
      %1732 = vmatprep.subr.mxu0 0.0
      %1733 = vmatpush1.msra.mxu0 %v1708
      %1734 = vmatprep.subr.mxu0 0.0
      %1735 = vmatpush1.msra.mxu0 %v1709
      %1736 = vmatprep.subr.mxu0 0.0
      %1737 = vmatpush1.msra.mxu0 %v1710
      %1738 = vmatprep.subr.mxu0 0.0
      %1739 = vmatpush1.msra.mxu0 %v1711
      %1740 = vmatprep.subr.mxu0 0.0
      %1741 = vmatpush1.msra.mxu0 %v1712
      %1742 = vmatprep.subr.mxu0 0.0
      %1743 = vmatpush1.msra.mxu0 %v1713
      %1744 = vmatprep.subr.mxu0 0.0
      %1745 = vmatpush1.msra.mxu0 %v1714
      %1746 = vmatprep.subr.mxu0 0.0
      %1747 = vmatpush1.msra.mxu0 %v1715
      %1748 = vmatprep.subr.mxu0 0.0
      %1749 = vmatpush1.msra.mxu0 0.0
      %1750 = vmatprep.subr.mxu0 0.0
      %1751 = vmatpush1.msra.mxu0 0.0
      %1752 = vmatprep.subr.mxu0 0.0
      %1753 = vmatpush1.msra.mxu0 0.0
      %1754 = vmatprep.subr.mxu0 0.0
      %1755 = vmatpush1.msra.mxu0 0.0
      %1756 = vmatprep.subr.mxu0 0.0
      %1757 = vmatpush1.msra.mxu0 0.0
      %1758 = vmatprep.subr.mxu0 0.0
      %1759 = vmatpush1.msra.mxu0 0.0
      %1760 = vmatprep.subr.mxu0 0.0
      %1761 = vmatpush1.msra.mxu0 0.0
      %1762 = vmatprep.subr.mxu0 0.0
      %1763 = vmatpush1.msra.mxu0 0.0
      %1764 = vmatprep.subr.mxu0 0.0
      %1765 = vmatpush1.msra.mxu0 0.0
      %1766 = vmatprep.subr.mxu0 0.0
      %1767 = vmatpush1.msra.mxu0 0.0
      %1768 = vmatprep.subr.mxu0 0.0
      %1769 = vmatpush1.msra.mxu0 0.0
      %1770 = vmatprep.subr.mxu0 0.0
      %1771 = vmatpush1.msra.mxu0 0.0
      %1772 = vmatprep.subr.mxu0 0.0
      %1773 = vmatpush1.msra.mxu0 0.0
      %1774 = vmatprep.subr.mxu0 0.0
      %1775 = vmatpush1.msra.mxu0 0.0
      %1776 = vmatprep.subr.mxu0 0.0
      %1777 = vmatpush1.msra.mxu0 0.0
      %1778 = vmatprep.subr.mxu0 0.0
      %1779 = vmatpush1.msra.mxu0 0.0
      %1780 = vmatprep.mubr.f32.mxu0 0.0
      %1781 = vmatmul.mubr.f32.gmra.mrb[0].mxu0 %v1696
      %v1782 = vpop.f32.mrb[0].mxu0
      %v1783 = vadd.f32 0.0, %v1782
      %v1784 = vpop.f32.mrb[0].mxu0
      %1785 = vmatprep.mubr.f32.mxu0 0.0
      %1786 = vmatmul.mubr.f32.gmra.mrb[0].mxu0 %v1697
      %v1787 = vpop.f32.mrb[0].mxu0
      %v1788 = vadd.f32 0.0, %v1787
      %v1789 = vpop.f32.mrb[0].mxu0
      %1790 = vmatprep.mubr.f32.mxu0 0.0
      %1791 = vmatmul.mubr.f32.gmra.mrb[0].mxu0 %v1698
      %v1792 = vpop.f32.mrb[0].mxu0
      %v1793 = vadd.f32 0.0, %v1792
      %v1794 = vpop.f32.mrb[0].mxu0
      %1795 = vmatprep.mubr.f32.mxu0 0.0
      %1796 = vmatmul.mubr.f32.gmra.mrb[0].mxu0 %v1699
      %v1797 = vpop.f32.mrb[0].mxu0
      %v1798 = vadd.f32 0.0, %v1797
      %v1799 = vpop.f32.mrb[0].mxu0
      %1800 = vdwg.mxu0
      %v1801 = vld [vmem:[%s844] sm:$0xff]
      %v1802 = vld [vmem:[%s16] sm:$0xff]
      %v1803 = vld [vmem:[%s16 + $0x8] sm:$0xff]
      %v1804 = vld [vmem:[%s16 + $0x10] sm:$0xff]
      %v1805 = vld [vmem:[%s16 + $0x18] sm:$0xff]
      %v1806 = vld [vmem:[%s16 + $0x20] sm:$0xff]
      %v1807 = vld [vmem:[%s16 + $0x28] sm:$0xff]
      %v1808 = vld [vmem:[%s16 + $0x30] sm:$0xff]
      %v1809 = vld [vmem:[%s16 + $0x38] sm:$0xff]
      %v1810 = vld [vmem:[%s16 + $0x40] sm:$0xff]
      %v1811 = vld [vmem:[%s16 + $0x48] sm:$0xff]
      %v1812 = vld [vmem:[%s16 + $0x50] sm:$0xff]
      %v1813 = vld [vmem:[%s16 + $0x58] sm:$0xff]
      %v1814 = vld [vmem:[%s16 + $0x60] sm:$0xff]
      %v1815 = vld [vmem:[%s16 + $0x68] sm:$0xff]
      %v1816 = vld [vmem:[%s16 + $0x70] sm:$0xff]
      %v1817 = vld [vmem:[%s16 + $0x78] sm:$0xff]
      %1818 = vset.pattern.permute.xlu0 0
      %1819 = vperm.xlu0 %1818, %v1801
      %v1820 = vpop.permute.xlu0 %1819
      %vm1821 = vcmp.eq.s32.totalorder %v893, %v1820
      %v1822 = vsel %vm1821, 1, 0
      %v1823 = vcvt.s32.f32 %v1822
      %1824 = vmatprep.subr.mxu0 0.0
      %1825 = vmatpush1.msra.mxu0 %v1802
      %1826 = vmatprep.subr.mxu0 0.0
      %1827 = vmatpush1.msra.mxu0 %v1803
      %1828 = vmatprep.subr.mxu0 0.0
      %1829 = vmatpush1.msra.mxu0 %v1804
      %1830 = vmatprep.subr.mxu0 0.0
      %1831 = vmatpush1.msra.mxu0 %v1805
      %1832 = vmatprep.subr.mxu0 0.0
      %1833 = vmatpush1.msra.mxu0 %v1806
      %1834 = vmatprep.subr.mxu0 0.0
      %1835 = vmatpush1.msra.mxu0 %v1807
      %1836 = vmatprep.subr.mxu0 0.0
      %1837 = vmatpush1.msra.mxu0 %v1808
      %1838 = vmatprep.subr.mxu0 0.0
      %1839 = vmatpush1.msra.mxu0 %v1809
      %1840 = vmatprep.subr.mxu0 0.0
      %1841 = vmatpush1.msra.mxu0 %v1810
      %1842 = vmatprep.subr.mxu0 0.0
      %1843 = vmatpush1.msra.mxu0 %v1811
      %1844 = vmatprep.subr.mxu0 0.0
      %1845 = vmatpush1.msra.mxu0 %v1812
      %1846 = vmatprep.subr.mxu0 0.0
      %1847 = vmatpush1.msra.mxu0 %v1813
      %1848 = vmatprep.subr.mxu0 0.0
      %1849 = vmatpush1.msra.mxu0 %v1814
      %1850 = vmatprep.subr.mxu0 0.0
      %1851 = vmatpush1.msra.mxu0 %v1815
      %1852 = vmatprep.subr.mxu0 0.0
      %1853 = vmatpush1.msra.mxu0 %v1816
      %1854 = vmatprep.subr.mxu0 0.0
      %1855 = vmatpush1.msra.mxu0 %v1817
      %1856 = vmatprep.subr.mxu0 0.0
      %1857 = vmatpush1.msra.mxu0 0.0
      %1858 = vmatprep.subr.mxu0 0.0
      %1859 = vmatpush1.msra.mxu0 0.0
      %1860 = vmatprep.subr.mxu0 0.0
      %1861 = vmatpush1.msra.mxu0 0.0
      %1862 = vmatprep.subr.mxu0 0.0
      %1863 = vmatpush1.msra.mxu0 0.0
      %1864 = vmatprep.subr.mxu0 0.0
      %1865 = vmatpush1.msra.mxu0 0.0
      %1866 = vmatprep.subr.mxu0 0.0
      %1867 = vmatpush1.msra.mxu0 0.0
      %1868 = vmatprep.subr.mxu0 0.0
      %1869 = vmatpush1.msra.mxu0 0.0
      %1870 = vmatprep.subr.mxu0 0.0
      %1871 = vmatpush1.msra.mxu0 0.0
      %1872 = vmatprep.subr.mxu0 0.0
      %1873 = vmatpush1.msra.mxu0 0.0
      %1874 = vmatprep.subr.mxu0 0.0
      %1875 = vmatpush1.msra.mxu0 0.0
      %1876 = vmatprep.subr.mxu0 0.0
      %1877 = vmatpush1.msra.mxu0 0.0
      %1878 = vmatprep.subr.mxu0 0.0
      %1879 = vmatpush1.msra.mxu0 0.0
      %1880 = vmatprep.subr.mxu0 0.0
      %1881 = vmatpush1.msra.mxu0 0.0
      %1882 = vmatprep.subr.mxu0 0.0
      %1883 = vmatpush1.msra.mxu0 0.0
      %1884 = vmatprep.subr.mxu0 0.0
      %1885 = vmatpush1.msra.mxu0 0.0
      %1886 = vmatprep.subr.mxu0 0.0
      %1887 = vmatpush1.msra.mxu0 0.0
      %1888 = vmatprep.mubr.f32.mxu0 0.0
      %1889 = vmatmul.mubr.f32.gmra.mrb[0].mxu0 %v1823
      %v1890 = vpop.f32.mrb[0].mxu0
      %v1891 = vadd.f32 0.0, %v1890
      %v1892 = vpop.f32.mrb[0].mxu0
      %1893 = vdwg.mxu0
      %v1894 = vld [vmem:[%s17] sm:$0xff]
      %v1895 = vld [vmem:[%s17 + $0x8] sm:$0xff]
      %v1896 = vld [vmem:[%s17 + $0x10] sm:$0xff]
      %v1897 = vld [vmem:[%s17 + $0x18] sm:$0xff]
      %v1898 = vld [vmem:[%s17 + $0x20] sm:$0xff]
      %v1899 = vld [vmem:[%s17 + $0x28] sm:$0xff]
      %v1900 = vld [vmem:[%s17 + $0x30] sm:$0xff]
      %v1901 = vld [vmem:[%s17 + $0x38] sm:$0xff]
      %v1902 = vld [vmem:[%s17 + $0x40] sm:$0xff]
      %v1903 = vld [vmem:[%s17 + $0x48] sm:$0xff]
      %v1904 = vld [vmem:[%s17 + $0x50] sm:$0xff]
      %v1905 = vld [vmem:[%s17 + $0x58] sm:$0xff]
      %v1906 = vld [vmem:[%s17 + $0x60] sm:$0xff]
      %v1907 = vld [vmem:[%s17 + $0x68] sm:$0xff]
      %v1908 = vld [vmem:[%s17 + $0x70] sm:$0xff]
      %v1909 = vld [vmem:[%s17 + $0x78] sm:$0xff]
      %v1910 = vld [vmem:[%s18] sm:$0x1]
      %v1912 = vlaneseq
      %v1913 = vshrl.u32 %v1912, 7
      %v1914 = vsub.s32 0, %v1913
      %v1915 = vrot.slane %v1910, %v1914
      %1917 = vmatprep.subr.mxu0 0.0
      %1918 = vmatpush1.msra.mxu0 %v1894
      %1919 = vmatprep.subr.mxu0 0.0
      %1920 = vmatpush1.msra.mxu0 %v1895
      %1921 = vmatprep.subr.mxu0 0.0
      %1922 = vmatpush1.msra.mxu0 %v1896
      %1923 = vmatprep.subr.mxu0 0.0
      %1924 = vmatpush1.msra.mxu0 %v1897
      %1925 = vmatprep.subr.mxu0 0.0
      %1926 = vmatpush1.msra.mxu0 %v1898
      %1927 = vmatprep.subr.mxu0 0.0
      %1928 = vmatpush1.msra.mxu0 %v1899
      %1929 = vmatprep.subr.mxu0 0.0
      %1930 = vmatpush1.msra.mxu0 %v1900
      %1931 = vmatprep.subr.mxu0 0.0
      %1932 = vmatpush1.msra.mxu0 %v1901
      %1933 = vmatprep.subr.mxu0 0.0
      %1934 = vmatpush1.msra.mxu0 %v1902
      %1935 = vmatprep.subr.mxu0 0.0
      %1936 = vmatpush1.msra.mxu0 %v1903
      %1937 = vmatprep.subr.mxu0 0.0
      %1938 = vmatpush1.msra.mxu0 %v1904
      %1939 = vmatprep.subr.mxu0 0.0
      %1940 = vmatpush1.msra.mxu0 %v1905
      %1941 = vmatprep.subr.mxu0 0.0
      %1942 = vmatpush1.msra.mxu0 %v1906
      %1943 = vmatprep.subr.mxu0 0.0
      %1944 = vmatpush1.msra.mxu0 %v1907
      %1945 = vmatprep.subr.mxu0 0.0
      %1946 = vmatpush1.msra.mxu0 %v1908
      %1947 = vmatprep.subr.mxu0 0.0
      %1948 = vmatpush1.msra.mxu0 %v1909
      %1949 = vmatprep.subr.mxu0 0.0
      %1950 = vmatpush1.msra.mxu0 0.0
      %1951 = vmatprep.subr.mxu0 0.0
      %1952 = vmatpush1.msra.mxu0 0.0
      %1953 = vmatprep.subr.mxu0 0.0
      %1954 = vmatpush1.msra.mxu0 0.0
      %1955 = vmatprep.subr.mxu0 0.0
      %1956 = vmatpush1.msra.mxu0 0.0
      %1957 = vmatprep.subr.mxu0 0.0
      %1958 = vmatpush1.msra.mxu0 0.0
      %1959 = vmatprep.subr.mxu0 0.0
      %1960 = vmatpush1.msra.mxu0 0.0
      %1961 = vmatprep.subr.mxu0 0.0
      %1962 = vmatpush1.msra.mxu0 0.0
      %1963 = vmatprep.subr.mxu0 0.0
      %1964 = vmatpush1.msra.mxu0 0.0
      %1965 = vmatprep.subr.mxu0 0.0
      %1966 = vmatpush1.msra.mxu0 0.0
      %1967 = vmatprep.subr.mxu0 0.0
      %1968 = vmatpush1.msra.mxu0 0.0
      %1969 = vmatprep.subr.mxu0 0.0
      %1970 = vmatpush1.msra.mxu0 0.0
      %1971 = vmatprep.subr.mxu0 0.0
      %1972 = vmatpush1.msra.mxu0 0.0
      %1973 = vmatprep.subr.mxu0 0.0
      %1974 = vmatpush1.msra.mxu0 0.0
      %1975 = vmatprep.subr.mxu0 0.0
      %1976 = vmatpush1.msra.mxu0 0.0
      %1977 = vmatprep.subr.mxu0 0.0
      %1978 = vmatpush1.msra.mxu0 0.0
      %1979 = vmatprep.subr.mxu0 0.0
      %1980 = vmatpush1.msra.mxu0 0.0
      %1981 = vmatprep.mubr.f32.mxu0 0.0
      %1982 = vmatmul.mubr.f32.gmra.mrb[0].mxu0 %v1891
      %v1983 = vpop.f32.mrb[0].mxu0
      %v1984 = vadd.f32 %v1915, %v1983
      %v1985 = vpop.f32.mrb[0].mxu0
      %1986 = vdwg.mxu0
      %v1987 = vtanh.pop %v1984
      %v1988 = vld [vmem:[%s856] sm:$0x1]
      %vm1989 = vcmask 64512
      %v1991 = vsel %vm1989, %v1988, 0
      %1993 = vmatprep.subr.mxu0 0.0
      %1994 = vmatpush1.msra.mxu0 %v1987
      %1995 = vmatprep.subr.mxu0 0.0
      %1996 = vmatpush1.msra.mxu0 0.0
      %1997 = vmatprep.subr.mxu0 0.0
      %1998 = vmatpush1.msra.mxu0 0.0
      %1999 = vmatprep.subr.mxu0 0.0
      %2000 = vmatpush1.msra.mxu0 0.0
      %2001 = vmatprep.subr.mxu0 0.0
      %2002 = vmatpush1.msra.mxu0 0.0
      %2003 = vmatprep.subr.mxu0 0.0
      %2004 = vmatpush1.msra.mxu0 0.0
      %2005 = vmatprep.subr.mxu0 0.0
      %2006 = vmatpush1.msra.mxu0 0.0
      %2007 = vmatprep.subr.mxu0 0.0
      %2008 = vmatpush1.msra.mxu0 0.0
      %2009 = vmatprep.subr.mxu0 0.0
      %2010 = vmatpush1.msra.mxu0 0.0
      %2011 = vmatprep.subr.mxu0 0.0
      %2012 = vmatpush1.msra.mxu0 0.0
      %2013 = vmatprep.subr.mxu0 0.0
      %2014 = vmatpush1.msra.mxu0 0.0
      %2015 = vmatprep.subr.mxu0 0.0
      %2016 = vmatpush1.msra.mxu0 0.0
      %2017 = vmatprep.subr.mxu0 0.0
      %2018 = vmatpush1.msra.mxu0 0.0
      %2019 = vmatprep.subr.mxu0 0.0
      %2020 = vmatpush1.msra.mxu0 0.0
      %2021 = vmatprep.subr.mxu0 0.0
      %2022 = vmatpush1.msra.mxu0 0.0
      %2023 = vmatprep.subr.mxu0 0.0
      %2024 = vmatpush1.msra.mxu0 0.0
      %2025 = vmatprep.subr.mxu0 0.0
      %2026 = vmatpush1.msra.mxu0 0.0
      %2027 = vmatprep.subr.mxu0 0.0
      %2028 = vmatpush1.msra.mxu0 0.0
      %2029 = vmatprep.subr.mxu0 0.0
      %2030 = vmatpush1.msra.mxu0 0.0
      %2031 = vmatprep.subr.mxu0 0.0
      %2032 = vmatpush1.msra.mxu0 0.0
      %2033 = vmatprep.subr.mxu0 0.0
      %2034 = vmatpush1.msra.mxu0 0.0
      %2035 = vmatprep.subr.mxu0 0.0
      %2036 = vmatpush1.msra.mxu0 0.0
      %2037 = vmatprep.subr.mxu0 0.0
      %2038 = vmatpush1.msra.mxu0 0.0
      %2039 = vmatprep.subr.mxu0 0.0
      %2040 = vmatpush1.msra.mxu0 0.0
      %2041 = vmatprep.subr.mxu0 0.0
      %2042 = vmatpush1.msra.mxu0 0.0
      %2043 = vmatprep.subr.mxu0 0.0
      %2044 = vmatpush1.msra.mxu0 0.0
      %2045 = vmatprep.subr.mxu0 0.0
      %2046 = vmatpush1.msra.mxu0 0.0
      %2047 = vmatprep.subr.mxu0 0.0
      %2048 = vmatpush1.msra.mxu0 0.0
      %2049 = vmatprep.subr.mxu0 0.0
      %2050 = vmatpush1.msra.mxu0 0.0
      %2051 = vmatprep.subr.mxu0 0.0
      %2052 = vmatpush1.msra.mxu0 0.0
      %2053 = vmatprep.subr.mxu0 0.0
      %2054 = vmatpush1.msra.mxu0 0.0
      %2055 = vmatprep.subr.mxu0 0.0
      %2056 = vmatpush1.msra.mxu0 0.0
      %2057 = vmatprep.mubr.f32.mxu0 0.0
      %2058 = vmatmul.mubr.f32.gmra.mrb[0].mxu0 %v1991
      %v2059 = vpop.f32.mrb[0].mxu0
      %v2060 = vadd.f32 0.0, %v2059
      %v2061 = vpop.f32.mrb[0].mxu0
      %2062 = vdwg.mxu0
      %v2063 = vld [vmem:[%s848] sm:$0xff]
      %v2064 = vld [vmem:[%s19] sm:$0xff]
      %v2065 = vld [vmem:[%s19 + $0x8] sm:$0xff]
      %v2066 = vld [vmem:[%s19 + $0x10] sm:$0xff]
      %v2067 = vld [vmem:[%s19 + $0x18] sm:$0xff]
      %v2068 = vld [vmem:[%s19 + $0x20] sm:$0xff]
      %v2069 = vld [vmem:[%s19 + $0x28] sm:$0xff]
      %v2070 = vld [vmem:[%s19 + $0x30] sm:$0xff]
      %v2071 = vld [vmem:[%s19 + $0x38] sm:$0xff]
      %v2072 = vld [vmem:[%s19 + $0x40] sm:$0xff]
      %v2073 = vld [vmem:[%s19 + $0x48] sm:$0xff]
      %v2074 = vld [vmem:[%s19 + $0x50] sm:$0xff]
      %v2075 = vld [vmem:[%s19 + $0x58] sm:$0xff]
      %v2076 = vld [vmem:[%s19 + $0x60] sm:$0xff]
      %v2077 = vld [vmem:[%s19 + $0x68] sm:$0xff]
      %v2078 = vld [vmem:[%s19 + $0x70] sm:$0xff]
      %v2079 = vld [vmem:[%s19 + $0x78] sm:$0xff]
      %2080 = vset.pattern.permute.xlu0 0
      %2081 = vperm.xlu0 %2080, %v2063
      %v2082 = vpop.permute.xlu0 %2081
      %vm2083 = vcmp.eq.s32.totalorder %v893, %v2082
      %v2084 = vsel %vm2083, 1, 0
      %v2085 = vcvt.s32.f32 %v2084
      %2086 = vmatprep.subr.mxu0 0.0
      %2087 = vmatpush1.msra.mxu0 %v2064
      %2088 = vmatprep.subr.mxu0 0.0
      %2089 = vmatpush1.msra.mxu0 %v2065
      %2090 = vmatprep.subr.mxu0 0.0
      %2091 = vmatpush1.msra.mxu0 %v2066
      %2092 = vmatprep.subr.mxu0 0.0
      %2093 = vmatpush1.msra.mxu0 %v2067
      %2094 = vmatprep.subr.mxu0 0.0
      %2095 = vmatpush1.msra.mxu0 %v2068
      %2096 = vmatprep.subr.mxu0 0.0
      %2097 = vmatpush1.msra.mxu0 %v2069
      %2098 = vmatprep.subr.mxu0 0.0
      %2099 = vmatpush1.msra.mxu0 %v2070
      %2100 = vmatprep.subr.mxu0 0.0
      %2101 = vmatpush1.msra.mxu0 %v2071
      %2102 = vmatprep.subr.mxu0 0.0
      %2103 = vmatpush1.msra.mxu0 %v2072
      %2104 = vmatprep.subr.mxu0 0.0
      %2105 = vmatpush1.msra.mxu0 %v2073
      %2106 = vmatprep.subr.mxu0 0.0
      %2107 = vmatpush1.msra.mxu0 %v2074
      %2108 = vmatprep.subr.mxu0 0.0
      %2109 = vmatpush1.msra.mxu0 %v2075
      %2110 = vmatprep.subr.mxu0 0.0
      %2111 = vmatpush1.msra.mxu0 %v2076
      %2112 = vmatprep.subr.mxu0 0.0
      %2113 = vmatpush1.msra.mxu0 %v2077
      %2114 = vmatprep.subr.mxu0 0.0
      %2115 = vmatpush1.msra.mxu0 %v2078
      %2116 = vmatprep.subr.mxu0 0.0
      %2117 = vmatpush1.msra.mxu0 %v2079
      %2118 = vmatprep.subr.mxu0 0.0
      %2119 = vmatpush1.msra.mxu0 0.0
      %2120 = vmatprep.subr.mxu0 0.0
      %2121 = vmatpush1.msra.mxu0 0.0
      %2122 = vmatprep.subr.mxu0 0.0
      %2123 = vmatpush1.msra.mxu0 0.0
      %2124 = vmatprep.subr.mxu0 0.0
      %2125 = vmatpush1.msra.mxu0 0.0
      %2126 = vmatprep.subr.mxu0 0.0
      %2127 = vmatpush1.msra.mxu0 0.0
      %2128 = vmatprep.subr.mxu0 0.0
      %2129 = vmatpush1.msra.mxu0 0.0
      %2130 = vmatprep.subr.mxu0 0.0
      %2131 = vmatpush1.msra.mxu0 0.0
      %2132 = vmatprep.subr.mxu0 0.0
      %2133 = vmatpush1.msra.mxu0 0.0
      %2134 = vmatprep.subr.mxu0 0.0
      %2135 = vmatpush1.msra.mxu0 0.0
      %2136 = vmatprep.subr.mxu0 0.0
      %2137 = vmatpush1.msra.mxu0 0.0
      %2138 = vmatprep.subr.mxu0 0.0
      %2139 = vmatpush1.msra.mxu0 0.0
      %2140 = vmatprep.subr.mxu0 0.0
      %2141 = vmatpush1.msra.mxu0 0.0
      %2142 = vmatprep.subr.mxu0 0.0
      %2143 = vmatpush1.msra.mxu0 0.0
      %2144 = vmatprep.subr.mxu0 0.0
      %2145 = vmatpush1.msra.mxu0 0.0
      %2146 = vmatprep.subr.mxu0 0.0
      %2147 = vmatpush1.msra.mxu0 0.0
      %2148 = vmatprep.subr.mxu0 0.0
      %2149 = vmatpush1.msra.mxu0 0.0
      %2150 = vmatprep.mubr.f32.mxu0 0.0
      %2151 = vmatmul.mubr.f32.gmra.mrb[0].mxu0 %v2085
      %v2152 = vpop.f32.mrb[0].mxu0
      %v2153 = vadd.f32 0.0, %v2152
      %v2154 = vpop.f32.mrb[0].mxu0
      %2155 = vdwg.mxu0
      %v2156 = vld [vmem:[%s20] sm:$0xff]
      %v2157 = vld [vmem:[%s20 + $0x8] sm:$0xff]
      %v2158 = vld [vmem:[%s20 + $0x10] sm:$0xff]
      %v2159 = vld [vmem:[%s20 + $0x18] sm:$0xff]
      %v2160 = vld [vmem:[%s20 + $0x20] sm:$0xff]
      %v2161 = vld [vmem:[%s20 + $0x28] sm:$0xff]
      %v2162 = vld [vmem:[%s20 + $0x30] sm:$0xff]
      %v2163 = vld [vmem:[%s20 + $0x38] sm:$0xff]
      %v2164 = vld [vmem:[%s20 + $0x40] sm:$0xff]
      %v2165 = vld [vmem:[%s20 + $0x48] sm:$0xff]
      %v2166 = vld [vmem:[%s20 + $0x50] sm:$0xff]
      %v2167 = vld [vmem:[%s20 + $0x58] sm:$0xff]
      %v2168 = vld [vmem:[%s20 + $0x60] sm:$0xff]
      %v2169 = vld [vmem:[%s20 + $0x68] sm:$0xff]
      %v2170 = vld [vmem:[%s20 + $0x70] sm:$0xff]
      %v2171 = vld [vmem:[%s20 + $0x78] sm:$0xff]
      %v2172 = vlaneseq
      %v2173 = vshrl.u32 %v2172, 7
      %v2174 = vsub.s32 0, %v2173
      %v2175 = vrot.slane %v2060, %v2174
      %2176 = vmatprep.subr.mxu0 0.0
      %2177 = vmatpush1.msra.mxu0 %v2156
      %2178 = vmatprep.subr.mxu0 0.0
      %2179 = vmatpush1.msra.mxu0 %v2157
      %2180 = vmatprep.subr.mxu0 0.0
      %2181 = vmatpush1.msra.mxu0 %v2158
      %2182 = vmatprep.subr.mxu0 0.0
      %2183 = vmatpush1.msra.mxu0 %v2159
      %2184 = vmatprep.subr.mxu0 0.0
      %2185 = vmatpush1.msra.mxu0 %v2160
      %2186 = vmatprep.subr.mxu0 0.0
      %2187 = vmatpush1.msra.mxu0 %v2161
      %2188 = vmatprep.subr.mxu0 0.0
      %2189 = vmatpush1.msra.mxu0 %v2162
      %2190 = vmatprep.subr.mxu0 0.0
      %2191 = vmatpush1.msra.mxu0 %v2163
      %2192 = vmatprep.subr.mxu0 0.0
      %2193 = vmatpush1.msra.mxu0 %v2164
      %2194 = vmatprep.subr.mxu0 0.0
      %2195 = vmatpush1.msra.mxu0 %v2165
      %2196 = vmatprep.subr.mxu0 0.0
      %2197 = vmatpush1.msra.mxu0 %v2166
      %2198 = vmatprep.subr.mxu0 0.0
      %2199 = vmatpush1.msra.mxu0 %v2167
      %2200 = vmatprep.subr.mxu0 0.0
      %2201 = vmatpush1.msra.mxu0 %v2168
      %2202 = vmatprep.subr.mxu0 0.0
      %2203 = vmatpush1.msra.mxu0 %v2169
      %2204 = vmatprep.subr.mxu0 0.0
      %2205 = vmatpush1.msra.mxu0 %v2170
      %2206 = vmatprep.subr.mxu0 0.0
      %2207 = vmatpush1.msra.mxu0 %v2171
      %2208 = vmatprep.subr.mxu0 0.0
      %2209 = vmatpush1.msra.mxu0 0.0
      %2210 = vmatprep.subr.mxu0 0.0
      %2211 = vmatpush1.msra.mxu0 0.0
      %2212 = vmatprep.subr.mxu0 0.0
      %2213 = vmatpush1.msra.mxu0 0.0
      %2214 = vmatprep.subr.mxu0 0.0
      %2215 = vmatpush1.msra.mxu0 0.0
      %2216 = vmatprep.subr.mxu0 0.0
      %2217 = vmatpush1.msra.mxu0 0.0
      %2218 = vmatprep.subr.mxu0 0.0
      %2219 = vmatpush1.msra.mxu0 0.0
      %2220 = vmatprep.subr.mxu0 0.0
      %2221 = vmatpush1.msra.mxu0 0.0
      %2222 = vmatprep.subr.mxu0 0.0
      %2223 = vmatpush1.msra.mxu0 0.0
      %2224 = vmatprep.subr.mxu0 0.0
      %2225 = vmatpush1.msra.mxu0 0.0
      %2226 = vmatprep.subr.mxu0 0.0
      %2227 = vmatpush1.msra.mxu0 0.0
      %2228 = vmatprep.subr.mxu0 0.0
      %2229 = vmatpush1.msra.mxu0 0.0
      %2230 = vmatprep.subr.mxu0 0.0
      %2231 = vmatpush1.msra.mxu0 0.0
      %2232 = vmatprep.subr.mxu0 0.0
      %2233 = vmatpush1.msra.mxu0 0.0
      %2234 = vmatprep.subr.mxu0 0.0
      %2235 = vmatpush1.msra.mxu0 0.0
      %2236 = vmatprep.subr.mxu0 0.0
      %2237 = vmatpush1.msra.mxu0 0.0
      %2238 = vmatprep.subr.mxu0 0.0
      %2239 = vmatpush1.msra.mxu0 0.0
      %2240 = vmatprep.mubr.f32.mxu0 0.0
      %2241 = vmatmul.mubr.f32.gmra.mrb[0].mxu0 %v2153
      %v2242 = vpop.f32.mrb[0].mxu0
      %v2243 = vadd.f32 %v2175, %v2242
      %v2244 = vpop.f32.mrb[0].mxu0
      %2245 = vdwg.mxu0
      %v2246 = vld [vmem:[%s22] sm:$0x1]
      %v2248 = vlaneseq
      %v2249 = vshrl.u32 %v2248, 7
      %v2250 = vsub.s32 0, %v2249
      %v2251 = vrot.slane %v2246, %v2250
      %v2253 = vadd.f32 %v2243, %v2251
      %v2254 = vtanh.pop %v2253
      %v2255 = vld [vmem:[%s864] sm:$0x1]
      %v2257 = vlaneseq
      %v2258 = vshrl.u32 %v2257, 7
      %v2259 = vsub.s32 0, %v2258
      %v2260 = vrot.slane %v2255, %v2259
      %2262 = vmatprep.subr.mxu0 0.0
      %2263 = vmatpush1.xpose.msra.mxu0 %v1987
      %2264 = vmatprep.subr.mxu0 0.0
      %2265 = vmatpush1.xpose.msra.mxu0 0.0
      %2266 = vmatprep.subr.mxu0 0.0
      %2267 = vmatpush1.xpose.msra.mxu0 0.0
      %2268 = vmatprep.subr.mxu0 0.0
      %2269 = vmatpush1.xpose.msra.mxu0 0.0
      %2270 = vmatprep.subr.mxu0 0.0
      %2271 = vmatpush1.xpose.msra.mxu0 0.0
      %2272 = vmatprep.subr.mxu0 0.0
      %2273 = vmatpush1.xpose.msra.mxu0 0.0
      %2274 = vmatprep.subr.mxu0 0.0
      %2275 = vmatpush1.xpose.msra.mxu0 0.0
      %2276 = vmatprep.subr.mxu0 0.0
      %2277 = vmatpush1.xpose.msra.mxu0 0.0
      %2278 = vmatprep.subr.mxu0 0.0
      %2279 = vmatpush1.xpose.msra.mxu0 0.0
      %2280 = vmatprep.subr.mxu0 0.0
      %2281 = vmatpush1.xpose.msra.mxu0 0.0
      %2282 = vmatprep.subr.mxu0 0.0
      %2283 = vmatpush1.xpose.msra.mxu0 0.0
      %2284 = vmatprep.subr.mxu0 0.0
      %2285 = vmatpush1.xpose.msra.mxu0 0.0
      %2286 = vmatprep.subr.mxu0 0.0
      %2287 = vmatpush1.xpose.msra.mxu0 0.0
      %2288 = vmatprep.subr.mxu0 0.0
      %2289 = vmatpush1.xpose.msra.mxu0 0.0
      %2290 = vmatprep.subr.mxu0 0.0
      %2291 = vmatpush1.xpose.msra.mxu0 0.0
      %2292 = vmatprep.subr.mxu0 0.0
      %2293 = vmatpush1.xpose.msra.mxu0 0.0
      %2294 = vmatprep.subr.mxu0 0.0
      %2295 = vmatpush1.xpose.msra.mxu0 0.0
      %2296 = vmatprep.subr.mxu0 0.0
      %2297 = vmatpush1.xpose.msra.mxu0 0.0
      %2298 = vmatprep.subr.mxu0 0.0
      %2299 = vmatpush1.xpose.msra.mxu0 0.0
      %2300 = vmatprep.subr.mxu0 0.0
      %2301 = vmatpush1.xpose.msra.mxu0 0.0
      %2302 = vmatprep.subr.mxu0 0.0
      %2303 = vmatpush1.xpose.msra.mxu0 0.0
      %2304 = vmatprep.subr.mxu0 0.0
      %2305 = vmatpush1.xpose.msra.mxu0 0.0
      %2306 = vmatprep.subr.mxu0 0.0
      %2307 = vmatpush1.xpose.msra.mxu0 0.0
      %2308 = vmatprep.subr.mxu0 0.0
      %2309 = vmatpush1.xpose.msra.mxu0 0.0
      %2310 = vmatprep.subr.mxu0 0.0
      %2311 = vmatpush1.xpose.msra.mxu0 0.0
      %2312 = vmatprep.subr.mxu0 0.0
      %2313 = vmatpush1.xpose.msra.mxu0 0.0
      %2314 = vmatprep.subr.mxu0 0.0
      %2315 = vmatpush1.xpose.msra.mxu0 0.0
      %2316 = vmatprep.subr.mxu0 0.0
      %2317 = vmatpush1.xpose.msra.mxu0 0.0
      %2318 = vmatprep.subr.mxu0 0.0
      %2319 = vmatpush1.xpose.msra.mxu0 0.0
      %2320 = vmatprep.subr.mxu0 0.0
      %2321 = vmatpush1.xpose.msra.mxu0 0.0
      %2322 = vmatprep.subr.mxu0 0.0
      %2323 = vmatpush1.xpose.msra.mxu0 0.0
      %2324 = vmatprep.subr.mxu0 0.0
      %2325 = vmatpush1.xpose.msra.mxu0 0.0
      %2326 = vmatprep.mubr.f32.mxu0 0.0
      %2327 = vmatmul.mubr.f32.gmra.mrb[0].mxu0 %v2254
      %v2328 = vpop.f32.mrb[0].mxu0
      %v2329 = vadd.f32 %v2260, %v2328
      %v2330 = vpop.f32.mrb[0].mxu0
      %2331 = vdwg.mxu0
      %v2332 = vsel %vm1989, %v2329, -inf
      %2333 = vmax.xlane.f32.xlu0 %v2332
      %v2334 = vpop.xlane.xlu0 %2333
      %v2335 = vsub.f32 %v2329, %v2334
      %v2336 = vmul.f32 %v2335, 1.442695
      %v2337 = vpow.pop %v2336
      %v2338 = vsel %vm1989, %v2337, 0.0
      %2339 = vadd.xlane.f32.xlu0 %v2338
      %v2340 = vpop.xlane.xlu0 %2339
      %v2341 = vrcp.pop %v2340
      %v2342 = vmul.f32 %v2337, %v2341
      %v2344 = vsel %vm1989, %v2342, 0
      %2346 = vmatprep.subr.mxu0 0.0
      %2347 = vmatpush1.msra.mxu0 %v1987
      %2348 = vmatprep.subr.mxu0 0.0
      %2349 = vmatpush1.msra.mxu0 0.0
      %2350 = vmatprep.subr.mxu0 0.0
      %2351 = vmatpush1.msra.mxu0 0.0
      %2352 = vmatprep.subr.mxu0 0.0
      %2353 = vmatpush1.msra.mxu0 0.0
      %2354 = vmatprep.subr.mxu0 0.0
      %2355 = vmatpush1.msra.mxu0 0.0
      %2356 = vmatprep.subr.mxu0 0.0
      %2357 = vmatpush1.msra.mxu0 0.0
      %2358 = vmatprep.subr.mxu0 0.0
      %2359 = vmatpush1.msra.mxu0 0.0
      %2360 = vmatprep.subr.mxu0 0.0
      %2361 = vmatpush1.msra.mxu0 0.0
      %2362 = vmatprep.subr.mxu0 0.0
      %2363 = vmatpush1.msra.mxu0 0.0
      %2364 = vmatprep.subr.mxu0 0.0
      %2365 = vmatpush1.msra.mxu0 0.0
      %2366 = vmatprep.subr.mxu0 0.0
      %2367 = vmatpush1.msra.mxu0 0.0
      %2368 = vmatprep.subr.mxu0 0.0
      %2369 = vmatpush1.msra.mxu0 0.0
      %2370 = vmatprep.subr.mxu0 0.0
      %2371 = vmatpush1.msra.mxu0 0.0
      %2372 = vmatprep.subr.mxu0 0.0
      %2373 = vmatpush1.msra.mxu0 0.0
      %2374 = vmatprep.subr.mxu0 0.0
      %2375 = vmatpush1.msra.mxu0 0.0
      %2376 = vmatprep.subr.mxu0 0.0
      %2377 = vmatpush1.msra.mxu0 0.0
      %2378 = vmatprep.subr.mxu0 0.0
      %2379 = vmatpush1.msra.mxu0 0.0
      %2380 = vmatprep.subr.mxu0 0.0
      %2381 = vmatpush1.msra.mxu0 0.0
      %2382 = vmatprep.subr.mxu0 0.0
      %2383 = vmatpush1.msra.mxu0 0.0
      %2384 = vmatprep.subr.mxu0 0.0
      %2385 = vmatpush1.msra.mxu0 0.0
      %2386 = vmatprep.subr.mxu0 0.0
      %2387 = vmatpush1.msra.mxu0 0.0
      %2388 = vmatprep.subr.mxu0 0.0
      %2389 = vmatpush1.msra.mxu0 0.0
      %2390 = vmatprep.subr.mxu0 0.0
      %2391 = vmatpush1.msra.mxu0 0.0
      %2392 = vmatprep.subr.mxu0 0.0
      %2393 = vmatpush1.msra.mxu0 0.0
      %2394 = vmatprep.subr.mxu0 0.0
      %2395 = vmatpush1.msra.mxu0 0.0
      %2396 = vmatprep.subr.mxu0 0.0
      %2397 = vmatpush1.msra.mxu0 0.0
      %2398 = vmatprep.subr.mxu0 0.0
      %2399 = vmatpush1.msra.mxu0 0.0
      %2400 = vmatprep.subr.mxu0 0.0
      %2401 = vmatpush1.msra.mxu0 0.0
      %2402 = vmatprep.subr.mxu0 0.0
      %2403 = vmatpush1.msra.mxu0 0.0
      %2404 = vmatprep.subr.mxu0 0.0
      %2405 = vmatpush1.msra.mxu0 0.0
      %2406 = vmatprep.subr.mxu0 0.0
      %2407 = vmatpush1.msra.mxu0 0.0
      %2408 = vmatprep.subr.mxu0 0.0
      %2409 = vmatpush1.msra.mxu0 0.0
      %2410 = vmatprep.mubr.f32.mxu0 0.0
      %2411 = vmatmul.mubr.f32.gmra.mrb[0].mxu0 %v2344
      %v2412 = vpop.f32.mrb[0].mxu0
      %v2413 = vadd.f32 0.0, %v2412
      %v2414 = vpop.f32.mrb[0].mxu0
      %2415 = vdwg.mxu0
      %v2416 = vld [vmem:[%s867] sm:$0x1]
      %v2418 = vlaneseq
      %v2419 = vshrl.u32 %v2418, 7
      %v2420 = vsub.s32 0, %v2419
      %v2421 = vrot.slane %v2416, %v2420
      %2423 = vmatprep.subr.mxu0 0.0
      %2424 = vmatpush1.xpose.msra.mxu0 %v1783
      %2425 = vmatprep.subr.mxu0 0.0
      %2426 = vmatpush1.xpose.msra.mxu0 %v1788
      %2427 = vmatprep.subr.mxu0 0.0
      %2428 = vmatpush1.xpose.msra.mxu0 %v1793
      %2429 = vmatprep.subr.mxu0 0.0
      %2430 = vmatpush1.xpose.msra.mxu0 %v1798
      %2431 = vmatprep.subr.mxu0 0.0
      %2432 = vmatpush1.xpose.msra.mxu0 0.0
      %2433 = vmatprep.subr.mxu0 0.0
      %2434 = vmatpush1.xpose.msra.mxu0 0.0
      %2435 = vmatprep.subr.mxu0 0.0
      %2436 = vmatpush1.xpose.msra.mxu0 0.0
      %2437 = vmatprep.subr.mxu0 0.0
      %2438 = vmatpush1.xpose.msra.mxu0 0.0
      %2439 = vmatprep.subr.mxu0 0.0
      %2440 = vmatpush1.xpose.msra.mxu0 0.0
      %2441 = vmatprep.subr.mxu0 0.0
      %2442 = vmatpush1.xpose.msra.mxu0 0.0
      %2443 = vmatprep.subr.mxu0 0.0
      %2444 = vmatpush1.xpose.msra.mxu0 0.0
      %2445 = vmatprep.subr.mxu0 0.0
      %2446 = vmatpush1.xpose.msra.mxu0 0.0
      %2447 = vmatprep.subr.mxu0 0.0
      %2448 = vmatpush1.xpose.msra.mxu0 0.0
      %2449 = vmatprep.subr.mxu0 0.0
      %2450 = vmatpush1.xpose.msra.mxu0 0.0
      %2451 = vmatprep.subr.mxu0 0.0
      %2452 = vmatpush1.xpose.msra.mxu0 0.0
      %2453 = vmatprep.subr.mxu0 0.0
      %2454 = vmatpush1.xpose.msra.mxu0 0.0
      %2455 = vmatprep.subr.mxu0 0.0
      %2456 = vmatpush1.xpose.msra.mxu0 0.0
      %2457 = vmatprep.subr.mxu0 0.0
      %2458 = vmatpush1.xpose.msra.mxu0 0.0
      %2459 = vmatprep.subr.mxu0 0.0
      %2460 = vmatpush1.xpose.msra.mxu0 0.0
      %2461 = vmatprep.subr.mxu0 0.0
      %2462 = vmatpush1.xpose.msra.mxu0 0.0
      %2463 = vmatprep.subr.mxu0 0.0
      %2464 = vmatpush1.xpose.msra.mxu0 0.0
      %2465 = vmatprep.subr.mxu0 0.0
      %2466 = vmatpush1.xpose.msra.mxu0 0.0
      %2467 = vmatprep.subr.mxu0 0.0
      %2468 = vmatpush1.xpose.msra.mxu0 0.0
      %2469 = vmatprep.subr.mxu0 0.0
      %2470 = vmatpush1.xpose.msra.mxu0 0.0
      %2471 = vmatprep.subr.mxu0 0.0
      %2472 = vmatpush1.xpose.msra.mxu0 0.0
      %2473 = vmatprep.subr.mxu0 0.0
      %2474 = vmatpush1.xpose.msra.mxu0 0.0
      %2475 = vmatprep.subr.mxu0 0.0
      %2476 = vmatpush1.xpose.msra.mxu0 0.0
      %2477 = vmatprep.subr.mxu0 0.0
      %2478 = vmatpush1.xpose.msra.mxu0 0.0
      %2479 = vmatprep.subr.mxu0 0.0
      %2480 = vmatpush1.xpose.msra.mxu0 0.0
      %2481 = vmatprep.subr.mxu0 0.0
      %2482 = vmatpush1.xpose.msra.mxu0 0.0
      %2483 = vmatprep.subr.mxu0 0.0
      %2484 = vmatpush1.xpose.msra.mxu0 0.0
      %2485 = vmatprep.subr.mxu0 0.0
      %2486 = vmatpush1.xpose.msra.mxu0 0.0
      %2487 = vmatprep.mubr.f32.mxu0 0.0
      %2488 = vmatmul.mubr.f32.gmra.mrb[0].mxu0 %v2254
      %v2489 = vpop.f32.mrb[0].mxu0
      %v2490 = vadd.f32 %v2421, %v2489
      %v2491 = vpop.f32.mrb[0].mxu0
      %2492 = vdwg.mxu0
      %v2493 = vsel %vm1119, %v2490, -inf
      %2494 = vmax.xlane.f32.xlu0 %v2493
      %v2495 = vpop.xlane.xlu0 %2494
      %v2496 = vsub.f32 %v2490, %v2495
      %v2497 = vmul.f32 %v2496, 1.442695
      %v2498 = vpow.pop %v2497
      %v2499 = vsel %vm1119, %v2498, 0.0
      %2500 = vadd.xlane.f32.xlu0 %v2499
      %v2501 = vpop.xlane.xlu0 %2500
      %v2502 = vrcp.pop %v2501
      %v2503 = vmul.f32 %v2498, %v2502
      %v2505 = vsel %vm1119, %v2503, 0
      %2507 = vmatprep.subr.mxu0 0.0
      %2508 = vmatpush1.msra.mxu0 %v1696
      %2509 = vmatprep.subr.mxu0 0.0
      %2510 = vmatpush1.msra.mxu0 %v1697
      %2511 = vmatprep.subr.mxu0 0.0
      %2512 = vmatpush1.msra.mxu0 %v1698
      %2513 = vmatprep.subr.mxu0 0.0
      %2514 = vmatpush1.msra.mxu0 %v1699
      %2515 = vmatprep.subr.mxu0 0.0
      %2516 = vmatpush1.msra.mxu0 0.0
      %2517 = vmatprep.subr.mxu0 0.0
      %2518 = vmatpush1.msra.mxu0 0.0
      %2519 = vmatprep.subr.mxu0 0.0
      %2520 = vmatpush1.msra.mxu0 0.0
      %2521 = vmatprep.subr.mxu0 0.0
      %2522 = vmatpush1.msra.mxu0 0.0
      %2523 = vmatprep.subr.mxu0 0.0
      %2524 = vmatpush1.msra.mxu0 0.0
      %2525 = vmatprep.subr.mxu0 0.0
      %2526 = vmatpush1.msra.mxu0 0.0
      %2527 = vmatprep.subr.mxu0 0.0
      %2528 = vmatpush1.msra.mxu0 0.0
      %2529 = vmatprep.subr.mxu0 0.0
      %2530 = vmatpush1.msra.mxu0 0.0
      %2531 = vmatprep.subr.mxu0 0.0
      %2532 = vmatpush1.msra.mxu0 0.0
      %2533 = vmatprep.subr.mxu0 0.0
      %2534 = vmatpush1.msra.mxu0 0.0
      %2535 = vmatprep.subr.mxu0 0.0
      %2536 = vmatpush1.msra.mxu0 0.0
      %2537 = vmatprep.subr.mxu0 0.0
      %2538 = vmatpush1.msra.mxu0 0.0
      %2539 = vmatprep.subr.mxu0 0.0
      %2540 = vmatpush1.msra.mxu0 0.0
      %2541 = vmatprep.subr.mxu0 0.0
      %2542 = vmatpush1.msra.mxu0 0.0
      %2543 = vmatprep.subr.mxu0 0.0
      %2544 = vmatpush1.msra.mxu0 0.0
      %2545 = vmatprep.subr.mxu0 0.0
      %2546 = vmatpush1.msra.mxu0 0.0
      %2547 = vmatprep.subr.mxu0 0.0
      %2548 = vmatpush1.msra.mxu0 0.0
      %2549 = vmatprep.subr.mxu0 0.0
      %2550 = vmatpush1.msra.mxu0 0.0
      %2551 = vmatprep.subr.mxu0 0.0
      %2552 = vmatpush1.msra.mxu0 0.0
      %2553 = vmatprep.subr.mxu0 0.0
      %2554 = vmatpush1.msra.mxu0 0.0
      %2555 = vmatprep.subr.mxu0 0.0
      %2556 = vmatpush1.msra.mxu0 0.0
      %2557 = vmatprep.subr.mxu0 0.0
      %2558 = vmatpush1.msra.mxu0 0.0
      %2559 = vmatprep.subr.mxu0 0.0
      %2560 = vmatpush1.msra.mxu0 0.0
      %2561 = vmatprep.subr.mxu0 0.0
      %2562 = vmatpush1.msra.mxu0 0.0
      %2563 = vmatprep.subr.mxu0 0.0
      %2564 = vmatpush1.msra.mxu0 0.0
      %2565 = vmatprep.subr.mxu0 0.0
      %2566 = vmatpush1.msra.mxu0 0.0
      %2567 = vmatprep.subr.mxu0 0.0
      %2568 = vmatpush1.msra.mxu0 0.0
      %2569 = vmatprep.subr.mxu0 0.0
      %2570 = vmatpush1.msra.mxu0 0.0
      %2571 = vmatprep.mubr.f32.mxu0 0.0
      %2572 = vmatmul.mubr.f32.gmra.mrb[0].mxu0 %v2505
      %v2573 = vpop.f32.mrb[0].mxu0
      %v2574 = vadd.f32 0.0, %v2573
      %v2575 = vpop.f32.mrb[0].mxu0
      %2576 = vdwg.mxu0
      %v2577 = vadd.f32 %v2254, %v2413
      %v2578 = vadd.f32 %v2577, %v2574
      %v2579 = vtanh.pop %v2578
      %v2580 = vld [vmem:[%s21] sm:$0xff]
      %v2581 = vld [vmem:[%s21 + $0x8] sm:$0xff]
      %v2582 = vld [vmem:[%s21 + $0x10] sm:$0xff]
      %v2583 = vld [vmem:[%s21 + $0x18] sm:$0xff]
      %v2584 = vld [vmem:[%s21 + $0x20] sm:$0xff]
      %v2585 = vld [vmem:[%s21 + $0x28] sm:$0xff]
      %v2586 = vld [vmem:[%s21 + $0x30] sm:$0xff]
      %v2587 = vld [vmem:[%s21 + $0x38] sm:$0xff]
      %v2588 = vld [vmem:[%s21 + $0x40] sm:$0xff]
      %v2589 = vld [vmem:[%s21 + $0x48] sm:$0xff]
      %v2590 = vld [vmem:[%s21 + $0x50] sm:$0xff]
      %v2591 = vld [vmem:[%s21 + $0x58] sm:$0xff]
      %v2592 = vld [vmem:[%s21 + $0x60] sm:$0xff]
      %v2593 = vld [vmem:[%s21 + $0x68] sm:$0xff]
      %v2594 = vld [vmem:[%s21 + $0x70] sm:$0xff]
      %v2595 = vld [vmem:[%s21 + $0x78] sm:$0xff]
      %v2596 = vld [vmem:[%s23] sm:$0x1]
      %v2598 = vlaneseq
      %v2599 = vshrl.u32 %v2598, 7
      %v2600 = vsub.s32 0, %v2599
      %v2601 = vrot.slane %v2596, %v2600
      %2603 = vmatprep.subr.mxu0 0.0
      %2604 = vmatpush1.msra.mxu0 %v2580
      %2605 = vmatprep.subr.mxu0 0.0
      %2606 = vmatpush1.msra.mxu0 %v2581
      %2607 = vmatprep.subr.mxu0 0.0
      %2608 = vmatpush1.msra.mxu0 %v2582
      %2609 = vmatprep.subr.mxu0 0.0
      %2610 = vmatpush1.msra.mxu0 %v2583
      %2611 = vmatprep.subr.mxu0 0.0
      %2612 = vmatpush1.msra.mxu0 %v2584
      %2613 = vmatprep.subr.mxu0 0.0
      %2614 = vmatpush1.msra.mxu0 %v2585
      %2615 = vmatprep.subr.mxu0 0.0
      %2616 = vmatpush1.msra.mxu0 %v2586
      %2617 = vmatprep.subr.mxu0 0.0
      %2618 = vmatpush1.msra.mxu0 %v2587
      %2619 = vmatprep.subr.mxu0 0.0
      %2620 = vmatpush1.msra.mxu0 %v2588
      %2621 = vmatprep.subr.mxu0 0.0
      %2622 = vmatpush1.msra.mxu0 %v2589
      %2623 = vmatprep.subr.mxu0 0.0
      %2624 = vmatpush1.msra.mxu0 %v2590
      %2625 = vmatprep.subr.mxu0 0.0
      %2626 = vmatpush1.msra.mxu0 %v2591
      %2627 = vmatprep.subr.mxu0 0.0
      %2628 = vmatpush1.msra.mxu0 %v2592
      %2629 = vmatprep.subr.mxu0 0.0
      %2630 = vmatpush1.msra.mxu0 %v2593
      %2631 = vmatprep.subr.mxu0 0.0
      %2632 = vmatpush1.msra.mxu0 %v2594
      %2633 = vmatprep.subr.mxu0 0.0
      %2634 = vmatpush1.msra.mxu0 %v2595
      %2635 = vmatprep.subr.mxu0 0.0
      %2636 = vmatpush1.msra.mxu0 0.0
      %2637 = vmatprep.subr.mxu0 0.0
      %2638 = vmatpush1.msra.mxu0 0.0
      %2639 = vmatprep.subr.mxu0 0.0
      %2640 = vmatpush1.msra.mxu0 0.0
      %2641 = vmatprep.subr.mxu0 0.0
      %2642 = vmatpush1.msra.mxu0 0.0
      %2643 = vmatprep.subr.mxu0 0.0
      %2644 = vmatpush1.msra.mxu0 0.0
      %2645 = vmatprep.subr.mxu0 0.0
      %2646 = vmatpush1.msra.mxu0 0.0
      %2647 = vmatprep.subr.mxu0 0.0
      %2648 = vmatpush1.msra.mxu0 0.0
      %2649 = vmatprep.subr.mxu0 0.0
      %2650 = vmatpush1.msra.mxu0 0.0
      %2651 = vmatprep.subr.mxu0 0.0
      %2652 = vmatpush1.msra.mxu0 0.0
      %2653 = vmatprep.subr.mxu0 0.0
      %2654 = vmatpush1.msra.mxu0 0.0
      %2655 = vmatprep.subr.mxu0 0.0
      %2656 = vmatpush1.msra.mxu0 0.0
      %2657 = vmatprep.subr.mxu0 0.0
      %2658 = vmatpush1.msra.mxu0 0.0
      %2659 = vmatprep.subr.mxu0 0.0
      %2660 = vmatpush1.msra.mxu0 0.0
      %2661 = vmatprep.subr.mxu0 0.0
      %2662 = vmatpush1.msra.mxu0 0.0
      %2663 = vmatprep.subr.mxu0 0.0
      %2664 = vmatpush1.msra.mxu0 0.0
      %2665 = vmatprep.subr.mxu0 0.0
      %2666 = vmatpush1.msra.mxu0 0.0
      %2667 = vmatprep.mubr.f32.mxu0 0.0
      %2668 = vmatmul.mubr.f32.gmra.mrb[0].mxu0 %v2579
      %v2669 = vpop.f32.mrb[0].mxu0
      %v2670 = vadd.f32 %v2601, %v2669
      %v2671 = vpop.f32.mrb[0].mxu0
      %2672 = vdwg.mxu0
      %2673 = vmax.xlane.f32.xlu0 %v2670
      %v2674 = vpop.xlane.xlu0 %2673
      %v2675 = vsub.f32 %v2670, %v2674
      %v2676 = vmul.f32 %v2675, 1.442695
      %v2677 = vpow.pop %v2676
      %2678 = vadd.xlane.f32.xlu0 %v2677
      %v2679 = vpop.xlane.xlu0 %2678
      %v2680 = vrcp.pop %v2679
      %v2681 = vmul.f32 %v2677, %v2680
      %2682 = vst [vmem:[%s871] sm:$0xff] %v2681
      %p2683 = scmp.lt.s32.totalorder %s35, 1
      %s2684 = scalar_select %p2683, %s35, 1
      %s2685 = smul.addr %s2684, 8
      %s2686 = scalar_lea.vmem %s24, %s2685
      // Predicated region
      $region117: #{test_model_forward.1} parent=115 // pred_check
        %p2687 = pneg %p602
      $region118: #{test_model_forward.1} parent=115 // pred_check_branch
        %2689 = sbr.rel (%p2687) target = $region120
      $region119: #{test_model_forward.1} parent=115 // pred_region
        _
      $region120: #{test_model_forward.1} parent=115 // pred_fallthru
        _
    $region116: #{test_model_forward.1} parent=5 // pred_fallthru
      _
    %p2690 = scmp.le.s32.totalorder 2, %s30
    // Predicated region
    $region121: #{test_model_forward.1} parent=5 // pred_check
      %p2691 = pneg %p2690
    $region122: #{test_model_forward.1} parent=5 // pred_check_branch
      %2693 = sbr.rel (%p2691) target = $region124
    $region123: #{test_model_forward.1} parent=5 // pred_region
      %s2694 = ssub.s32 %s30, 2
      // Predicated region
      $region125: #{test_model_forward.1} parent=123 // pred_check
        %p2695 = pneg %p608
      $region126: #{test_model_forward.1} parent=123 // pred_check_branch
        %2697 = sbr.rel (%p2695) target = $region128
      $region127: #{test_model_forward.1} parent=123 // pred_region
        %p2698 = scmp.lt.s32.totalorder %s36, 1
        %s2699 = scalar_select %p2698, %s36, 1
        %s2700 = smul.addr %s2699, 8
        %s2701 = scalar_lea.vmem %s24, %s2700
      $region128: #{test_model_forward.1} parent=123 // pred_fallthru
        _
    $region124: #{test_model_forward.1} parent=5 // pred_fallthru
      _
  $region6: #{test_model_forward.1} parent=0 // loop_footer
    %s34 = sadd.s32 1, %s30
  $region7: #{test_model_forward.1} parent=0 // loop_footer_branch
    %29 = sbr.rel target = $region3
  $region8: #{test_model_forward.1} parent=0 // loop_exit
    _

</llo_original>
